<compile_context>
chip_gen: v6e
topology: v6e:2x2x1
jax: 0.10.0
libtpu: 0.0.40
codegen_flags: <defaults>
</compile_context>

<pallas_src>
import functools
import math

import jax
import jax.numpy as jnp
from jax.experimental import pallas as pl
from jax.experimental.pallas import tpu as pltpu

# ----------------------------- small synthetic config -----------------------------
B = 2            # batch
T = 8            # phone sequence length
VOCAB = 40       # phone vocabulary (src_word_emb)
SPK_VOCAB = 8    # speaker vocabulary (spk_tokenizer)
D = 32           # model hidden dim (adim)
STYLE_D = 32     # style embedding dim
CONTENT_D = 32   # content embedding dim
FFN_D = 64       # transformer FFN hidden dim
VP_FILT = 32     # variance-predictor conv channels
KCONV = 3        # conv kernel size (variance predictors & pitch/energy embed)
N_MELS = 16      # mel bins (to_mel output)
MAX_DUR = 4      # duration clamp -> static max length-regulated length
T_OUT = T * MAX_DUR


# ----------------------------- in-kernel helpers (pure jnp, traced inside kernels) --
def _ln(x, g, b, eps=1e-5):
    mu = jnp.mean(x, axis=-1, keepdims=True)
    var = jnp.mean((x - mu) ** 2, axis=-1, keepdims=True)
    return (x - mu) * jax.lax.rsqrt(var + eps) * g + b


def _group_ln(h, g, b, ngroups, gc, eps=1e-5):
    """LayerNorm applied independently to `ngroups` channel groups of width `gc`."""
    parts = []
    for gi in range(ngroups):
        hg = h[:, gi * gc:(gi + 1) * gc]
        mu = jnp.mean(hg, axis=-1, keepdims=True)
        var = jnp.mean((hg - mu) ** 2, axis=-1, keepdims=True)
        parts.append((hg - mu) * jax.lax.rsqrt(var + eps))
    return jnp.concatenate(parts, axis=-1) * g + b


def _conv_same(x, w_ref, b, kconv):
    """'same' Conv1d over time as K shifted matmuls. x:[T,Cin] value, w_ref:[K,Cin,Cout] ref."""
    tt, cin = x.shape
    cout = w_ref.shape[2]
    pad = (kconv - 1) // 2
    zp = jnp.zeros((pad, cin), jnp.float32)
    xp = jnp.concatenate([zp, x, zp], axis=0)                    # (T+2*pad, Cin), in-kernel pad
    acc = jnp.zeros((tt, cout), jnp.float32)
    for k in range(kconv):
        acc = acc + jnp.dot(xp[k:k + tt, :], w_ref[k],
                            preferred_element_type=jnp.float32)
    return acc + b


# ----------------------------- Kernel 1: fused FFT block ---------------------------
def _fused_fft_kernel(x_ref, wqkv_ref, bqkv_ref, wo_ref, bo_ref,
                      ln1g_ref, ln1b_ref, w1_ref, b1_ref, w2_ref, b2_ref,
                      ln2g_ref, ln2b_ref, *rest, scale, final_proj):
    if final_proj:
        fw_ref, fb_ref, o_ref = rest
    else:
        (o_ref,) = rest

    x = x_ref[0].astype(jnp.float32)                              # (T, D)
    d_model = x.shape[-1]

    # fused Q/K/V projection: one [T,D] @ [D,3D] MXU pass, sliced in vregs.
    qkv = jnp.dot(x, wqkv_ref[...], preferred_element_type=jnp.float32) + bqkv_ref[...]
    q = qkv[:, :d_model]
    k = qkv[:, d_model:2 * d_model]
    v = qkv[:, 2 * d_model:]

    # scaled dot-product attention; contract last axes directly (no K transpose relayout).
    s = jax.lax.dot_general(q, k, (((1,), (1,)), ((), ())),
                            preferred_element_type=jnp.float32) * scale
    m = jnp.max(s, axis=-1, keepdims=True)
    p = jnp.exp(s - m)
    denom = jnp.sum(p, axis=-1, keepdims=True)
    p = p * pl.reciprocal(denom, approx=True)                     # divide on the EUP slot
    a = jnp.dot(p, v, preferred_element_type=jnp.float32)
    a = jnp.dot(a, wo_ref[...], preferred_element_type=jnp.float32) + bo_ref[...]

    h = _ln(x + a, ln1g_ref[...], ln1b_ref[...])                  # residual + LN1 (fused)
    f = jnp.maximum(jnp.dot(h, w1_ref[...], preferred_element_type=jnp.float32) + b1_ref[...], 0.0)
    f = jnp.dot(f, w2_ref[...], preferred_element_type=jnp.float32) + b2_ref[...]
    y = _ln(h + f, ln2g_ref[...], ln2b_ref[...])                  # residual + LN2 (fused)

    if final_proj:                                                # fused to_mel epilogue
        y = jnp.dot(y, fw_ref[...], preferred_element_type=jnp.float32) + fb_ref[...]
    o_ref[0] = y.astype(o_ref.dtype)


def fused_fft_block(x, p, final_w=None, final_b=None):
    """Whole transformer FFT block (single head, post-LN) in one pallas_call, grid over batch."""
    Bx, Tx, Dx = x.shape
    scale = 1.0 / math.sqrt(Dx)
    final_proj = final_w is not None
    out_dim = final_w.shape[1] if final_proj else Dx

    def full(v):
        nd = v.ndim
        return pl.BlockSpec(v.shape, lambda b, _nd=nd: (0,) * _nd)

    inputs = [x, p["wqkv"], p["bqkv"], p["wo"], p["bo"],
              p["ln1_g"], p["ln1_b"], p["w1"], p["b1"], p["w2"], p["b2"],
              p["ln2_g"], p["ln2_b"]]
    if final_proj:
        inputs += [final_w, final_b]
    in_specs = [pl.BlockSpec((1, Tx, Dx), lambda b: (b, 0, 0))] + [full(v) for v in inputs[1:]]

    return pl.pallas_call(
        functools.partial(_fused_fft_kernel, scale=scale, final_proj=final_proj),
        grid=(Bx,),
        in_specs=in_specs,
        out_specs=pl.BlockSpec((1, Tx, out_dim), lambda b: (b, 0, 0)),
        out_shape=jax.ShapeDtypeStruct((Bx, Tx, out_dim), jnp.float32),
        compiler_params=pltpu.CompilerParams(dimension_semantics=("parallel",)),
    )(*inputs)


# ------------- Kernel 2: embed_projection1 + variance predictors + embeds + add ----
def _encoder_mid_kernel(x_ref, spk_ref, sty_ref, con_ref,
                        pw_ref, pb_ref,
                        vw1_ref, vb1_ref, vg1_ref, vbe1_ref,
                        vw2_ref, vb2_ref, vg2_ref, vbe2_ref,
                        vlw_ref, vlb_ref,
                        pew_ref, peb_ref,
                        xo_ref, do_ref, *, vp_filt, kconv):
    tt = x_ref.shape[1]
    dm = xo_ref.shape[2]

    # embed_projection1: concat([x, spk, sty, con]) -> (T, 4D) = 128 lanes (lane-dense matmul LHS)
    x = x_ref[0].astype(jnp.float32)                              # (T, D)
    spk = jnp.broadcast_to(spk_ref[0], (tt, spk_ref.shape[2]))
    sty = jnp.broadcast_to(sty_ref[0], (tt, sty_ref.shape[2]))
    con = jnp.broadcast_to(con_ref[0], (tt, con_ref.shape[2]))
    feat = jnp.concatenate([x, spk, sty, con], axis=-1)           # (T, 4D)
    xp = jnp.dot(feat, pw_ref[...], preferred_element_type=jnp.float32) + pb_ref[...]

    # three variance predictors (pitch, energy, duration) fused along the channel axis:
    # conv1 outputs are concatenated, conv2 is block-diagonal, the head maps group g -> column g.
    h = jnp.maximum(_conv_same(xp, vw1_ref, vb1_ref[...], kconv), 0.0)
    h = _group_ln(h, vg1_ref[...], vbe1_ref[...], 3, vp_filt)
    h = jnp.maximum(_conv_same(h, vw2_ref, vb2_ref[...], kconv), 0.0)
    h = _group_ln(h, vg2_ref[...], vbe2_ref[...], 3, vp_filt)
    heads = jnp.dot(h, vlw_ref[...], preferred_element_type=jnp.float32) + vlb_ref[...]  # (T, 3)

    # pitch_embed / energy_embed = Conv1d(1, D, K) over the predictor outputs; fused as a
    # 2-channel conv done with VPU broadcast-multiplies (contraction dim is only 2).
    pe_in = heads[:, 0:2]                                         # (T, 2) = [pitch, energy]
    zp2 = jnp.zeros((1, 2), jnp.float32)
    pe_pad = jnp.concatenate([zp2, pe_in, zp2], axis=0)           # (T+2, 2)
    emb = jnp.zeros((tt, dm), jnp.float32)
    for k in range(kconv):
        wk = pew_ref[k]                                           # (2, D)
        emb = emb + pe_pad[k:k + tt, 0:1] * wk[0:1, :]
        emb = emb + pe_pad[k:k + tt, 1:2] * wk[1:2, :]
    emb = emb + peb_ref[...]                                      # pitch_b + energy_b

    xo_ref[0] = (xp + emb).astype(xo_ref.dtype)                   # x + p_embs + e_embs (fused add3)
    do_ref[0] = heads[:, 2:3].astype(do_ref.dtype)                # raw duration-predictor output


def encoder_mid(x, spk, sty, con, params):
    Bx, Tx, Dx = x.shape

    def full(v):
        nd = v.ndim
        return pl.BlockSpec(v.shape, lambda b, _nd=nd: (0,) * _nd)

    bvec = pl.BlockSpec((1, 1, Dx), lambda b: (b, 0, 0))
    inputs = [x, spk, sty, con,
              params["proj_w"], params["proj_b"],
              params["vw1"], params["vb1"], params["vg1"], params["vbeta1"],
              params["vw2"], params["vb2"], params["vg2"], params["vbeta2"],
              params["vlin_w"], params["vlin_b"],
              params["pe_w"], params["pe_b"]]
    in_specs = ([pl.BlockSpec((1, Tx, Dx), lambda b: (b, 0, 0)), bvec, bvec, bvec]
                + [full(v) for v in inputs[4:]])

    return pl.pallas_call(
        functools.partial(_encoder_mid_kernel, vp_filt=VP_FILT, kconv=KCONV),
        grid=(Bx,),
        in_specs=in_specs,
        out_specs=[pl.BlockSpec((1, Tx, Dx), lambda b: (b, 0, 0)),
                   pl.BlockSpec((1, Tx, 1), lambda b: (b, 0, 0))],
        out_shape=[jax.ShapeDtypeStruct((Bx, Tx, Dx), jnp.float32),
                   jax.ShapeDtypeStruct((Bx, Tx, 1), jnp.float32)],
        compiler_params=pltpu.CompilerParams(dimension_semantics=("parallel",)),
    )(*inputs)


# ----------------------------- JAX glue ---------------------------------------------
def length_regulator(x, durations):
    """Hard-repetition length regulator: frame i repeated durations[b,i] times, zero-padded to T_OUT."""
    # TODO(synk): the underlying checkpoint's length_regulator may be Gaussian upsampling;
    # hard repetition (classic FastSpeech2 LengthRegulator) is implemented here.
    Bx, Tx, Dx = x.shape
    ends = jnp.cumsum(durations, axis=1)                              # [B, T]
    total = ends[:, -1:]                                              # [B, 1]
    pos = jnp.arange(T_OUT, dtype=jnp.int32)[None, :]                 # [1, T_OUT]
    idx = jnp.sum(pos[:, :, None] >= ends[:, None, :], axis=-1)       # [B, T_OUT]
    idx = jnp.clip(idx, 0, Tx - 1)
    gathered = jnp.take_along_axis(x, idx[:, :, None], axis=1)        # [B, T_OUT, D]
    mask = (pos < total).astype(x.dtype)[:, :, None]
    return gathered * mask


# ----------------------------- full forward ----------------------------------------
def prompt_tts_forward(params, inputs_ling, inputs_speaker,
                       inputs_style_embedding, inputs_content_embedding):
    # --- encoder_forward ---
    tok = jnp.take(params["src_word_emb"], inputs_ling, axis=0)              # [B,T,D]
    x = fused_fft_block(tok, params["encoder"])                              # encoder(x, None) -> x

    spk = jnp.take(params["spk_tokenizer"], inputs_speaker, axis=0)[:, None, :]   # [B,1,D]
    sty = inputs_style_embedding[:, None, :]                                      # [B,1,D]
    con = inputs_content_embedding[:, None, :]                                    # [B,1,D]

    # embed_projection1 + pitch/energy/duration predictors + pitch/energy embed + add, fused.
    x, d_raw = encoder_mid(x, spk, sty, con, params)                         # [B,T,D], [B,T,1]

    # duration_predictor.inference: clamp(round(exp(out) - offset), min=0), offset=1.0.
    # Additionally clamp to MAX_DUR so the length-regulated output has a static shape.
    d_outs = jnp.clip(jnp.round(jnp.exp(d_raw[..., 0]) - 1.0), 0, MAX_DUR).astype(jnp.int32)

    # --- decoder_forward ---
    y = length_regulator(x, d_outs)                                          # [B, T_OUT, D]
    mel = fused_fft_block(y, params["decoder"],
                          final_w=params["to_mel_w"], final_b=params["to_mel_b"])
    return mel                                                               # [B, T_OUT, N_MELS]


# ----------------------------- deterministic parameter init ------------------------
def init_params(key):
    keys = iter(jax.random.split(key, 64))

    def w(shape, scale=0.1):
        return jax.random.normal(next(keys), shape, jnp.float32) * scale

    def zeros(shape):
        return jnp.zeros(shape, jnp.float32)

    def ones(shape):
        return jnp.ones(shape, jnp.float32)

    def fft_params():
        return dict(
            wq=w((D, D)), bq=zeros((D,)), wk=w((D, D)), bk=zeros((D,)),
            wv=w((D, D)), bv=zeros((D,)), wo=w((D, D)), bo=zeros((D,)),
            ln1_g=ones((D,)), ln1_b=zeros((D,)),
            w1=w((D, FFN_D)), b1=zeros((FFN_D,)),
            w2=w((FFN_D, D)), b2=zeros((D,)),
            ln2_g=ones((D,)), ln2_b=zeros((D,)),
        )

    def vp_params():
        return dict(
            c1_w=w((KCONV, D, VP_FILT)), c1_b=zeros((VP_FILT,)),
            ln1_g=ones((VP_FILT,)), ln1_b=zeros((VP_FILT,)),
            c2_w=w((KCONV, VP_FILT, VP_FILT)), c2_b=zeros((VP_FILT,)),
            ln2_g=ones((VP_FILT,)), ln2_b=zeros((VP_FILT,)),
            lin_w=w((VP_FILT, 1)), lin_b=zeros((1,)),
        )

    return dict(
        src_word_emb=w((VOCAB, D), 1.0),
        spk_tokenizer=w((SPK_VOCAB, D), 1.0),
        encoder=fft_params(),
        decoder=fft_params(),
        proj_w=w((D + D + STYLE_D + CONTENT_D, D)), proj_b=zeros((D,)),
        pitch_pred=vp_params(), energy_pred=vp_params(), dur_pred=vp_params(),
        pitch_embed_w=w((KCONV, 1, D)), pitch_embed_b=zeros((D,)),
        energy_embed_w=w((KCONV, 1, D)), energy_embed_b=zeros((D,)),
        to_mel_w=w((D, N_MELS)), to_mel_b=zeros((N_MELS,)),
    )


def _row(v):
    return v.reshape(1, -1)


def pack_fft(p):
    """Concatenate Q/K/V into one [D,3D] weight; biases/LN params as (1,N) rows."""
    return dict(
        wqkv=jnp.concatenate([p["wq"], p["wk"], p["wv"]], axis=1),
        bqkv=_row(jnp.concatenate([p["bq"], p["bk"], p["bv"]])),
        wo=p["wo"], bo=_row(p["bo"]),
        ln1_g=_row(p["ln1_g"]), ln1_b=_row(p["ln1_b"]),
        w1=p["w1"], b1=_row(p["b1"]),
        w2=p["w2"], b2=_row(p["b2"]),
        ln2_g=_row(p["ln2_g"]), ln2_b=_row(p["ln2_b"]),
    )


def pack_params(raw):
    """Pack raw (PyTorch-layout) params into the fused-kernel layout. Runs once."""
    vps = [raw["pitch_pred"], raw["energy_pred"], raw["dur_pred"]]
    V = VP_FILT
    vw1 = jnp.concatenate([v["c1_w"] for v in vps], axis=2)                  # [K, D, 3V]
    vb1 = _row(jnp.concatenate([v["c1_b"] for v in vps]))
    vg1 = _row(jnp.concatenate([v["ln1_g"] for v in vps]))
    vbe1 = _row(jnp.concatenate([v["ln1_b"] for v in vps]))
    vw2 = jnp.zeros((KCONV, 3 * V, 3 * V), jnp.float32)                      # block-diagonal conv2
    vlw = jnp.zeros((3 * V, 3), jnp.float32)                                 # group g -> column g
    for gi, v in enumerate(vps):
        vw2 = vw2.at[:, gi * V:(gi + 1) * V, gi * V:(gi + 1) * V].set(v["c2_w"])
        vlw = vlw.at[gi * V:(gi + 1) * V, gi].set(v["lin_w"][:, 0])
    vb2 = _row(jnp.concatenate([v["c2_b"] for v in vps]))
    vg2 = _row(jnp.concatenate([v["ln2_g"] for v in vps]))
    vbe2 = _row(jnp.concatenate([v["ln2_b"] for v in vps]))
    vlb = _row(jnp.concatenate([v["lin_b"] for v in vps]))
    # pitch_embed / energy_embed fused as a 2-channel conv; biases sum (both embeddings are added).
    pe_w = jnp.concatenate([raw["pitch_embed_w"], raw["energy_embed_w"]], axis=1)  # [K, 2, D]
    pe_b = _row(raw["pitch_embed_b"] + raw["energy_embed_b"])
    return dict(
        src_word_emb=raw["src_word_emb"],
        spk_tokenizer=raw["spk_tokenizer"],
        encoder=pack_fft(raw["encoder"]),
        decoder=pack_fft(raw["decoder"]),
        proj_w=raw["proj_w"], proj_b=_row(raw["proj_b"]),
        vw1=vw1, vb1=vb1, vg1=vg1, vbeta1=vbe1,
        vw2=vw2, vb2=vb2, vg2=vg2, vbeta2=vbe2,
        vlin_w=vlw, vlin_b=vlb,
        pe_w=pe_w, pe_b=pe_b,
        to_mel_w=raw["to_mel_w"], to_mel_b=_row(raw["to_mel_b"]),
    )


# ----------------------------- main -------------------------------------------------
if __name__ == "__main__":
    key = jax.random.PRNGKey(0)
    pkey, ikey = jax.random.split(key)
    params = pack_params(init_params(pkey))

    k1, k2, k3, k4 = jax.random.split(ikey, 4)
    inputs_ling = jax.random.randint(k1, (B, T), 0, VOCAB, dtype=jnp.int32)
    inputs_speaker = jax.random.randint(k2, (B,), 0, SPK_VOCAB, dtype=jnp.int32)
    inputs_style_embedding = jax.random.normal(k3, (B, STYLE_D), jnp.float32)
    inputs_content_embedding = jax.random.normal(k4, (B, CONTENT_D), jnp.float32)

    fwd = jax.jit(functools.partial(prompt_tts_forward, params))
    logmel = fwd(inputs_ling, inputs_speaker, inputs_style_embedding, inputs_content_embedding)
    jax.block_until_ready(logmel)
    assert logmel.shape == (B, T_OUT, N_MELS) and logmel.dtype == jnp.float32
    assert bool(jnp.all(jnp.isfinite(logmel)))
    print("KERNEL_OK")
</pallas_src>

<mosaic_0001>
module attributes {stable_mosaic.version = 11 : i64} {
  func.func @_fused_fft_kernel(%arg0: i32, %arg1: memref<1x8x32xf32, #tpu.memory_space<vmem>>, %arg2: memref<32x96xf32, #tpu.memory_space<vmem>>, %arg3: memref<1x96xf32, #tpu.memory_space<vmem>>, %arg4: memref<32x32xf32, #tpu.memory_space<vmem>>, %arg5: memref<1x32xf32, #tpu.memory_space<vmem>>, %arg6: memref<1x32xf32, #tpu.memory_space<vmem>>, %arg7: memref<1x32xf32, #tpu.memory_space<vmem>>, %arg8: memref<32x64xf32, #tpu.memory_space<vmem>>, %arg9: memref<1x64xf32, #tpu.memory_space<vmem>>, %arg10: memref<64x32xf32, #tpu.memory_space<vmem>>, %arg11: memref<1x32xf32, #tpu.memory_space<vmem>>, %arg12: memref<1x32xf32, #tpu.memory_space<vmem>>, %arg13: memref<1x32xf32, #tpu.memory_space<vmem>>, %arg14: memref<1x8x32xf32, #tpu.memory_space<vmem>>) attributes {dimension_semantics = [#tpu.dimension_semantics<parallel>], iteration_bounds = array<i64: 2>, scalar_prefetch = 0 : i64, scratch_operands = 0 : i64, tpu.core_type = #tpu.core_type<tc>, window_params = [{transform_indices = @transform_0, window_bounds = array<i64: 1, 8, 32>}, {pipeline_mode = #tpu.pipeline_mode<synchronous>, transform_indices = @transform_1, window_bounds = array<i64: 32, 96>}, {pipeline_mode = #tpu.pipeline_mode<synchronous>, transform_indices = @transform_2, window_bounds = array<i64: 1, 96>}, {pipeline_mode = #tpu.pipeline_mode<synchronous>, transform_indices = @transform_3, window_bounds = array<i64: 32, 32>}, {pipeline_mode = #tpu.pipeline_mode<synchronous>, transform_indices = @transform_4, window_bounds = array<i64: 1, 32>}, {pipeline_mode = #tpu.pipeline_mode<synchronous>, transform_indices = @transform_5, window_bounds = array<i64: 1, 32>}, {pipeline_mode = #tpu.pipeline_mode<synchronous>, transform_indices = @transform_6, window_bounds = array<i64: 1, 32>}, {pipeline_mode = #tpu.pipeline_mode<synchronous>, transform_indices = @transform_7, window_bounds = array<i64: 32, 64>}, {pipeline_mode = #tpu.pipeline_mode<synchronous>, transform_indices = @transform_8, window_bounds = array<i64: 1, 64>}, {pipeline_mode = #tpu.pipeline_mode<synchronous>, transform_indices = @transform_9, window_bounds = array<i64: 64, 32>}, {pipeline_mode = #tpu.pipeline_mode<synchronous>, transform_indices = @transform_10, window_bounds = array<i64: 1, 32>}, {pipeline_mode = #tpu.pipeline_mode<synchronous>, transform_indices = @transform_11, window_bounds = array<i64: 1, 32>}, {pipeline_mode = #tpu.pipeline_mode<synchronous>, transform_indices = @transform_12, window_bounds = array<i64: 1, 32>}, {transform_indices = @transform_13, window_bounds = array<i64: 1, 8, 32>}]} {
    %c0 = arith.constant 0 : index
    %c0_0 = arith.constant 0 : index
    %c0_1 = arith.constant 0 : index
    %0 = vector.load %arg1[%c0, %c0_0, %c0_1] : memref<1x8x32xf32, #tpu.memory_space<vmem>>, vector<1x8x32xf32>
    %1 = vector.shape_cast %0 : vector<1x8x32xf32> to vector<8x32xf32>
    %c0_2 = arith.constant 0 : index
    %c0_3 = arith.constant 0 : index
    %2 = vector.load %arg2[%c0_2, %c0_3] : memref<32x96xf32, #tpu.memory_space<vmem>>, vector<32x96xf32>
    %cst = arith.constant dense<0.000000e+00> : vector<8x96xf32>
    %3 = tpu.matmul %1, %2, %cst {dimension_numbers = #tpu.dot_dimension_numbers<[1], [0], [0], [1], [0, 0, 1, 1], [], []>} : vector<8x32xf32>, vector<32x96xf32>, vector<8x96xf32> -> vector<8x96xf32>
    %c0_4 = arith.constant 0 : index
    %c0_5 = arith.constant 0 : index
    %4 = vector.load %arg3[%c0_4, %c0_5] : memref<1x96xf32, #tpu.memory_space<vmem>>, vector<1x96xf32>
    %5 = vector.broadcast %4 : vector<1x96xf32> to vector<8x96xf32>
    %6 = arith.addf %3, %5 : vector<8x96xf32>
    %7 = vector.extract_strided_slice %6 {offsets = [0, 0], sizes = [8, 32], strides = [1, 1]} : vector<8x96xf32> to vector<8x32xf32>
    %8 = vector.extract_strided_slice %6 {offsets = [0, 32], sizes = [8, 32], strides = [1, 1]} : vector<8x96xf32> to vector<8x32xf32>
    %9 = vector.extract_strided_slice %6 {offsets = [0, 64], sizes = [8, 32], strides = [1, 1]} : vector<8x96xf32> to vector<8x32xf32>
    %cst_6 = arith.constant dense<0.000000e+00> : vector<8x8xf32>
    %10 = tpu.matmul %7, %8, %cst_6 {dimension_numbers = #tpu.dot_dimension_numbers<[1], [1], [0], [0], [0, 0, 1, 0], [], []>} : vector<8x32xf32>, vector<8x32xf32>, vector<8x8xf32> -> vector<8x8xf32>
    %cst_7 = arith.constant 0.176776692 : f32
    %11 = vector.broadcast %cst_7 : f32 to vector<8x8xf32>
    %12 = arith.mulf %10, %11 : vector<8x8xf32>
    %cst_8 = arith.constant dense<0xFF800000> : vector<8xf32>
    %13 = vector.multi_reduction <maximumf>, %12, %cst_8 [1] : vector<8x8xf32> to vector<8xf32>
    %14 = vector.shape_cast %13 : vector<8xf32> to vector<8x1xf32>
    %15 = vector.broadcast %14 : vector<8x1xf32> to vector<8x8xf32>
    %16 = arith.subf %12, %15 : vector<8x8xf32>
    %17 = math.exp %16 : vector<8x8xf32>
    %cst_9 = arith.constant dense<0.000000e+00> : vector<8xf32>
    %18 = vector.multi_reduction <add>, %17, %cst_9 [1] : vector<8x8xf32> to vector<8xf32>
    %19 = vector.shape_cast %18 : vector<8xf32> to vector<8x1xf32>
    %20 = tpu.reciprocal %19 {approx = true} : vector<8x1xf32> -> vector<8x1xf32>
    %21 = vector.broadcast %20 : vector<8x1xf32> to vector<8x8xf32>
    %22 = arith.mulf %17, %21 : vector<8x8xf32>
    %cst_10 = arith.constant dense<0.000000e+00> : vector<8x32xf32>
    %23 = tpu.matmul %22, %9, %cst_10 {dimension_numbers = #tpu.dot_dimension_numbers<[1], [0], [0], [1], [0, 0, 1, 1], [], []>} : vector<8x8xf32>, vector<8x32xf32>, vector<8x32xf32> -> vector<8x32xf32>
    %c0_11 = arith.constant 0 : index
    %c0_12 = arith.constant 0 : index
    %24 = vector.load %arg4[%c0_11, %c0_12] : memref<32x32xf32, #tpu.memory_space<vmem>>, vector<32x32xf32>
    %cst_13 = arith.constant dense<0.000000e+00> : vector<8x32xf32>
    %25 = tpu.matmul %23, %24, %cst_13 {dimension_numbers = #tpu.dot_dimension_numbers<[1], [0], [0], [1], [0, 0, 1, 1], [], []>} : vector<8x32xf32>, vector<32x32xf32>, vector<8x32xf32> -> vector<8x32xf32>
    %c0_14 = arith.constant 0 : index
    %c0_15 = arith.constant 0 : index
    %26 = vector.load %arg5[%c0_14, %c0_15] : memref<1x32xf32, #tpu.memory_space<vmem>>, vector<1x32xf32>
    %27 = vector.broadcast %26 : vector<1x32xf32> to vector<8x32xf32>
    %28 = arith.addf %25, %27 : vector<8x32xf32>
    %29 = arith.addf %1, %28 : vector<8x32xf32>
    %c0_16 = arith.constant 0 : index
    %c0_17 = arith.constant 0 : index
    %30 = vector.load %arg6[%c0_16, %c0_17] : memref<1x32xf32, #tpu.memory_space<vmem>>, vector<1x32xf32>
    %c0_18 = arith.constant 0 : index
    %c0_19 = arith.constant 0 : index
    %31 = vector.load %arg7[%c0_18, %c0_19] : memref<1x32xf32, #tpu.memory_space<vmem>>, vector<1x32xf32>
    %cst_20 = arith.constant dense<0.000000e+00> : vector<8xf32>
    %32 = vector.multi_reduction <add>, %29, %cst_20 [1] : vector<8x32xf32> to vector<8xf32>
    %33 = vector.shape_cast %32 : vector<8xf32> to vector<8x1xf32>
    %cst_21 = arith.constant 3.200000e+01 : f32
    %34 = vector.broadcast %cst_21 : f32 to vector<8x1xf32>
    %35 = arith.divf %33, %34 : vector<8x1xf32>
    %36 = vector.broadcast %35 : vector<8x1xf32> to vector<8x32xf32>
    %37 = arith.subf %29, %36 : vector<8x32xf32>
    %38 = arith.mulf %37, %37 : vector<8x32xf32>
    %cst_22 = arith.constant dense<0.000000e+00> : vector<8xf32>
    %39 = vector.multi_reduction <add>, %38, %cst_22 [1] : vector<8x32xf32> to vector<8xf32>
    %40 = vector.shape_cast %39 : vector<8xf32> to vector<8x1xf32>
    %cst_23 = arith.constant 3.200000e+01 : f32
    %41 = vector.broadcast %cst_23 : f32 to vector<8x1xf32>
    %42 = arith.divf %40, %41 : vector<8x1xf32>
    %43 = vector.broadcast %35 : vector<8x1xf32> to vector<8x32xf32>
    %44 = arith.subf %29, %43 : vector<8x32xf32>
    %cst_24 = arith.constant 9.99999974E-6 : f32
    %45 = vector.broadcast %cst_24 : f32 to vector<8x1xf32>
    %46 = arith.addf %42, %45 : vector<8x1xf32>
    %47 = math.rsqrt %46 : vector<8x1xf32>
    %48 = vector.broadcast %47 : vector<8x1xf32> to vector<8x32xf32>
    %49 = arith.mulf %44, %48 : vector<8x32xf32>
    %50 = vector.broadcast %30 : vector<1x32xf32> to vector<8x32xf32>
    %51 = arith.mulf %49, %50 : vector<8x32xf32>
    %52 = vector.broadcast %31 : vector<1x32xf32> to vector<8x32xf32>
    %53 = arith.addf %51, %52 : vector<8x32xf32>
    %c0_25 = arith.constant 0 : index
    %c0_26 = arith.constant 0 : index
    %54 = vector.load %arg8[%c0_25, %c0_26] : memref<32x64xf32, #tpu.memory_space<vmem>>, vector<32x64xf32>
    %cst_27 = arith.constant dense<0.000000e+00> : vector<8x64xf32>
    %55 = tpu.matmul %53, %54, %cst_27 {dimension_numbers = #tpu.dot_dimension_numbers<[1], [0], [0], [1], [0, 0, 1, 1], [], []>} : vector<8x32xf32>, vector<32x64xf32>, vector<8x64xf32> -> vector<8x64xf32>
    %c0_28 = arith.constant 0 : index
    %c0_29 = arith.constant 0 : index
    %56 = vector.load %arg9[%c0_28, %c0_29] : memref<1x64xf32, #tpu.memory_space<vmem>>, vector<1x64xf32>
    %57 = vector.broadcast %56 : vector<1x64xf32> to vector<8x64xf32>
    %58 = arith.addf %55, %57 : vector<8x64xf32>
    %cst_30 = arith.constant 0.000000e+00 : f32
    %59 = vector.broadcast %cst_30 : f32 to vector<8x64xf32>
    %60 = arith.maximumf %58, %59 : vector<8x64xf32>
    %c0_31 = arith.constant 0 : index
    %c0_32 = arith.constant 0 : index
    %61 = vector.load %arg10[%c0_31, %c0_32] : memref<64x32xf32, #tpu.memory_space<vmem>>, vector<64x32xf32>
    %cst_33 = arith.constant dense<0.000000e+00> : vector<8x32xf32>
    %62 = tpu.matmul %60, %61, %cst_33 {dimension_numbers = #tpu.dot_dimension_numbers<[1], [0], [0], [1], [0, 0, 1, 1], [], []>} : vector<8x64xf32>, vector<64x32xf32>, vector<8x32xf32> -> vector<8x32xf32>
    %c0_34 = arith.constant 0 : index
    %c0_35 = arith.constant 0 : index
    %63 = vector.load %arg11[%c0_34, %c0_35] : memref<1x32xf32, #tpu.memory_space<vmem>>, vector<1x32xf32>
    %64 = vector.broadcast %63 : vector<1x32xf32> to vector<8x32xf32>
    %65 = arith.addf %62, %64 : vector<8x32xf32>
    %66 = arith.addf %53, %65 : vector<8x32xf32>
    %c0_36 = arith.constant 0 : index
    %c0_37 = arith.constant 0 : index
    %67 = vector.load %arg12[%c0_36, %c0_37] : memref<1x32xf32, #tpu.memory_space<vmem>>, vector<1x32xf32>
    %c0_38 = arith.constant 0 : index
    %c0_39 = arith.constant 0 : index
    %68 = vector.load %arg13[%c0_38, %c0_39] : memref<1x32xf32, #tpu.memory_space<vmem>>, vector<1x32xf32>
    %cst_40 = arith.constant dense<0.000000e+00> : vector<8xf32>
    %69 = vector.multi_reduction <add>, %66, %cst_40 [1] : vector<8x32xf32> to vector<8xf32>
    %70 = vector.shape_cast %69 : vector<8xf32> to vector<8x1xf32>
    %cst_41 = arith.constant 3.200000e+01 : f32
    %71 = vector.broadcast %cst_41 : f32 to vector<8x1xf32>
    %72 = arith.divf %70, %71 : vector<8x1xf32>
    %73 = vector.broadcast %72 : vector<8x1xf32> to vector<8x32xf32>
    %74 = arith.subf %66, %73 : vector<8x32xf32>
    %75 = arith.mulf %74, %74 : vector<8x32xf32>
    %cst_42 = arith.constant dense<0.000000e+00> : vector<8xf32>
    %76 = vector.multi_reduction <add>, %75, %cst_42 [1] : vector<8x32xf32> to vector<8xf32>
    %77 = vector.shape_cast %76 : vector<8xf32> to vector<8x1xf32>
    %cst_43 = arith.constant 3.200000e+01 : f32
    %78 = vector.broadcast %cst_43 : f32 to vector<8x1xf32>
    %79 = arith.divf %77, %78 : vector<8x1xf32>
    %80 = vector.broadcast %72 : vector<8x1xf32> to vector<8x32xf32>
    %81 = arith.subf %66, %80 : vector<8x32xf32>
    %cst_44 = arith.constant 9.99999974E-6 : f32
    %82 = vector.broadcast %cst_44 : f32 to vector<8x1xf32>
    %83 = arith.addf %79, %82 : vector<8x1xf32>
    %84 = math.rsqrt %83 : vector<8x1xf32>
    %85 = vector.broadcast %84 : vector<8x1xf32> to vector<8x32xf32>
    %86 = arith.mulf %81, %85 : vector<8x32xf32>
    %87 = vector.broadcast %67 : vector<1x32xf32> to vector<8x32xf32>
    %88 = arith.mulf %86, %87 : vector<8x32xf32>
    %89 = vector.broadcast %68 : vector<1x32xf32> to vector<8x32xf32>
    %90 = arith.addf %88, %89 : vector<8x32xf32>
    %c0_45 = arith.constant 0 : index
    %c0_46 = arith.constant 0 : index
    %c0_47 = arith.constant 0 : index
    %91 = vector.load %arg14[%c0_45, %c0_46, %c0_47] : memref<1x8x32xf32, #tpu.memory_space<vmem>>, vector<1x8x32xf32>
    %92 = vector.shape_cast %91 : vector<1x8x32xf32> to vector<8x32xf32>
    %93 = vector.shape_cast %90 : vector<8x32xf32> to vector<1x8x32xf32>
    tpu.vector_store %arg14[%c0_45, %c0_46, %c0_47], %93 {strides = array<i32>} : memref<1x8x32xf32, #tpu.memory_space<vmem>>, vector<1x8x32xf32>,
    return
  }
  func.func @transform_0(%arg0: i32) -> (i32, i32, i32) {
    %c0_i32 = arith.constant 0 : i32
    %c0_i32_0 = arith.constant 0 : i32
    %c0_i32_1 = arith.constant 0 : i32
    return %arg0, %c0_i32, %c0_i32_0 : i32, i32, i32
  }
  func.func @transform_1(%arg0: i32) -> (i32, i32) {
    %c0_i32 = arith.constant 0 : i32
    %c0_i32_0 = arith.constant 0 : i32
    %c0_i32_1 = arith.constant 0 : i32
    return %c0_i32, %c0_i32_0 : i32, i32
  }
  func.func @transform_2(%arg0: i32) -> (i32, i32) {
    %c0_i32 = arith.constant 0 : i32
    %c0_i32_0 = arith.constant 0 : i32
    %c0_i32_1 = arith.constant 0 : i32
    return %c0_i32, %c0_i32_0 : i32, i32
  }
  func.func @transform_3(%arg0: i32) -> (i32, i32) {
    %c0_i32 = arith.constant 0 : i32
    %c0_i32_0 = arith.constant 0 : i32
    %c0_i32_1 = arith.constant 0 : i32
    return %c0_i32, %c0_i32_0 : i32, i32
  }
  func.func @transform_4(%arg0: i32) -> (i32, i32) {
    %c0_i32 = arith.constant 0 : i32
    %c0_i32_0 = arith.constant 0 : i32
    %c0_i32_1 = arith.constant 0 : i32
    return %c0_i32, %c0_i32_0 : i32, i32
  }
  func.func @transform_5(%arg0: i32) -> (i32, i32) {
    %c0_i32 = arith.constant 0 : i32
    %c0_i32_0 = arith.constant 0 : i32
    %c0_i32_1 = arith.constant 0 : i32
    return %c0_i32, %c0_i32_0 : i32, i32
  }
  func.func @transform_6(%arg0: i32) -> (i32, i32) {
    %c0_i32 = arith.constant 0 : i32
    %c0_i32_0 = arith.constant 0 : i32
    %c0_i32_1 = arith.constant 0 : i32
    return %c0_i32, %c0_i32_0 : i32, i32
  }
  func.func @transform_7(%arg0: i32) -> (i32, i32) {
    %c0_i32 = arith.constant 0 : i32
    %c0_i32_0 = arith.constant 0 : i32
    %c0_i32_1 = arith.constant 0 : i32
    return %c0_i32, %c0_i32_0 : i32, i32
  }
  func.func @transform_8(%arg0: i32) -> (i32, i32) {
    %c0_i32 = arith.constant 0 : i32
    %c0_i32_0 = arith.constant 0 : i32
    %c0_i32_1 = arith.constant 0 : i32
    return %c0_i32, %c0_i32_0 : i32, i32
  }
  func.func @transform_9(%arg0: i32) -> (i32, i32) {
    %c0_i32 = arith.constant 0 : i32
    %c0_i32_0 = arith.constant 0 : i32
    %c0_i32_1 = arith.constant 0 : i32
    return %c0_i32, %c0_i32_0 : i32, i32
  }
  func.func @transform_10(%arg0: i32) -> (i32, i32) {
    %c0_i32 = arith.constant 0 : i32
    %c0_i32_0 = arith.constant 0 : i32
    %c0_i32_1 = arith.constant 0 : i32
    return %c0_i32, %c0_i32_0 : i32, i32
  }
  func.func @transform_11(%arg0: i32) -> (i32, i32) {
    %c0_i32 = arith.constant 0 : i32
    %c0_i32_0 = arith.constant 0 : i32
    %c0_i32_1 = arith.constant 0 : i32
    return %c0_i32, %c0_i32_0 : i32, i32
  }
  func.func @transform_12(%arg0: i32) -> (i32, i32) {
    %c0_i32 = arith.constant 0 : i32
    %c0_i32_0 = arith.constant 0 : i32
    %c0_i32_1 = arith.constant 0 : i32
    return %c0_i32, %c0_i32_0 : i32, i32
  }
  func.func @transform_13(%arg0: i32) -> (i32, i32, i32) {
    %c0_i32 = arith.constant 0 : i32
    %c0_i32_0 = arith.constant 0 : i32
    %c0_i32_1 = arith.constant 0 : i32
    return %arg0, %c0_i32, %c0_i32_0 : i32, i32, i32
  }
}

module attributes {stable_mosaic.version = 11 : i64} {
  func.func @_encoder_mid_kernel(%arg0: i32, %arg1: memref<1x8x32xf32, #tpu.memory_space<vmem>>, %arg2: memref<1x1x32xf32, #tpu.memory_space<vmem>>, %arg3: memref<1x1x32xf32, #tpu.memory_space<vmem>>, %arg4: memref<1x1x32xf32, #tpu.memory_space<vmem>>, %arg5: memref<128x32xf32, #tpu.memory_space<vmem>>, %arg6: memref<1x32xf32, #tpu.memory_space<vmem>>, %arg7: memref<3x32x96xf32, #tpu.memory_space<vmem>>, %arg8: memref<1x96xf32, #tpu.memory_space<vmem>>, %arg9: memref<1x96xf32, #tpu.memory_space<vmem>>, %arg10: memref<1x96xf32, #tpu.memory_space<vmem>>, %arg11: memref<3x96x96xf32, #tpu.memory_space<vmem>>, %arg12: memref<1x96xf32, #tpu.memory_space<vmem>>, %arg13: memref<1x96xf32, #tpu.memory_space<vmem>>, %arg14: memref<1x96xf32, #tpu.memory_space<vmem>>, %arg15: memref<96x3xf32, #tpu.memory_space<vmem>>, %arg16: memref<1x3xf32, #tpu.memory_space<vmem>>, %arg17: memref<3x2x32xf32, #tpu.memory_space<vmem>>, %arg18: memref<1x32xf32, #tpu.memory_space<vmem>>, %arg19: memref<1x8x32xf32, #tpu.memory_space<vmem>>, %arg20: memref<1x8x1xf32, #tpu.memory_space<vmem>>) attributes {dimension_semantics = [#tpu.dimension_semantics<parallel>], iteration_bounds = array<i64: 2>, scalar_prefetch = 0 : i64, scratch_operands = 0 : i64, tpu.core_type = #tpu.core_type<tc>, window_params = [{transform_indices = @transform_0, window_bounds = array<i64: 1, 8, 32>}, {transform_indices = @transform_1, window_bounds = array<i64: 1, 1, 32>}, {transform_indices = @transform_2, window_bounds = array<i64: 1, 1, 32>}, {transform_indices = @transform_3, window_bounds = array<i64: 1, 1, 32>}, {pipeline_mode = #tpu.pipeline_mode<synchronous>, transform_indices = @transform_4, window_bounds = array<i64: 128, 32>}, {pipeline_mode = #tpu.pipeline_mode<synchronous>, transform_indices = @transform_5, window_bounds = array<i64: 1, 32>}, {pipeline_mode = #tpu.pipeline_mode<synchronous>, transform_indices = @transform_6, window_bounds = array<i64: 3, 32, 96>}, {pipeline_mode = #tpu.pipeline_mode<synchronous>, transform_indices = @transform_7, window_bounds = array<i64: 1, 96>}, {pipeline_mode = #tpu.pipeline_mode<synchronous>, transform_indices = @transform_8, window_bounds = array<i64: 1, 96>}, {pipeline_mode = #tpu.pipeline_mode<synchronous>, transform_indices = @transform_9, window_bounds = array<i64: 1, 96>}, {pipeline_mode = #tpu.pipeline_mode<synchronous>, transform_indices = @transform_10, window_bounds = array<i64: 3, 96, 96>}, {pipeline_mode = #tpu.pipeline_mode<synchronous>, transform_indices = @transform_11, window_bounds = array<i64: 1, 96>}, {pipeline_mode = #tpu.pipeline_mode<synchronous>, transform_indices = @transform_12, window_bounds = array<i64: 1, 96>}, {pipeline_mode = #tpu.pipeline_mode<synchronous>, transform_indices = @transform_13, window_bounds = array<i64: 1, 96>}, {pipeline_mode = #tpu.pipeline_mode<synchronous>, transform_indices = @transform_14, window_bounds = array<i64: 96, 3>}, {pipeline_mode = #tpu.pipeline_mode<synchronous>, transform_indices = @transform_15, window_bounds = array<i64: 1, 3>}, {pipeline_mode = #tpu.pipeline_mode<synchronous>, transform_indices = @transform_16, window_bounds = array<i64: 3, 2, 32>}, {pipeline_mode = #tpu.pipeline_mode<synchronous>, transform_indices = @transform_17, window_bounds = array<i64: 1, 32>}, {transform_indices = @transform_18, window_bounds = array<i64: 1, 8, 32>}, {transform_indices = @transform_19, window_bounds = array<i64: 1, 8, 1>}]} {
    %c0 = arith.constant 0 : index
    %c0_0 = arith.constant 0 : index
    %c0_1 = arith.constant 0 : index
    %0 = vector.load %arg1[%c0, %c0_0, %c0_1] : memref<1x8x32xf32, #tpu.memory_space<vmem>>, vector<1x8x32xf32>
    %1 = vector.shape_cast %0 : vector<1x8x32xf32> to vector<8x32xf32>
    %c0_2 = arith.constant 0 : index
    %c0_3 = arith.constant 0 : index
    %c0_4 = arith.constant 0 : index
    %2 = vector.load %arg2[%c0_2, %c0_3, %c0_4] : memref<1x1x32xf32, #tpu.memory_space<vmem>>, vector<1x1x32xf32>
    %3 = vector.shape_cast %2 : vector<1x1x32xf32> to vector<1x32xf32>
    %4 = vector.shape_cast %3 : vector<1x32xf32> to vector<1x32xf32>
    %5 = vector.broadcast %4 : vector<1x32xf32> to vector<8x32xf32>
    %c0_5 = arith.constant 0 : index
    %c0_6 = arith.constant 0 : index
    %c0_7 = arith.constant 0 : index
    %6 = vector.load %arg3[%c0_5, %c0_6, %c0_7] : memref<1x1x32xf32, #tpu.memory_space<vmem>>, vector<1x1x32xf32>
    %7 = vector.shape_cast %6 : vector<1x1x32xf32> to vector<1x32xf32>
    %8 = vector.shape_cast %7 : vector<1x32xf32> to vector<1x32xf32>
    %9 = vector.broadcast %8 : vector<1x32xf32> to vector<8x32xf32>
    %c0_8 = arith.constant 0 : index
    %c0_9 = arith.constant 0 : index
    %c0_10 = arith.constant 0 : index
    %10 = vector.load %arg4[%c0_8, %c0_9, %c0_10] : memref<1x1x32xf32, #tpu.memory_space<vmem>>, vector<1x1x32xf32>
    %11 = vector.shape_cast %10 : vector<1x1x32xf32> to vector<1x32xf32>
    %12 = vector.shape_cast %11 : vector<1x32xf32> to vector<1x32xf32>
    %13 = vector.broadcast %12 : vector<1x32xf32> to vector<8x32xf32>
    %14 = tpu.concatenate %1, %5, %9, %13 in 1 : vector<8x32xf32>, vector<8x32xf32>, vector<8x32xf32>, vector<8x32xf32> -> vector<8x128xf32>
    %c0_11 = arith.constant 0 : index
    %c0_12 = arith.constant 0 : index
    %15 = vector.load %arg5[%c0_11, %c0_12] : memref<128x32xf32, #tpu.memory_space<vmem>>, vector<128x32xf32>
    %cst = arith.constant dense<0.000000e+00> : vector<8x32xf32>
    %16 = tpu.matmul %14, %15, %cst {dimension_numbers = #tpu.dot_dimension_numbers<[1], [0], [0], [1], [0, 0, 1, 1], [], []>} : vector<8x128xf32>, vector<128x32xf32>, vector<8x32xf32> -> vector<8x32xf32>
    %c0_13 = arith.constant 0 : index
    %c0_14 = arith.constant 0 : index
    %17 = vector.load %arg6[%c0_13, %c0_14] : memref<1x32xf32, #tpu.memory_space<vmem>>, vector<1x32xf32>
    %18 = vector.broadcast %17 : vector<1x32xf32> to vector<8x32xf32>
    %19 = arith.addf %16, %18 : vector<8x32xf32>
    %c0_15 = arith.constant 0 : index
    %c0_16 = arith.constant 0 : index
    %20 = vector.load %arg8[%c0_15, %c0_16] : memref<1x96xf32, #tpu.memory_space<vmem>>, vector<1x96xf32>
    %cst_17 = arith.constant 0.000000e+00 : f32
    %21 = vector.broadcast %cst_17 : f32 to vector<1x32xf32>
    %22 = tpu.concatenate %21, %19, %21 in 0 : vector<1x32xf32>, vector<8x32xf32>, vector<1x32xf32> -> vector<10x32xf32>
    %cst_18 = arith.constant 0.000000e+00 : f32
    %23 = vector.broadcast %cst_18 : f32 to vector<8x96xf32>
    %24 = vector.extract_strided_slice %22 {offsets = [0, 0], sizes = [8, 32], strides = [1, 1]} : vector<10x32xf32> to vector<8x32xf32>
    %c0_19 = arith.constant 0 : index
    %c0_20 = arith.constant 0 : index
    %c0_21 = arith.constant 0 : index
    %25 = vector.load %arg7[%c0_19, %c0_20, %c0_21] : memref<3x32x96xf32, #tpu.memory_space<vmem>>, vector<1x32x96xf32>
    %26 = vector.shape_cast %25 : vector<1x32x96xf32> to vector<32x96xf32>
    %cst_22 = arith.constant dense<0.000000e+00> : vector<8x96xf32>
    %27 = tpu.matmul %24, %26, %cst_22 {dimension_numbers = #tpu.dot_dimension_numbers<[1], [0], [0], [1], [0, 0, 1, 1], [], []>} : vector<8x32xf32>, vector<32x96xf32>, vector<8x96xf32> -> vector<8x96xf32>
    %28 = arith.addf %23, %27 : vector<8x96xf32>
    %29 = vector.extract_strided_slice %22 {offsets = [1, 0], sizes = [8, 32], strides = [1, 1]} : vector<10x32xf32> to vector<8x32xf32>
    %c1 = arith.constant 1 : index
    %c0_23 = arith.constant 0 : index
    %c0_24 = arith.constant 0 : index
    %30 = vector.load %arg7[%c1, %c0_23, %c0_24] : memref<3x32x96xf32, #tpu.memory_space<vmem>>, vector<1x32x96xf32>
    %31 = vector.shape_cast %30 : vector<1x32x96xf32> to vector<32x96xf32>
    %cst_25 = arith.constant dense<0.000000e+00> : vector<8x96xf32>
    %32 = tpu.matmul %29, %31, %cst_25 {dimension_numbers = #tpu.dot_dimension_numbers<[1], [0], [0], [1], [0, 0, 1, 1], [], []>} : vector<8x32xf32>, vector<32x96xf32>, vector<8x96xf32> -> vector<8x96xf32>
    %33 = arith.addf %28, %32 : vector<8x96xf32>
    %34 = vector.extract_strided_slice %22 {offsets = [2, 0], sizes = [8, 32], strides = [1, 1]} : vector<10x32xf32> to vector<8x32xf32>
    %c2 = arith.constant 2 : index
    %c0_26 = arith.constant 0 : index
    %c0_27 = arith.constant 0 : index
    %35 = vector.load %arg7[%c2, %c0_26, %c0_27] : memref<3x32x96xf32, #tpu.memory_space<vmem>>, vector<1x32x96xf32>
    %36 = vector.shape_cast %35 : vector<1x32x96xf32> to vector<32x96xf32>
    %cst_28 = arith.constant dense<0.000000e+00> : vector<8x96xf32>
    %37 = tpu.matmul %34, %36, %cst_28 {dimension_numbers = #tpu.dot_dimension_numbers<[1], [0], [0], [1], [0, 0, 1, 1], [], []>} : vector<8x32xf32>, vector<32x96xf32>, vector<8x96xf32> -> vector<8x96xf32>
    %38 = arith.addf %33, %37 : vector<8x96xf32>
    %39 = vector.broadcast %20 : vector<1x96xf32> to vector<8x96xf32>
    %40 = arith.addf %38, %39 : vector<8x96xf32>
    %cst_29 = arith.constant 0.000000e+00 : f32
    %41 = vector.broadcast %cst_29 : f32 to vector<8x96xf32>
    %42 = arith.maximumf %40, %41 : vector<8x96xf32>
    %c0_30 = arith.constant 0 : index
    %c0_31 = arith.constant 0 : index
    %43 = vector.load %arg9[%c0_30, %c0_31] : memref<1x96xf32, #tpu.memory_space<vmem>>, vector<1x96xf32>
    %c0_32 = arith.constant 0 : index
    %c0_33 = arith.constant 0 : index
    %44 = vector.load %arg10[%c0_32, %c0_33] : memref<1x96xf32, #tpu.memory_space<vmem>>, vector<1x96xf32>
    %45 = vector.extract_strided_slice %42 {offsets = [0, 0], sizes = [8, 32], strides = [1, 1]} : vector<8x96xf32> to vector<8x32xf32>
    %cst_34 = arith.constant dense<0.000000e+00> : vector<8xf32>
    %46 = vector.multi_reduction <add>, %45, %cst_34 [1] : vector<8x32xf32> to vector<8xf32>
    %47 = vector.shape_cast %46 : vector<8xf32> to vector<8x1xf32>
    %cst_35 = arith.constant 3.200000e+01 : f32
    %48 = vector.broadcast %cst_35 : f32 to vector<8x1xf32>
    %49 = arith.divf %47, %48 : vector<8x1xf32>
    %50 = vector.broadcast %49 : vector<8x1xf32> to vector<8x32xf32>
    %51 = arith.subf %45, %50 : vector<8x32xf32>
    %52 = arith.mulf %51, %51 : vector<8x32xf32>
    %cst_36 = arith.constant dense<0.000000e+00> : vector<8xf32>
    %53 = vector.multi_reduction <add>, %52, %cst_36 [1] : vector<8x32xf32> to vector<8xf32>
    %54 = vector.shape_cast %53 : vector<8xf32> to vector<8x1xf32>
    %cst_37 = arith.constant 3.200000e+01 : f32
    %55 = vector.broadcast %cst_37 : f32 to vector<8x1xf32>
    %56 = arith.divf %54, %55 : vector<8x1xf32>
    %57 = vector.broadcast %49 : vector<8x1xf32> to vector<8x32xf32>
    %58 = arith.subf %45, %57 : vector<8x32xf32>
    %cst_38 = arith.constant 9.99999974E-6 : f32
    %59 = vector.broadcast %cst_38 : f32 to vector<8x1xf32>
    %60 = arith.addf %56, %59 : vector<8x1xf32>
    %61 = math.rsqrt %60 : vector<8x1xf32>
    %62 = vector.broadcast %61 : vector<8x1xf32> to vector<8x32xf32>
    %63 = arith.mulf %58, %62 : vector<8x32xf32>
    %64 = vector.extract_strided_slice %42 {offsets = [0, 32], sizes = [8, 32], strides = [1, 1]} : vector<8x96xf32> to vector<8x32xf32>
    %cst_39 = arith.constant dense<0.000000e+00> : vector<8xf32>
    %65 = vector.multi_reduction <add>, %64, %cst_39 [1] : vector<8x32xf32> to vector<8xf32>
    %66 = vector.shape_cast %65 : vector<8xf32> to vector<8x1xf32>
    %cst_40 = arith.constant 3.200000e+01 : f32
    %67 = vector.broadcast %cst_40 : f32 to vector<8x1xf32>
    %68 = arith.divf %66, %67 : vector<8x1xf32>
    %69 = vector.broadcast %68 : vector<8x1xf32> to vector<8x32xf32>
    %70 = arith.subf %64, %69 : vector<8x32xf32>
    %71 = arith.mulf %70, %70 : vector<8x32xf32>
    %cst_41 = arith.constant dense<0.000000e+00> : vector<8xf32>
    %72 = vector.multi_reduction <add>, %71, %cst_41 [1] : vector<8x32xf32> to vector<8xf32>
    %73 = vector.shape_cast %72 : vector<8xf32> to vector<8x1xf32>
    %cst_42 = arith.constant 3.200000e+01 : f32
    %74 = vector.broadcast %cst_42 : f32 to vector<8x1xf32>
    %75 = arith.divf %73, %74 : vector<8x1xf32>
    %76 = vector.broadcast %68 : vector<8x1xf32> to vector<8x32xf32>
    %77 = arith.subf %64, %76 : vector<8x32xf32>
    %cst_43 = arith.constant 9.99999974E-6 : f32
    %78 = vector.broadcast %cst_43 : f32 to vector<8x1xf32>
    %79 = arith.addf %75, %78 : vector<8x1xf32>
    %80 = math.rsqrt %79 : vector<8x1xf32>
    %81 = vector.broadcast %80 : vector<8x1xf32> to vector<8x32xf32>
    %82 = arith.mulf %77, %81 : vector<8x32xf32>
    %83 = vector.extract_strided_slice %42 {offsets = [0, 64], sizes = [8, 32], strides = [1, 1]} : vector<8x96xf32> to vector<8x32xf32>
    %cst_44 = arith.constant dense<0.000000e+00> : vector<8xf32>
    %84 = vector.multi_reduction <add>, %83, %cst_44 [1] : vector<8x32xf32> to vector<8xf32>
    %85 = vector.shape_cast %84 : vector<8xf32> to vector<8x1xf32>
    %cst_45 = arith.constant 3.200000e+01 : f32
    %86 = vector.broadcast %cst_45 : f32 to vector<8x1xf32>
    %87 = arith.divf %85, %86 : vector<8x1xf32>
    %88 = vector.broadcast %87 : vector<8x1xf32> to vector<8x32xf32>
    %89 = arith.subf %83, %88 : vector<8x32xf32>
    %90 = arith.mulf %89, %89 : vector<8x32xf32>
    %cst_46 = arith.constant dense<0.000000e+00> : vector<8xf32>
    %91 = vector.multi_reduction <add>, %90, %cst_46 [1] : vector<8x32xf32> to vector<8xf32>
    %92 = vector.shape_cast %91 : vector<8xf32> to vector<8x1xf32>
    %cst_47 = arith.constant 3.200000e+01 : f32
    %93 = vector.broadcast %cst_47 : f32 to vector<8x1xf32>
    %94 = arith.divf %92, %93 : vector<8x1xf32>
    %95 = vector.broadcast %87 : vector<8x1xf32> to vector<8x32xf32>
    %96 = arith.subf %83, %95 : vector<8x32xf32>
    %cst_48 = arith.constant 9.99999974E-6 : f32
    %97 = vector.broadcast %cst_48 : f32 to vector<8x1xf32>
    %98 = arith.addf %94, %97 : vector<8x1xf32>
    %99 = math.rsqrt %98 : vector<8x1xf32>
    %100 = vector.broadcast %99 : vector<8x1xf32> to vector<8x32xf32>
    %101 = arith.mulf %96, %100 : vector<8x32xf32>
    %102 = tpu.concatenate %63, %82, %101 in 1 : vector<8x32xf32>, vector<8x32xf32>, vector<8x32xf32> -> vector<8x96xf32>
    %103 = vector.broadcast %43 : vector<1x96xf32> to vector<8x96xf32>
    %104 = arith.mulf %102, %103 : vector<8x96xf32>
    %105 = vector.broadcast %44 : vector<1x96xf32> to vector<8x96xf32>
    %106 = arith.addf %104, %105 : vector<8x96xf32>
    %c0_49 = arith.constant 0 : index
    %c0_50 = arith.constant 0 : index
    %107 = vector.load %arg12[%c0_49, %c0_50] : memref<1x96xf32, #tpu.memory_space<vmem>>, vector<1x96xf32>
    %cst_51 = arith.constant 0.000000e+00 : f32
    %108 = vector.broadcast %cst_51 : f32 to vector<1x96xf32>
    %109 = tpu.concatenate %108, %106, %108 in 0 : vector<1x96xf32>, vector<8x96xf32>, vector<1x96xf32> -> vector<10x96xf32>
    %cst_52 = arith.constant 0.000000e+00 : f32
    %110 = vector.broadcast %cst_52 : f32 to vector<8x96xf32>
    %111 = vector.extract_strided_slice %109 {offsets = [0, 0], sizes = [8, 96], strides = [1, 1]} : vector<10x96xf32> to vector<8x96xf32>
    %c0_53 = arith.constant 0 : index
    %c0_54 = arith.constant 0 : index
    %c0_55 = arith.constant 0 : index
    %112 = vector.load %arg11[%c0_53, %c0_54, %c0_55] : memref<3x96x96xf32, #tpu.memory_space<vmem>>, vector<1x96x96xf32>
    %113 = vector.shape_cast %112 : vector<1x96x96xf32> to vector<96x96xf32>
    %cst_56 = arith.constant dense<0.000000e+00> : vector<8x96xf32>
    %114 = tpu.matmul %111, %113, %cst_56 {dimension_numbers = #tpu.dot_dimension_numbers<[1], [0], [0], [1], [0, 0, 1, 1], [], []>} : vector<8x96xf32>, vector<96x96xf32>, vector<8x96xf32> -> vector<8x96xf32>
    %115 = arith.addf %110, %114 : vector<8x96xf32>
    %116 = vector.extract_strided_slice %109 {offsets = [1, 0], sizes = [8, 96], strides = [1, 1]} : vector<10x96xf32> to vector<8x96xf32>
    %c1_57 = arith.constant 1 : index
    %c0_58 = arith.constant 0 : index
    %c0_59 = arith.constant 0 : index
    %117 = vector.load %arg11[%c1_57, %c0_58, %c0_59] : memref<3x96x96xf32, #tpu.memory_space<vmem>>, vector<1x96x96xf32>
    %118 = vector.shape_cast %117 : vector<1x96x96xf32> to vector<96x96xf32>
    %cst_60 = arith.constant dense<0.000000e+00> : vector<8x96xf32>
    %119 = tpu.matmul %116, %118, %cst_60 {dimension_numbers = #tpu.dot_dimension_numbers<[1], [0], [0], [1], [0, 0, 1, 1], [], []>} : vector<8x96xf32>, vector<96x96xf32>, vector<8x96xf32> -> vector<8x96xf32>
    %120 = arith.addf %115, %119 : vector<8x96xf32>
    %121 = vector.extract_strided_slice %109 {offsets = [2, 0], sizes = [8, 96], strides = [1, 1]} : vector<10x96xf32> to vector<8x96xf32>
    %c2_61 = arith.constant 2 : index
    %c0_62 = arith.constant 0 : index
    %c0_63 = arith.constant 0 : index
    %122 = vector.load %arg11[%c2_61, %c0_62, %c0_63] : memref<3x96x96xf32, #tpu.memory_space<vmem>>, vector<1x96x96xf32>
    %123 = vector.shape_cast %122 : vector<1x96x96xf32> to vector<96x96xf32>
    %cst_64 = arith.constant dense<0.000000e+00> : vector<8x96xf32>
    %124 = tpu.matmul %121, %123, %cst_64 {dimension_numbers = #tpu.dot_dimension_numbers<[1], [0], [0], [1], [0, 0, 1, 1], [], []>} : vector<8x96xf32>, vector<96x96xf32>, vector<8x96xf32> -> vector<8x96xf32>
    %125 = arith.addf %120, %124 : vector<8x96xf32>
    %126 = vector.broadcast %107 : vector<1x96xf32> to vector<8x96xf32>
    %127 = arith.addf %125, %126 : vector<8x96xf32>
    %cst_65 = arith.constant 0.000000e+00 : f32
    %128 = vector.broadcast %cst_65 : f32 to vector<8x96xf32>
    %129 = arith.maximumf %127, %128 : vector<8x96xf32>
    %c0_66 = arith.constant 0 : index
    %c0_67 = arith.constant 0 : index
    %130 = vector.load %arg13[%c0_66, %c0_67] : memref<1x96xf32, #tpu.memory_space<vmem>>, vector<1x96xf32>
    %c0_68 = arith.constant 0 : index
    %c0_69 = arith.constant 0 : index
    %131 = vector.load %arg14[%c0_68, %c0_69] : memref<1x96xf32, #tpu.memory_space<vmem>>, vector<1x96xf32>
    %132 = vector.extract_strided_slice %129 {offsets = [0, 0], sizes = [8, 32], strides = [1, 1]} : vector<8x96xf32> to vector<8x32xf32>
    %cst_70 = arith.constant dense<0.000000e+00> : vector<8xf32>
    %133 = vector.multi_reduction <add>, %132, %cst_70 [1] : vector<8x32xf32> to vector<8xf32>
    %134 = vector.shape_cast %133 : vector<8xf32> to vector<8x1xf32>
    %cst_71 = arith.constant 3.200000e+01 : f32
    %135 = vector.broadcast %cst_71 : f32 to vector<8x1xf32>
    %136 = arith.divf %134, %135 : vector<8x1xf32>
    %137 = vector.broadcast %136 : vector<8x1xf32> to vector<8x32xf32>
    %138 = arith.subf %132, %137 : vector<8x32xf32>
    %139 = arith.mulf %138, %138 : vector<8x32xf32>
    %cst_72 = arith.constant dense<0.000000e+00> : vector<8xf32>
    %140 = vector.multi_reduction <add>, %139, %cst_72 [1] : vector<8x32xf32> to vector<8xf32>
    %141 = vector.shape_cast %140 : vector<8xf32> to vector<8x1xf32>
    %cst_73 = arith.constant 3.200000e+01 : f32
    %142 = vector.broadcast %cst_73 : f32 to vector<8x1xf32>
    %143 = arith.divf %141, %142 : vector<8x1xf32>
    %144 = vector.broadcast %136 : vector<8x1xf32> to vector<8x32xf32>
    %145 = arith.subf %132, %144 : vector<8x32xf32>
    %cst_74 = arith.constant 9.99999974E-6 : f32
    %146 = vector.broadcast %cst_74 : f32 to vector<8x1xf32>
    %147 = arith.addf %143, %146 : vector<8x1xf32>
    %148 = math.rsqrt %147 : vector<8x1xf32>
    %149 = vector.broadcast %148 : vector<8x1xf32> to vector<8x32xf32>
    %150 = arith.mulf %145, %149 : vector<8x32xf32>
    %151 = vector.extract_strided_slice %129 {offsets = [0, 32], sizes = [8, 32], strides = [1, 1]} : vector<8x96xf32> to vector<8x32xf32>
    %cst_75 = arith.constant dense<0.000000e+00> : vector<8xf32>
    %152 = vector.multi_reduction <add>, %151, %cst_75 [1] : vector<8x32xf32> to vector<8xf32>
    %153 = vector.shape_cast %152 : vector<8xf32> to vector<8x1xf32>
    %cst_76 = arith.constant 3.200000e+01 : f32
    %154 = vector.broadcast %cst_76 : f32 to vector<8x1xf32>
    %155 = arith.divf %153, %154 : vector<8x1xf32>
    %156 = vector.broadcast %155 : vector<8x1xf32> to vector<8x32xf32>
    %157 = arith.subf %151, %156 : vector<8x32xf32>
    %158 = arith.mulf %157, %157 : vector<8x32xf32>
    %cst_77 = arith.constant dense<0.000000e+00> : vector<8xf32>
    %159 = vector.multi_reduction <add>, %158, %cst_77 [1] : vector<8x32xf32> to vector<8xf32>
    %160 = vector.shape_cast %159 : vector<8xf32> to vector<8x1xf32>
    %cst_78 = arith.constant 3.200000e+01 : f32
    %161 = vector.broadcast %cst_78 : f32 to vector<8x1xf32>
    %162 = arith.divf %160, %161 : vector<8x1xf32>
    %163 = vector.broadcast %155 : vector<8x1xf32> to vector<8x32xf32>
    %164 = arith.subf %151, %163 : vector<8x32xf32>
    %cst_79 = arith.constant 9.99999974E-6 : f32
    %165 = vector.broadcast %cst_79 : f32 to vector<8x1xf32>
    %166 = arith.addf %162, %165 : vector<8x1xf32>
    %167 = math.rsqrt %166 : vector<8x1xf32>
    %168 = vector.broadcast %167 : vector<8x1xf32> to vector<8x32xf32>
    %169 = arith.mulf %164, %168 : vector<8x32xf32>
    %170 = vector.extract_strided_slice %129 {offsets = [0, 64], sizes = [8, 32], strides = [1, 1]} : vector<8x96xf32> to vector<8x32xf32>
    %cst_80 = arith.constant dense<0.000000e+00> : vector<8xf32>
    %171 = vector.multi_reduction <add>, %170, %cst_80 [1] : vector<8x32xf32> to vector<8xf32>
    %172 = vector.shape_cast %171 : vector<8xf32> to vector<8x1xf32>
    %cst_81 = arith.constant 3.200000e+01 : f32
    %173 = vector.broadcast %cst_81 : f32 to vector<8x1xf32>
    %174 = arith.divf %172, %173 : vector<8x1xf32>
    %175 = vector.broadcast %174 : vector<8x1xf32> to vector<8x32xf32>
    %176 = arith.subf %170, %175 : vector<8x32xf32>
    %177 = arith.mulf %176, %176 : vector<8x32xf32>
    %cst_82 = arith.constant dense<0.000000e+00> : vector<8xf32>
    %178 = vector.multi_reduction <add>, %177, %cst_82 [1] : vector<8x32xf32> to vector<8xf32>
    %179 = vector.shape_cast %178 : vector<8xf32> to vector<8x1xf32>
    %cst_83 = arith.constant 3.200000e+01 : f32
    %180 = vector.broadcast %cst_83 : f32 to vector<8x1xf32>
    %181 = arith.divf %179, %180 : vector<8x1xf32>
    %182 = vector.broadcast %174 : vector<8x1xf32> to vector<8x32xf32>
    %183 = arith.subf %170, %182 : vector<8x32xf32>
    %cst_84 = arith.constant 9.99999974E-6 : f32
    %184 = vector.broadcast %cst_84 : f32 to vector<8x1xf32>
    %185 = arith.addf %181, %184 : vector<8x1xf32>
    %186 = math.rsqrt %185 : vector<8x1xf32>
    %187 = vector.broadcast %186 : vector<8x1xf32> to vector<8x32xf32>
    %188 = arith.mulf %183, %187 : vector<8x32xf32>
    %189 = tpu.concatenate %150, %169, %188 in 1 : vector<8x32xf32>, vector<8x32xf32>, vector<8x32xf32> -> vector<8x96xf32>
    %190 = vector.broadcast %130 : vector<1x96xf32> to vector<8x96xf32>
    %191 = arith.mulf %189, %190 : vector<8x96xf32>
    %192 = vector.broadcast %131 : vector<1x96xf32> to vector<8x96xf32>
    %193 = arith.addf %191, %192 : vector<8x96xf32>
    %c0_85 = arith.constant 0 : index
    %c0_86 = arith.constant 0 : index
    %194 = vector.load %arg15[%c0_85, %c0_86] : memref<96x3xf32, #tpu.memory_space<vmem>>, vector<96x3xf32>
    %cst_87 = arith.constant dense<0.000000e+00> : vector<8x3xf32>
    %195 = tpu.matmul %193, %194, %cst_87 {dimension_numbers = #tpu.dot_dimension_numbers<[1], [0], [0], [1], [0, 0, 1, 1], [], []>} : vector<8x96xf32>, vector<96x3xf32>, vector<8x3xf32> -> vector<8x3xf32>
    %c0_88 = arith.constant 0 : index
    %c0_89 = arith.constant 0 : index
    %196 = vector.load %arg16[%c0_88, %c0_89] : memref<1x3xf32, #tpu.memory_space<vmem>>, vector<1x3xf32>
    %197 = vector.broadcast %196 : vector<1x3xf32> to vector<8x3xf32>
    %198 = arith.addf %195, %197 : vector<8x3xf32>
    %199 = vector.extract_strided_slice %198 {offsets = [0, 0], sizes = [8, 2], strides = [1, 1]} : vector<8x3xf32> to vector<8x2xf32>
    %cst_90 = arith.constant 0.000000e+00 : f32
    %200 = vector.broadcast %cst_90 : f32 to vector<1x2xf32>
    %201 = tpu.concatenate %200, %199, %200 in 0 : vector<1x2xf32>, vector<8x2xf32>, vector<1x2xf32> -> vector<10x2xf32>
    %cst_91 = arith.constant 0.000000e+00 : f32
    %202 = vector.broadcast %cst_91 : f32 to vector<8x32xf32>
    %c0_92 = arith.constant 0 : index
    %c0_93 = arith.constant 0 : index
    %c0_94 = arith.constant 0 : index
    %203 = vector.load %arg17[%c0_92, %c0_93, %c0_94] : memref<3x2x32xf32, #tpu.memory_space<vmem>>, vector<1x2x32xf32>
    %204 = vector.shape_cast %203 : vector<1x2x32xf32> to vector<2x32xf32>
    %205 = vector.extract_strided_slice %201 {offsets = [0, 0], sizes = [8, 1], strides = [1, 1]} : vector<10x2xf32> to vector<8x1xf32>
    %206 = vector.extract_strided_slice %204 {offsets = [0, 0], sizes = [1, 32], strides = [1, 1]} : vector<2x32xf32> to vector<1x32xf32>
    %207 = vector.broadcast %205 : vector<8x1xf32> to vector<8x32xf32>
    %208 = vector.broadcast %206 : vector<1x32xf32> to vector<8x32xf32>
    %209 = arith.mulf %207, %208 : vector<8x32xf32>
    %210 = arith.addf %202, %209 : vector<8x32xf32>
    %211 = vector.extract_strided_slice %201 {offsets = [0, 1], sizes = [8, 1], strides = [1, 1]} : vector<10x2xf32> to vector<8x1xf32>
    %212 = vector.extract_strided_slice %204 {offsets = [1, 0], sizes = [1, 32], strides = [1, 1]} : vector<2x32xf32> to vector<1x32xf32>
    %213 = vector.broadcast %211 : vector<8x1xf32> to vector<8x32xf32>
    %214 = vector.broadcast %212 : vector<1x32xf32> to vector<8x32xf32>
    %215 = arith.mulf %213, %214 : vector<8x32xf32>
    %216 = arith.addf %210, %215 : vector<8x32xf32>
    %c1_95 = arith.constant 1 : index
    %c0_96 = arith.constant 0 : index
    %c0_97 = arith.constant 0 : index
    %217 = vector.load %arg17[%c1_95, %c0_96, %c0_97] : memref<3x2x32xf32, #tpu.memory_space<vmem>>, vector<1x2x32xf32>
    %218 = vector.shape_cast %217 : vector<1x2x32xf32> to vector<2x32xf32>
    %219 = vector.extract_strided_slice %201 {offsets = [1, 0], sizes = [8, 1], strides = [1, 1]} : vector<10x2xf32> to vector<8x1xf32>
    %220 = vector.extract_strided_slice %218 {offsets = [0, 0], sizes = [1, 32], strides = [1, 1]} : vector<2x32xf32> to vector<1x32xf32>
    %221 = vector.broadcast %219 : vector<8x1xf32> to vector<8x32xf32>
    %222 = vector.broadcast %220 : vector<1x32xf32> to vector<8x32xf32>
    %223 = arith.mulf %221, %222 : vector<8x32xf32>
    %224 = arith.addf %216, %223 : vector<8x32xf32>
    %225 = vector.extract_strided_slice %201 {offsets = [1, 1], sizes = [8, 1], strides = [1, 1]} : vector<10x2xf32> to vector<8x1xf32>
    %226 = vector.extract_strided_slice %218 {offsets = [1, 0], sizes = [1, 32], strides = [1, 1]} : vector<2x32xf32> to vector<1x32xf32>
    %227 = vector.broadcast %225 : vector<8x1xf32> to vector<8x32xf32>
    %228 = vector.broadcast %226 : vector<1x32xf32> to vector<8x32xf32>
    %229 = arith.mulf %227, %228 : vector<8x32xf32>
    %230 = arith.addf %224, %229 : vector<8x32xf32>
    %c2_98 = arith.constant 2 : index
    %c0_99 = arith.constant 0 : index
    %c0_100 = arith.constant 0 : index
    %231 = vector.load %arg17[%c2_98, %c0_99, %c0_100] : memref<3x2x32xf32, #tpu.memory_space<vmem>>, vector<1x2x32xf32>
    %232 = vector.shape_cast %231 : vector<1x2x32xf32> to vector<2x32xf32>
    %233 = vector.extract_strided_slice %201 {offsets = [2, 0], sizes = [8, 1], strides = [1, 1]} : vector<10x2xf32> to vector<8x1xf32>
    %234 = vector.extract_strided_slice %232 {offsets = [0, 0], sizes = [1, 32], strides = [1, 1]} : vector<2x32xf32> to vector<1x32xf32>
    %235 = vector.broadcast %233 : vector<8x1xf32> to vector<8x32xf32>
    %236 = vector.broadcast %234 : vector<1x32xf32> to vector<8x32xf32>
    %237 = arith.mulf %235, %236 : vector<8x32xf32>
    %238 = arith.addf %230, %237 : vector<8x32xf32>
    %239 = vector.extract_strided_slice %201 {offsets = [2, 1], sizes = [8, 1], strides = [1, 1]} : vector<10x2xf32> to vector<8x1xf32>
    %240 = vector.extract_strided_slice %232 {offsets = [1, 0], sizes = [1, 32], strides = [1, 1]} : vector<2x32xf32> to vector<1x32xf32>
    %241 = vector.broadcast %239 : vector<8x1xf32> to vector<8x32xf32>
    %242 = vector.broadcast %240 : vector<1x32xf32> to vector<8x32xf32>
    %243 = arith.mulf %241, %242 : vector<8x32xf32>
    %244 = arith.addf %238, %243 : vector<8x32xf32>
    %c0_101 = arith.constant 0 : index
    %c0_102 = arith.constant 0 : index
    %245 = vector.load %arg18[%c0_101, %c0_102] : memref<1x32xf32, #tpu.memory_space<vmem>>, vector<1x32xf32>
    %246 = vector.broadcast %245 : vector<1x32xf32> to vector<8x32xf32>
    %247 = arith.addf %244, %246 : vector<8x32xf32>
    %248 = arith.addf %19, %247 : vector<8x32xf32>
    %c0_103 = arith.constant 0 : index
    %c0_104 = arith.constant 0 : index
    %c0_105 = arith.constant 0 : index
    %249 = vector.load %arg19[%c0_103, %c0_104, %c0_105] : memref<1x8x32xf32, #tpu.memory_space<vmem>>, vector<1x8x32xf32>
    %250 = vector.shape_cast %249 : vector<1x8x32xf32> to vector<8x32xf32>
    %251 = vector.shape_cast %248 : vector<8x32xf32> to vector<1x8x32xf32>
    tpu.vector_store %arg19[%c0_103, %c0_104, %c0_105], %251 {strides = array<i32>} : memref<1x8x32xf32, #tpu.memory_space<vmem>>, vector<1x8x32xf32>,
    %252 = vector.extract_strided_slice %198 {offsets = [0, 2], sizes = [8, 1], strides = [1, 1]} : vector<8x3xf32> to vector<8x1xf32>
    %c0_106 = arith.constant 0 : index
    %c0_107 = arith.constant 0 : index
    %c0_108 = arith.constant 0 : index
    %253 = vector.load %arg20[%c0_106, %c0_107, %c0_108] : memref<1x8x1xf32, #tpu.memory_space<vmem>>, vector<1x8x1xf32>
    %254 = vector.shape_cast %253 : vector<1x8x1xf32> to vector<8x1xf32>
    %255 = vector.shape_cast %252 : vector<8x1xf32> to vector<1x8x1xf32>
    tpu.vector_store %arg20[%c0_106, %c0_107, %c0_108], %255 {strides = array<i32>} : memref<1x8x1xf32, #tpu.memory_space<vmem>>, vector<1x8x1xf32>,
    return
  }
  func.func @transform_0(%arg0: i32) -> (i32, i32, i32) {
    %c0_i32 = arith.constant 0 : i32
    %c0_i32_0 = arith.constant 0 : i32
    %c0_i32_1 = arith.constant 0 : i32
    return %arg0, %c0_i32, %c0_i32_0 : i32, i32, i32
  }
  func.func @transform_1(%arg0: i32) -> (i32, i32, i32) {
    %c0_i32 = arith.constant 0 : i32
    %c0_i32_0 = arith.constant 0 : i32
    %c0_i32_1 = arith.constant 0 : i32
    return %arg0, %c0_i32, %c0_i32_0 : i32, i32, i32
  }
  func.func @transform_2(%arg0: i32) -> (i32, i32, i32) {
    %c0_i32 = arith.constant 0 : i32
    %c0_i32_0 = arith.constant 0 : i32
    %c0_i32_1 = arith.constant 0 : i32
    return %arg0, %c0_i32, %c0_i32_0 : i32, i32, i32
  }
  func.func @transform_3(%arg0: i32) -> (i32, i32, i32) {
    %c0_i32 = arith.constant 0 : i32
    %c0_i32_0 = arith.constant 0 : i32
    %c0_i32_1 = arith.constant 0 : i32
    return %arg0, %c0_i32, %c0_i32_0 : i32, i32, i32
  }
  func.func @transform_4(%arg0: i32) -> (i32, i32) {
    %c0_i32 = arith.constant 0 : i32
    %c0_i32_0 = arith.constant 0 : i32
    %c0_i32_1 = arith.constant 0 : i32
    return %c0_i32, %c0_i32_0 : i32, i32
  }
  func.func @transform_5(%arg0: i32) -> (i32, i32) {
    %c0_i32 = arith.constant 0 : i32
    %c0_i32_0 = arith.constant 0 : i32
    %c0_i32_1 = arith.constant 0 : i32
    return %c0_i32, %c0_i32_0 : i32, i32
  }
  func.func @transform_6(%arg0: i32) -> (i32, i32, i32) {
    %c0_i32 = arith.constant 0 : i32
    %c0_i32_0 = arith.constant 0 : i32
    %c0_i32_1 = arith.constant 0 : i32
    %c0_i32_2 = arith.constant 0 : i32
    return %c0_i32, %c0_i32_0, %c0_i32_1 : i32, i32, i32
  }
  func.func @transform_7(%arg0: i32) -> (i32, i32) {
    %c0_i32 = arith.constant 0 : i32
    %c0_i32_0 = arith.constant 0 : i32
    %c0_i32_1 = arith.constant 0 : i32
    return %c0_i32, %c0_i32_0 : i32, i32
  }
  func.func @transform_8(%arg0: i32) -> (i32, i32) {
    %c0_i32 = arith.constant 0 : i32
    %c0_i32_0 = arith.constant 0 : i32
    %c0_i32_1 = arith.constant 0 : i32
    return %c0_i32, %c0_i32_0 : i32, i32
  }
  func.func @transform_9(%arg0: i32) -> (i32, i32) {
    %c0_i32 = arith.constant 0 : i32
    %c0_i32_0 = arith.constant 0 : i32
    %c0_i32_1 = arith.constant 0 : i32
    return %c0_i32, %c0_i32_0 : i32, i32
  }
  func.func @transform_10(%arg0: i32) -> (i32, i32, i32) {
    %c0_i32 = arith.constant 0 : i32
    %c0_i32_0 = arith.constant 0 : i32
    %c0_i32_1 = arith.constant 0 : i32
    %c0_i32_2 = arith.constant 0 : i32
    return %c0_i32, %c0_i32_0, %c0_i32_1 : i32, i32, i32
  }
  func.func @transform_11(%arg0: i32) -> (i32, i32) {
    %c0_i32 = arith.constant 0 : i32
    %c0_i32_0 = arith.constant 0 : i32
    %c0_i32_1 = arith.constant 0 : i32
    return %c0_i32, %c0_i32_0 : i32, i32
  }
  func.func @transform_12(%arg0: i32) -> (i32, i32) {
    %c0_i32 = arith.constant 0 : i32
    %c0_i32_0 = arith.constant 0 : i32
    %c0_i32_1 = arith.constant 0 : i32
    return %c0_i32, %c0_i32_0 : i32, i32
  }
  func.func @transform_13(%arg0: i32) -> (i32, i32) {
    %c0_i32 = arith.constant 0 : i32
    %c0_i32_0 = arith.constant 0 : i32
    %c0_i32_1 = arith.constant 0 : i32
    return %c0_i32, %c0_i32_0 : i32, i32
  }
  func.func @transform_14(%arg0: i32) -> (i32, i32) {
    %c0_i32 = arith.constant 0 : i32
    %c0_i32_0 = arith.constant 0 : i32
    %c0_i32_1 = arith.constant 0 : i32
    return %c0_i32, %c0_i32_0 : i32, i32
  }
  func.func @transform_15(%arg0: i32) -> (i32, i32) {
    %c0_i32 = arith.constant 0 : i32
    %c0_i32_0 = arith.constant 0 : i32
    %c0_i32_1 = arith.constant 0 : i32
    return %c0_i32, %c0_i32_0 : i32, i32
  }
  func.func @transform_16(%arg0: i32) -> (i32, i32, i32) {
    %c0_i32 = arith.constant 0 : i32
    %c0_i32_0 = arith.constant 0 : i32
    %c0_i32_1 = arith.constant 0 : i32
    %c0_i32_2 = arith.constant 0 : i32
    return %c0_i32, %c0_i32_0, %c0_i32_1 : i32, i32, i32
  }
  func.func @transform_17(%arg0: i32) -> (i32, i32) {
    %c0_i32 = arith.constant 0 : i32
    %c0_i32_0 = arith.constant 0 : i32
    %c0_i32_1 = arith.constant 0 : i32
    return %c0_i32, %c0_i32_0 : i32, i32
  }
  func.func @transform_18(%arg0: i32) -> (i32, i32, i32) {
    %c0_i32 = arith.constant 0 : i32
    %c0_i32_0 = arith.constant 0 : i32
    %c0_i32_1 = arith.constant 0 : i32
    return %arg0, %c0_i32, %c0_i32_0 : i32, i32, i32
  }
  func.func @transform_19(%arg0: i32) -> (i32, i32, i32) {
    %c0_i32 = arith.constant 0 : i32
    %c0_i32_0 = arith.constant 0 : i32
    %c0_i32_1 = arith.constant 0 : i32
    return %arg0, %c0_i32, %c0_i32_0 : i32, i32, i32
  }
}

module attributes {stable_mosaic.version = 11 : i64} {
  func.func @_fused_fft_kernel(%arg0: i32, %arg1: memref<1x32x32xf32, #tpu.memory_space<vmem>>, %arg2: memref<32x96xf32, #tpu.memory_space<vmem>>, %arg3: memref<1x96xf32, #tpu.memory_space<vmem>>, %arg4: memref<32x32xf32, #tpu.memory_space<vmem>>, %arg5: memref<1x32xf32, #tpu.memory_space<vmem>>, %arg6: memref<1x32xf32, #tpu.memory_space<vmem>>, %arg7: memref<1x32xf32, #tpu.memory_space<vmem>>, %arg8: memref<32x64xf32, #tpu.memory_space<vmem>>, %arg9: memref<1x64xf32, #tpu.memory_space<vmem>>, %arg10: memref<64x32xf32, #tpu.memory_space<vmem>>, %arg11: memref<1x32xf32, #tpu.memory_space<vmem>>, %arg12: memref<1x32xf32, #tpu.memory_space<vmem>>, %arg13: memref<1x32xf32, #tpu.memory_space<vmem>>, %arg14: memref<32x16xf32, #tpu.memory_space<vmem>>, %arg15: memref<1x16xf32, #tpu.memory_space<vmem>>, %arg16: memref<1x32x16xf32, #tpu.memory_space<vmem>>) attributes {dimension_semantics = [#tpu.dimension_semantics<parallel>], iteration_bounds = array<i64: 2>, scalar_prefetch = 0 : i64, scratch_operands = 0 : i64, tpu.core_type = #tpu.core_type<tc>, window_params = [{transform_indices = @transform_0, window_bounds = array<i64: 1, 32, 32>}, {pipeline_mode = #tpu.pipeline_mode<synchronous>, transform_indices = @transform_1, window_bounds = array<i64: 32, 96>}, {pipeline_mode = #tpu.pipeline_mode<synchronous>, transform_indices = @transform_2, window_bounds = array<i64: 1, 96>}, {pipeline_mode = #tpu.pipeline_mode<synchronous>, transform_indices = @transform_3, window_bounds = array<i64: 32, 32>}, {pipeline_mode = #tpu.pipeline_mode<synchronous>, transform_indices = @transform_4, window_bounds = array<i64: 1, 32>}, {pipeline_mode = #tpu.pipeline_mode<synchronous>, transform_indices = @transform_5, window_bounds = array<i64: 1, 32>}, {pipeline_mode = #tpu.pipeline_mode<synchronous>, transform_indices = @transform_6, window_bounds = array<i64: 1, 32>}, {pipeline_mode = #tpu.pipeline_mode<synchronous>, transform_indices = @transform_7, window_bounds = array<i64: 32, 64>}, {pipeline_mode = #tpu.pipeline_mode<synchronous>, transform_indices = @transform_8, window_bounds = array<i64: 1, 64>}, {pipeline_mode = #tpu.pipeline_mode<synchronous>, transform_indices = @transform_9, window_bounds = array<i64: 64, 32>}, {pipeline_mode = #tpu.pipeline_mode<synchronous>, transform_indices = @transform_10, window_bounds = array<i64: 1, 32>}, {pipeline_mode = #tpu.pipeline_mode<synchronous>, transform_indices = @transform_11, window_bounds = array<i64: 1, 32>}, {pipeline_mode = #tpu.pipeline_mode<synchronous>, transform_indices = @transform_12, window_bounds = array<i64: 1, 32>}, {pipeline_mode = #tpu.pipeline_mode<synchronous>, transform_indices = @transform_13, window_bounds = array<i64: 32, 16>}, {pipeline_mode = #tpu.pipeline_mode<synchronous>, transform_indices = @transform_14, window_bounds = array<i64: 1, 16>}, {transform_indices = @transform_15, window_bounds = array<i64: 1, 32, 16>}]} {
    %c0 = arith.constant 0 : index
    %c0_0 = arith.constant 0 : index
    %c0_1 = arith.constant 0 : index
    %0 = vector.load %arg1[%c0, %c0_0, %c0_1] : memref<1x32x32xf32, #tpu.memory_space<vmem>>, vector<1x32x32xf32>
    %1 = vector.shape_cast %0 : vector<1x32x32xf32> to vector<32x32xf32>
    %c0_2 = arith.constant 0 : index
    %c0_3 = arith.constant 0 : index
    %2 = vector.load %arg2[%c0_2, %c0_3] : memref<32x96xf32, #tpu.memory_space<vmem>>, vector<32x96xf32>
    %cst = arith.constant dense<0.000000e+00> : vector<32x96xf32>
    %3 = tpu.matmul %1, %2, %cst {dimension_numbers = #tpu.dot_dimension_numbers<[1], [0], [0], [1], [0, 0, 1, 1], [], []>} : vector<32x32xf32>, vector<32x96xf32>, vector<32x96xf32> -> vector<32x96xf32>
    %c0_4 = arith.constant 0 : index
    %c0_5 = arith.constant 0 : index
    %4 = vector.load %arg3[%c0_4, %c0_5] : memref<1x96xf32, #tpu.memory_space<vmem>>, vector<1x96xf32>
    %5 = vector.broadcast %4 : vector<1x96xf32> to vector<32x96xf32>
    %6 = arith.addf %3, %5 : vector<32x96xf32>
    %7 = vector.extract_strided_slice %6 {offsets = [0, 0], sizes = [32, 32], strides = [1, 1]} : vector<32x96xf32> to vector<32x32xf32>
    %8 = vector.extract_strided_slice %6 {offsets = [0, 32], sizes = [32, 32], strides = [1, 1]} : vector<32x96xf32> to vector<32x32xf32>
    %9 = vector.extract_strided_slice %6 {offsets = [0, 64], sizes = [32, 32], strides = [1, 1]} : vector<32x96xf32> to vector<32x32xf32>
    %cst_6 = arith.constant dense<0.000000e+00> : vector<32x32xf32>
    %10 = tpu.matmul %7, %8, %cst_6 {dimension_numbers = #tpu.dot_dimension_numbers<[1], [1], [0], [0], [0, 0, 1, 0], [], []>} : vector<32x32xf32>, vector<32x32xf32>, vector<32x32xf32> -> vector<32x32xf32>
    %cst_7 = arith.constant 0.176776692 : f32
    %11 = vector.broadcast %cst_7 : f32 to vector<32x32xf32>
    %12 = arith.mulf %10, %11 : vector<32x32xf32>
    %cst_8 = arith.constant dense<0xFF800000> : vector<32xf32>
    %13 = vector.multi_reduction <maximumf>, %12, %cst_8 [1] : vector<32x32xf32> to vector<32xf32>
    %14 = vector.shape_cast %13 : vector<32xf32> to vector<32x1xf32>
    %15 = vector.broadcast %14 : vector<32x1xf32> to vector<32x32xf32>
    %16 = arith.subf %12, %15 : vector<32x32xf32>
    %17 = math.exp %16 : vector<32x32xf32>
    %cst_9 = arith.constant dense<0.000000e+00> : vector<32xf32>
    %18 = vector.multi_reduction <add>, %17, %cst_9 [1] : vector<32x32xf32> to vector<32xf32>
    %19 = vector.shape_cast %18 : vector<32xf32> to vector<32x1xf32>
    %20 = tpu.reciprocal %19 {approx = true} : vector<32x1xf32> -> vector<32x1xf32>
    %21 = vector.broadcast %20 : vector<32x1xf32> to vector<32x32xf32>
    %22 = arith.mulf %17, %21 : vector<32x32xf32>
    %cst_10 = arith.constant dense<0.000000e+00> : vector<32x32xf32>
    %23 = tpu.matmul %22, %9, %cst_10 {dimension_numbers = #tpu.dot_dimension_numbers<[1], [0], [0], [1], [0, 0, 1, 1], [], []>} : vector<32x32xf32>, vector<32x32xf32>, vector<32x32xf32> -> vector<32x32xf32>
    %c0_11 = arith.constant 0 : index
    %c0_12 = arith.constant 0 : index
    %24 = vector.load %arg4[%c0_11, %c0_12] : memref<32x32xf32, #tpu.memory_space<vmem>>, vector<32x32xf32>
    %cst_13 = arith.constant dense<0.000000e+00> : vector<32x32xf32>
    %25 = tpu.matmul %23, %24, %cst_13 {dimension_numbers = #tpu.dot_dimension_numbers<[1], [0], [0], [1], [0, 0, 1, 1], [], []>} : vector<32x32xf32>, vector<32x32xf32>, vector<32x32xf32> -> vector<32x32xf32>
    %c0_14 = arith.constant 0 : index
    %c0_15 = arith.constant 0 : index
    %26 = vector.load %arg5[%c0_14, %c0_15] : memref<1x32xf32, #tpu.memory_space<vmem>>, vector<1x32xf32>
    %27 = vector.broadcast %26 : vector<1x32xf32> to vector<32x32xf32>
    %28 = arith.addf %25, %27 : vector<32x32xf32>
    %29 = arith.addf %1, %28 : vector<32x32xf32>
    %c0_16 = arith.constant 0 : index
    %c0_17 = arith.constant 0 : index
    %30 = vector.load %arg6[%c0_16, %c0_17] : memref<1x32xf32, #tpu.memory_space<vmem>>, vector<1x32xf32>
    %c0_18 = arith.constant 0 : index
    %c0_19 = arith.constant 0 : index
    %31 = vector.load %arg7[%c0_18, %c0_19] : memref<1x32xf32, #tpu.memory_space<vmem>>, vector<1x32xf32>
    %cst_20 = arith.constant dense<0.000000e+00> : vector<32xf32>
    %32 = vector.multi_reduction <add>, %29, %cst_20 [1] : vector<32x32xf32> to vector<32xf32>
    %33 = vector.shape_cast %32 : vector<32xf32> to vector<32x1xf32>
    %cst_21 = arith.constant 3.200000e+01 : f32
    %34 = vector.broadcast %cst_21 : f32 to vector<32x1xf32>
    %35 = arith.divf %33, %34 : vector<32x1xf32>
    %36 = vector.broadcast %35 : vector<32x1xf32> to vector<32x32xf32>
    %37 = arith.subf %29, %36 : vector<32x32xf32>
    %38 = arith.mulf %37, %37 : vector<32x32xf32>
    %cst_22 = arith.constant dense<0.000000e+00> : vector<32xf32>
    %39 = vector.multi_reduction <add>, %38, %cst_22 [1] : vector<32x32xf32> to vector<32xf32>
    %40 = vector.shape_cast %39 : vector<32xf32> to vector<32x1xf32>
    %cst_23 = arith.constant 3.200000e+01 : f32
    %41 = vector.broadcast %cst_23 : f32 to vector<32x1xf32>
    %42 = arith.divf %40, %41 : vector<32x1xf32>
    %43 = vector.broadcast %35 : vector<32x1xf32> to vector<32x32xf32>
    %44 = arith.subf %29, %43 : vector<32x32xf32>
    %cst_24 = arith.constant 9.99999974E-6 : f32
    %45 = vector.broadcast %cst_24 : f32 to vector<32x1xf32>
    %46 = arith.addf %42, %45 : vector<32x1xf32>
    %47 = math.rsqrt %46 : vector<32x1xf32>
    %48 = vector.broadcast %47 : vector<32x1xf32> to vector<32x32xf32>
    %49 = arith.mulf %44, %48 : vector<32x32xf32>
    %50 = vector.broadcast %30 : vector<1x32xf32> to vector<32x32xf32>
    %51 = arith.mulf %49, %50 : vector<32x32xf32>
    %52 = vector.broadcast %31 : vector<1x32xf32> to vector<32x32xf32>
    %53 = arith.addf %51, %52 : vector<32x32xf32>
    %c0_25 = arith.constant 0 : index
    %c0_26 = arith.constant 0 : index
    %54 = vector.load %arg8[%c0_25, %c0_26] : memref<32x64xf32, #tpu.memory_space<vmem>>, vector<32x64xf32>
    %cst_27 = arith.constant dense<0.000000e+00> : vector<32x64xf32>
    %55 = tpu.matmul %53, %54, %cst_27 {dimension_numbers = #tpu.dot_dimension_numbers<[1], [0], [0], [1], [0, 0, 1, 1], [], []>} : vector<32x32xf32>, vector<32x64xf32>, vector<32x64xf32> -> vector<32x64xf32>
    %c0_28 = arith.constant 0 : index
    %c0_29 = arith.constant 0 : index
    %56 = vector.load %arg9[%c0_28, %c0_29] : memref<1x64xf32, #tpu.memory_space<vmem>>, vector<1x64xf32>
    %57 = vector.broadcast %56 : vector<1x64xf32> to vector<32x64xf32>
    %58 = arith.addf %55, %57 : vector<32x64xf32>
    %cst_30 = arith.constant 0.000000e+00 : f32
    %59 = vector.broadcast %cst_30 : f32 to vector<32x64xf32>
    %60 = arith.maximumf %58, %59 : vector<32x64xf32>
    %c0_31 = arith.constant 0 : index
    %c0_32 = arith.constant 0 : index
    %61 = vector.load %arg10[%c0_31, %c0_32] : memref<64x32xf32, #tpu.memory_space<vmem>>, vector<64x32xf32>
    %cst_33 = arith.constant dense<0.000000e+00> : vector<32x32xf32>
    %62 = tpu.matmul %60, %61, %cst_33 {dimension_numbers = #tpu.dot_dimension_numbers<[1], [0], [0], [1], [0, 0, 1, 1], [], []>} : vector<32x64xf32>, vector<64x32xf32>, vector<32x32xf32> -> vector<32x32xf32>
    %c0_34 = arith.constant 0 : index
    %c0_35 = arith.constant 0 : index
    %63 = vector.load %arg11[%c0_34, %c0_35] : memref<1x32xf32, #tpu.memory_space<vmem>>, vector<1x32xf32>
    %64 = vector.broadcast %63 : vector<1x32xf32> to vector<32x32xf32>
    %65 = arith.addf %62, %64 : vector<32x32xf32>
    %66 = arith.addf %53, %65 : vector<32x32xf32>
    %c0_36 = arith.constant 0 : index
    %c0_37 = arith.constant 0 : index
    %67 = vector.load %arg12[%c0_36, %c0_37] : memref<1x32xf32, #tpu.memory_space<vmem>>, vector<1x32xf32>
    %c0_38 = arith.constant 0 : index
    %c0_39 = arith.constant 0 : index
    %68 = vector.load %arg13[%c0_38, %c0_39] : memref<1x32xf32, #tpu.memory_space<vmem>>, vector<1x32xf32>
    %cst_40 = arith.constant dense<0.000000e+00> : vector<32xf32>
    %69 = vector.multi_reduction <add>, %66, %cst_40 [1] : vector<32x32xf32> to vector<32xf32>
    %70 = vector.shape_cast %69 : vector<32xf32> to vector<32x1xf32>
    %cst_41 = arith.constant 3.200000e+01 : f32
    %71 = vector.broadcast %cst_41 : f32 to vector<32x1xf32>
    %72 = arith.divf %70, %71 : vector<32x1xf32>
    %73 = vector.broadcast %72 : vector<32x1xf32> to vector<32x32xf32>
    %74 = arith.subf %66, %73 : vector<32x32xf32>
    %75 = arith.mulf %74, %74 : vector<32x32xf32>
    %cst_42 = arith.constant dense<0.000000e+00> : vector<32xf32>
    %76 = vector.multi_reduction <add>, %75, %cst_42 [1] : vector<32x32xf32> to vector<32xf32>
    %77 = vector.shape_cast %76 : vector<32xf32> to vector<32x1xf32>
    %cst_43 = arith.constant 3.200000e+01 : f32
    %78 = vector.broadcast %cst_43 : f32 to vector<32x1xf32>
    %79 = arith.divf %77, %78 : vector<32x1xf32>
    %80 = vector.broadcast %72 : vector<32x1xf32> to vector<32x32xf32>
    %81 = arith.subf %66, %80 : vector<32x32xf32>
    %cst_44 = arith.constant 9.99999974E-6 : f32
    %82 = vector.broadcast %cst_44 : f32 to vector<32x1xf32>
    %83 = arith.addf %79, %82 : vector<32x1xf32>
    %84 = math.rsqrt %83 : vector<32x1xf32>
    %85 = vector.broadcast %84 : vector<32x1xf32> to vector<32x32xf32>
    %86 = arith.mulf %81, %85 : vector<32x32xf32>
    %87 = vector.broadcast %67 : vector<1x32xf32> to vector<32x32xf32>
    %88 = arith.mulf %86, %87 : vector<32x32xf32>
    %89 = vector.broadcast %68 : vector<1x32xf32> to vector<32x32xf32>
    %90 = arith.addf %88, %89 : vector<32x32xf32>
    %c0_45 = arith.constant 0 : index
    %c0_46 = arith.constant 0 : index
    %91 = vector.load %arg14[%c0_45, %c0_46] : memref<32x16xf32, #tpu.memory_space<vmem>>, vector<32x16xf32>
    %cst_47 = arith.constant dense<0.000000e+00> : vector<32x16xf32>
    %92 = tpu.matmul %90, %91, %cst_47 {dimension_numbers = #tpu.dot_dimension_numbers<[1], [0], [0], [1], [0, 0, 1, 1], [], []>} : vector<32x32xf32>, vector<32x16xf32>, vector<32x16xf32> -> vector<32x16xf32>
    %c0_48 = arith.constant 0 : index
    %c0_49 = arith.constant 0 : index
    %93 = vector.load %arg15[%c0_48, %c0_49] : memref<1x16xf32, #tpu.memory_space<vmem>>, vector<1x16xf32>
    %94 = vector.broadcast %93 : vector<1x16xf32> to vector<32x16xf32>
    %95 = arith.addf %92, %94 : vector<32x16xf32>
    %c0_50 = arith.constant 0 : index
    %c0_51 = arith.constant 0 : index
    %c0_52 = arith.constant 0 : index
    %96 = vector.load %arg16[%c0_50, %c0_51, %c0_52] : memref<1x32x16xf32, #tpu.memory_space<vmem>>, vector<1x32x16xf32>
    %97 = vector.shape_cast %96 : vector<1x32x16xf32> to vector<32x16xf32>
    %98 = vector.shape_cast %95 : vector<32x16xf32> to vector<1x32x16xf32>
    tpu.vector_store %arg16[%c0_50, %c0_51, %c0_52], %98 {strides = array<i32>} : memref<1x32x16xf32, #tpu.memory_space<vmem>>, vector<1x32x16xf32>,
    return
  }
  func.func @transform_0(%arg0: i32) -> (i32, i32, i32) {
    %c0_i32 = arith.constant 0 : i32
    %c0_i32_0 = arith.constant 0 : i32
    %c0_i32_1 = arith.constant 0 : i32
    return %arg0, %c0_i32, %c0_i32_0 : i32, i32, i32
  }
  func.func @transform_1(%arg0: i32) -> (i32, i32) {
    %c0_i32 = arith.constant 0 : i32
    %c0_i32_0 = arith.constant 0 : i32
    %c0_i32_1 = arith.constant 0 : i32
    return %c0_i32, %c0_i32_0 : i32, i32
  }
  func.func @transform_2(%arg0: i32) -> (i32, i32) {
    %c0_i32 = arith.constant 0 : i32
    %c0_i32_0 = arith.constant 0 : i32
    %c0_i32_1 = arith.constant 0 : i32
    return %c0_i32, %c0_i32_0 : i32, i32
  }
  func.func @transform_3(%arg0: i32) -> (i32, i32) {
    %c0_i32 = arith.constant 0 : i32
    %c0_i32_0 = arith.constant 0 : i32
    %c0_i32_1 = arith.constant 0 : i32
    return %c0_i32, %c0_i32_0 : i32, i32
  }
  func.func @transform_4(%arg0: i32) -> (i32, i32) {
    %c0_i32 = arith.constant 0 : i32
    %c0_i32_0 = arith.constant 0 : i32
    %c0_i32_1 = arith.constant 0 : i32
    return %c0_i32, %c0_i32_0 : i32, i32
  }
  func.func @transform_5(%arg0: i32) -> (i32, i32) {
    %c0_i32 = arith.constant 0 : i32
    %c0_i32_0 = arith.constant 0 : i32
    %c0_i32_1 = arith.constant 0 : i32
    return %c0_i32, %c0_i32_0 : i32, i32
  }
  func.func @transform_6(%arg0: i32) -> (i32, i32) {
    %c0_i32 = arith.constant 0 : i32
    %c0_i32_0 = arith.constant 0 : i32
    %c0_i32_1 = arith.constant 0 : i32
    return %c0_i32, %c0_i32_0 : i32, i32
  }
  func.func @transform_7(%arg0: i32) -> (i32, i32) {
    %c0_i32 = arith.constant 0 : i32
    %c0_i32_0 = arith.constant 0 : i32
    %c0_i32_1 = arith.constant 0 : i32
    return %c0_i32, %c0_i32_0 : i32, i32
  }
  func.func @transform_8(%arg0: i32) -> (i32, i32) {
    %c0_i32 = arith.constant 0 : i32
    %c0_i32_0 = arith.constant 0 : i32
    %c0_i32_1 = arith.constant 0 : i32
    return %c0_i32, %c0_i32_0 : i32, i32
  }
  func.func @transform_9(%arg0: i32) -> (i32, i32) {
    %c0_i32 = arith.constant 0 : i32
    %c0_i32_0 = arith.constant 0 : i32
    %c0_i32_1 = arith.constant 0 : i32
    return %c0_i32, %c0_i32_0 : i32, i32
  }
  func.func @transform_10(%arg0: i32) -> (i32, i32) {
    %c0_i32 = arith.constant 0 : i32
    %c0_i32_0 = arith.constant 0 : i32
    %c0_i32_1 = arith.constant 0 : i32
    return %c0_i32, %c0_i32_0 : i32, i32
  }
  func.func @transform_11(%arg0: i32) -> (i32, i32) {
    %c0_i32 = arith.constant 0 : i32
    %c0_i32_0 = arith.constant 0 : i32
    %c0_i32_1 = arith.constant 0 : i32
    return %c0_i32, %c0_i32_0 : i32, i32
  }
  func.func @transform_12(%arg0: i32) -> (i32, i32) {
    %c0_i32 = arith.constant 0 : i32
    %c0_i32_0 = arith.constant 0 : i32
    %c0_i32_1 = arith.constant 0 : i32
    return %c0_i32, %c0_i32_0 : i32, i32
  }
  func.func @transform_13(%arg0: i32) -> (i32, i32) {
    %c0_i32 = arith.constant 0 : i32
    %c0_i32_0 = arith.constant 0 : i32
    %c0_i32_1 = arith.constant 0 : i32
    return %c0_i32, %c0_i32_0 : i32, i32
  }
  func.func @transform_14(%arg0: i32) -> (i32, i32) {
    %c0_i32 = arith.constant 0 : i32
    %c0_i32_0 = arith.constant 0 : i32
    %c0_i32_1 = arith.constant 0 : i32
    return %c0_i32, %c0_i32_0 : i32, i32
  }
  func.func @transform_15(%arg0: i32) -> (i32, i32, i32) {
    %c0_i32 = arith.constant 0 : i32
    %c0_i32_0 = arith.constant 0 : i32
    %c0_i32_1 = arith.constant 0 : i32
    return %arg0, %c0_i32, %c0_i32_0 : i32, i32, i32
  }
}

</mosaic_0001>

<llo_original>
// kernel: prompt_tts_forward.3
$region0: #{prompt_tts_forward.3}
  #allocation0 [shape = 'u32[]', space=smem, size = 0x4, offset = 0x4, fixed_abs, tag = 'smem constant byte address 0x4 - core index']
  #allocation1 [shape = 'u32[144,128]{1,0:T(1,128)}', space=vmem, size = 0x12000, scoped, tag = 'internal scratch']
  %s0 = inlined_call_operand.vmem [shape: f32[2,8,32], index: 0, kind: input, shape index: {}]
  %s1 = inlined_call_operand.vmem [shape: f32[32,96], index: 1, kind: input, shape index: {}]
  %s2 = inlined_call_operand.vmem [shape: f32[1,96], index: 2, kind: input, shape index: {}]
  %s3 = inlined_call_operand.hbm [shape: f32[32,32], index: 3, kind: input, shape index: {}]
  %s4 = inlined_call_operand.vmem [shape: f32[1,32], index: 4, kind: input, shape index: {}, may-alias: {4,6,10,12}]
  %s5 = inlined_call_operand.vmem [shape: f32[1,32], index: 5, kind: input, shape index: {}, may-alias: {5,11}]
  %s6 = inlined_call_operand.vmem [shape: f32[1,32], index: 6, kind: input, shape index: {}, may-alias: {4,6,10,12}]
  %s7 = inlined_call_operand.hbm [shape: f32[32,64], index: 7, kind: input, shape index: {}]
  %s8 = inlined_call_operand.vmem [shape: f32[1,64], index: 8, kind: input, shape index: {}]
  %s9 = inlined_call_operand.hbm [shape: f32[64,32], index: 9, kind: input, shape index: {}]
  %s10 = inlined_call_operand.vmem [shape: f32[1,32], index: 10, kind: input, shape index: {}, may-alias: {4,6,10,12}]
  %s11 = inlined_call_operand.vmem [shape: f32[1,32], index: 11, kind: input, shape index: {}, may-alias: {5,11}]
  %s12 = inlined_call_operand.vmem [shape: f32[1,32], index: 12, kind: input, shape index: {}, may-alias: {4,6,10,12}]
  %s13 = inlined_call_operand.vmem [shape: f32[2,8,32], index: 13, kind: output, shape index: {}]
  %s14 = sld [smem:[#allocation0]]
  $region97: #{prompt_tts_forward.3} parent=0
    _
  %s16 = ssub.s32 1, %s14
  %s17 = scalar_select 0, %s16, %s14
  $region1: #{prompt_tts_forward.3} parent=0
    #allocation2 [shape = 'u8[16384]{0}', space=vmem, size = 0x4000, scoped, tag = 'input window, operand 3, single buffered']
    #allocation3 [shape = 's32[2]{0}', space=sflag, size = 0x8, scoped, tag = 'scoped memory for prompt_tts_forward.3']
    #allocation4 [shape = 'u8[16384]{0}', space=vmem, size = 0x4000, scoped, tag = 'input window, operand 7, single buffered']
    #allocation5 [shape = 's32[1]{0}', space=sflag, size = 0x4, scoped, tag = 'scoped memory for prompt_tts_forward.3']
    #allocation6 [shape = 'u8[32768]{0}', space=vmem, size = 0x8000, scoped, tag = 'input window, operand 9, single buffered']
    %18 = vsyncpa [#allocation3], 0
    %19 = vsyncpa [#allocation5], 0
    loop: start=0, step=1, limit=4
    $region2: #{prompt_tts_forward.3} parent=1 // loop_pre_header
      _
    $region3: #{prompt_tts_forward.3} parent=1 // loop_header
      %s21 = sphi 0, %s25
      %p22 = scmp.ge.s32.totalorder %s21, 4
      %s31 = sphi 0, %s33
      %s34 = sphi 0, %s31
      %s35 = sphi 0, %s34
      %s51 = sphi 0, %s35
      %s55 = sphi 0, %s55
      %s57 = sphi 0, %s55
      %s58 = sphi 0, %s57
      %s72 = sphi 0, %s58
      %s76 = sphi 0, %s76
      %s78 = sphi 0, %s76
      %s79 = sphi 0, %s78
      %s93 = sphi 0, %s79
      %s97 = sphi 0, %s97
      %s99 = sphi 0, %s97
      %s100 = sphi 0, %s99
      %s114 = sphi 0, %s100
      %s118 = sphi 0, %s118
      %s120 = sphi 0, %s118
      %s121 = sphi 0, %s120
      %s135 = sphi 0, %s121
      %s139 = sphi 0, %s139
      %s141 = sphi 0, %s139
      %s142 = sphi 0, %s141
      %s156 = sphi 0, %s142
      %s160 = sphi 0, %s160
      %s162 = sphi 0, %s160
      %s163 = sphi 0, %s162
      %s177 = sphi 0, %s163
      %s181 = sphi 0, %s181
      %s183 = sphi 0, %s181
      %s184 = sphi 0, %s183
      %s198 = sphi 0, %s184
      %s202 = sphi 0, %s202
      %s204 = sphi 0, %s202
      %s205 = sphi 0, %s204
      %s219 = sphi 0, %s205
      %s223 = sphi 0, %s223
      %s225 = sphi 0, %s223
      %s226 = sphi 0, %s225
      %s240 = sphi 0, %s226
      %s244 = sphi 0, %s244
      %s246 = sphi 0, %s244
      %s247 = sphi 0, %s246
      %s261 = sphi 0, %s247
      %s265 = sphi 0, %s265
      %s267 = sphi 0, %s265
      %s268 = sphi 0, %s267
      %s282 = sphi 0, %s268
      %s286 = sphi 0, %s286
      %s288 = sphi 0, %s286
      %s289 = sphi 0, %s288
      %s303 = sphi 0, %s289
      %s309 = sphi 0, %s311
      %s312 = sphi 0, %s309
      %s313 = sphi 0, %s312
      %s329 = sphi 0, %s313
    $region4: #{prompt_tts_forward.3} parent=1 // loop_header_branch
      %24 = sbr.rel (%p22) target = $region8
    $region5: #{prompt_tts_forward.3} parent=1 // loop_body
      %s26 = ssub.s32 %s21, 1
      %s27 = ssub.s32 %s21, 2
      %s28 = sadd.s32 %s21, 1
      %s29 = ssub.s32 %s21, %s28
      %p30 = scmp.eq.s32.totalorder %s29, 0
      %s32 = sadd.s32 %s31, 1
      %s33 = scalar_select %p30, %s31, %s32
      %p36 = pneg %p30
      %p37 = scmp.eq.s32.totalorder %s21, 1
      %p38 = por %p36, %p37
      %p39 = scmp.ne.s32.totalorder %s31, %s34
      %p40 = scmp.eq.s32.totalorder %s21, 0
      %p41 = por %p39, %p40
      %p42 = scmp.ne.s32.totalorder %s31, %s34
      %p43 = scmp.eq.s32.totalorder %s26, 1
      %p44 = por %p42, %p43
      %p45 = scmp.ne.s32.totalorder %s34, %s35
      %p46 = scmp.eq.s32.totalorder %s26, 0
      %p47 = por %p45, %p46
      %p48 = scmp.ne.s32.totalorder %s34, %s35
      %p49 = scmp.eq.s32.totalorder %s27, 1
      %p50 = por %p48, %p49
      %p52 = scmp.ne.s32.totalorder %s35, %s51
      %p53 = scmp.eq.s32.totalorder %s27, 0
      %p54 = por %p52, %p53
      %s56 = sadd.s32 %s55, 1
      %p59 = scmp.eq.s32.totalorder %s21, 1
      %p60 = scmp.ne.s32.totalorder %s55, %s57
      %p61 = scmp.eq.s32.totalorder %s21, 0
      %p62 = por %p60, %p61
      %p63 = scmp.ne.s32.totalorder %s55, %s57
      %p64 = scmp.eq.s32.totalorder %s26, 1
      %p65 = por %p63, %p64
      %p66 = scmp.ne.s32.totalorder %s57, %s58
      %p67 = scmp.eq.s32.totalorder %s26, 0
      %p68 = por %p66, %p67
      %p69 = scmp.ne.s32.totalorder %s57, %s58
      %p70 = scmp.eq.s32.totalorder %s27, 1
      %p71 = por %p69, %p70
      %p73 = scmp.ne.s32.totalorder %s58, %s72
      %p74 = scmp.eq.s32.totalorder %s27, 0
      %p75 = por %p73, %p74
      %s77 = sadd.s32 %s76, 1
      %p80 = scmp.eq.s32.totalorder %s21, 1
      %p81 = scmp.ne.s32.totalorder %s76, %s78
      %p82 = scmp.eq.s32.totalorder %s21, 0
      %p83 = por %p81, %p82
      %p84 = scmp.ne.s32.totalorder %s76, %s78
      %p85 = scmp.eq.s32.totalorder %s26, 1
      %p86 = por %p84, %p85
      %p87 = scmp.ne.s32.totalorder %s78, %s79
      %p88 = scmp.eq.s32.totalorder %s26, 0
      %p89 = por %p87, %p88
      %p90 = scmp.ne.s32.totalorder %s78, %s79
      %p91 = scmp.eq.s32.totalorder %s27, 1
      %p92 = por %p90, %p91
      %p94 = scmp.ne.s32.totalorder %s79, %s93
      %p95 = scmp.eq.s32.totalorder %s27, 0
      %p96 = por %p94, %p95
      %s98 = sadd.s32 %s97, 1
      %p101 = scmp.eq.s32.totalorder %s21, 1
      %p102 = scmp.ne.s32.totalorder %s97, %s99
      %p103 = scmp.eq.s32.totalorder %s21, 0
      %p104 = por %p102, %p103
      %p105 = scmp.ne.s32.totalorder %s97, %s99
      %p106 = scmp.eq.s32.totalorder %s26, 1
      %p107 = por %p105, %p106
      %p108 = scmp.ne.s32.totalorder %s99, %s100
      %p109 = scmp.eq.s32.totalorder %s26, 0
      %p110 = por %p108, %p109
      %p111 = scmp.ne.s32.totalorder %s99, %s100
      %p112 = scmp.eq.s32.totalorder %s27, 1
      %p113 = por %p111, %p112
      %p115 = scmp.ne.s32.totalorder %s100, %s114
      %p116 = scmp.eq.s32.totalorder %s27, 0
      %p117 = por %p115, %p116
      %s119 = sadd.s32 %s118, 1
      %p122 = scmp.eq.s32.totalorder %s21, 1
      %p123 = scmp.ne.s32.totalorder %s118, %s120
      %p124 = scmp.eq.s32.totalorder %s21, 0
      %p125 = por %p123, %p124
      %p126 = scmp.ne.s32.totalorder %s118, %s120
      %p127 = scmp.eq.s32.totalorder %s26, 1
      %p128 = por %p126, %p127
      %p129 = scmp.ne.s32.totalorder %s120, %s121
      %p130 = scmp.eq.s32.totalorder %s26, 0
      %p131 = por %p129, %p130
      %p132 = scmp.ne.s32.totalorder %s120, %s121
      %p133 = scmp.eq.s32.totalorder %s27, 1
      %p134 = por %p132, %p133
      %p136 = scmp.ne.s32.totalorder %s121, %s135
      %p137 = scmp.eq.s32.totalorder %s27, 0
      %p138 = por %p136, %p137
      %s140 = sadd.s32 %s139, 1
      %p143 = scmp.eq.s32.totalorder %s21, 1
      %p144 = scmp.ne.s32.totalorder %s139, %s141
      %p145 = scmp.eq.s32.totalorder %s21, 0
      %p146 = por %p144, %p145
      %p147 = scmp.ne.s32.totalorder %s139, %s141
      %p148 = scmp.eq.s32.totalorder %s26, 1
      %p149 = por %p147, %p148
      %p150 = scmp.ne.s32.totalorder %s141, %s142
      %p151 = scmp.eq.s32.totalorder %s26, 0
      %p152 = por %p150, %p151
      %p153 = scmp.ne.s32.totalorder %s141, %s142
      %p154 = scmp.eq.s32.totalorder %s27, 1
      %p155 = por %p153, %p154
      %p157 = scmp.ne.s32.totalorder %s142, %s156
      %p158 = scmp.eq.s32.totalorder %s27, 0
      %p159 = por %p157, %p158
      %s161 = sadd.s32 %s160, 1
      %p164 = scmp.eq.s32.totalorder %s21, 1
      %p165 = scmp.ne.s32.totalorder %s160, %s162
      %p166 = scmp.eq.s32.totalorder %s21, 0
      %p167 = por %p165, %p166
      %p168 = scmp.ne.s32.totalorder %s160, %s162
      %p169 = scmp.eq.s32.totalorder %s26, 1
      %p170 = por %p168, %p169
      %p171 = scmp.ne.s32.totalorder %s162, %s163
      %p172 = scmp.eq.s32.totalorder %s26, 0
      %p173 = por %p171, %p172
      %p174 = scmp.ne.s32.totalorder %s162, %s163
      %p175 = scmp.eq.s32.totalorder %s27, 1
      %p176 = por %p174, %p175
      %p178 = scmp.ne.s32.totalorder %s163, %s177
      %p179 = scmp.eq.s32.totalorder %s27, 0
      %p180 = por %p178, %p179
      %s182 = sadd.s32 %s181, 1
      %p185 = scmp.eq.s32.totalorder %s21, 1
      %p186 = scmp.ne.s32.totalorder %s181, %s183
      %p187 = scmp.eq.s32.totalorder %s21, 0
      %p188 = por %p186, %p187
      %p189 = scmp.ne.s32.totalorder %s181, %s183
      %p190 = scmp.eq.s32.totalorder %s26, 1
      %p191 = por %p189, %p190
      %p192 = scmp.ne.s32.totalorder %s183, %s184
      %p193 = scmp.eq.s32.totalorder %s26, 0
      %p194 = por %p192, %p193
      %p195 = scmp.ne.s32.totalorder %s183, %s184
      %p196 = scmp.eq.s32.totalorder %s27, 1
      %p197 = por %p195, %p196
      %p199 = scmp.ne.s32.totalorder %s184, %s198
      %p200 = scmp.eq.s32.totalorder %s27, 0
      %p201 = por %p199, %p200
      %s203 = sadd.s32 %s202, 1
      %p206 = scmp.eq.s32.totalorder %s21, 1
      %p207 = scmp.ne.s32.totalorder %s202, %s204
      %p208 = scmp.eq.s32.totalorder %s21, 0
      %p209 = por %p207, %p208
      %p210 = scmp.ne.s32.totalorder %s202, %s204
      %p211 = scmp.eq.s32.totalorder %s26, 1
      %p212 = por %p210, %p211
      %p213 = scmp.ne.s32.totalorder %s204, %s205
      %p214 = scmp.eq.s32.totalorder %s26, 0
      %p215 = por %p213, %p214
      %p216 = scmp.ne.s32.totalorder %s204, %s205
      %p217 = scmp.eq.s32.totalorder %s27, 1
      %p218 = por %p216, %p217
      %p220 = scmp.ne.s32.totalorder %s205, %s219
      %p221 = scmp.eq.s32.totalorder %s27, 0
      %p222 = por %p220, %p221
      %s224 = sadd.s32 %s223, 1
      %p227 = scmp.eq.s32.totalorder %s21, 1
      %p228 = scmp.ne.s32.totalorder %s223, %s225
      %p229 = scmp.eq.s32.totalorder %s21, 0
      %p230 = por %p228, %p229
      %p231 = scmp.ne.s32.totalorder %s223, %s225
      %p232 = scmp.eq.s32.totalorder %s26, 1
      %p233 = por %p231, %p232
      %p234 = scmp.ne.s32.totalorder %s225, %s226
      %p235 = scmp.eq.s32.totalorder %s26, 0
      %p236 = por %p234, %p235
      %p237 = scmp.ne.s32.totalorder %s225, %s226
      %p238 = scmp.eq.s32.totalorder %s27, 1
      %p239 = por %p237, %p238
      %p241 = scmp.ne.s32.totalorder %s226, %s240
      %p242 = scmp.eq.s32.totalorder %s27, 0
      %p243 = por %p241, %p242
      %s245 = sadd.s32 %s244, 1
      %p248 = scmp.eq.s32.totalorder %s21, 1
      %p249 = scmp.ne.s32.totalorder %s244, %s246
      %p250 = scmp.eq.s32.totalorder %s21, 0
      %p251 = por %p249, %p250
      %p252 = scmp.ne.s32.totalorder %s244, %s246
      %p253 = scmp.eq.s32.totalorder %s26, 1
      %p254 = por %p252, %p253
      %p255 = scmp.ne.s32.totalorder %s246, %s247
      %p256 = scmp.eq.s32.totalorder %s26, 0
      %p257 = por %p255, %p256
      %p258 = scmp.ne.s32.totalorder %s246, %s247
      %p259 = scmp.eq.s32.totalorder %s27, 1
      %p260 = por %p258, %p259
      %p262 = scmp.ne.s32.totalorder %s247, %s261
      %p263 = scmp.eq.s32.totalorder %s27, 0
      %p264 = por %p262, %p263
      %s266 = sadd.s32 %s265, 1
      %p269 = scmp.eq.s32.totalorder %s21, 1
      %p270 = scmp.ne.s32.totalorder %s265, %s267
      %p271 = scmp.eq.s32.totalorder %s21, 0
      %p272 = por %p270, %p271
      %p273 = scmp.ne.s32.totalorder %s265, %s267
      %p274 = scmp.eq.s32.totalorder %s26, 1
      %p275 = por %p273, %p274
      %p276 = scmp.ne.s32.totalorder %s267, %s268
      %p277 = scmp.eq.s32.totalorder %s26, 0
      %p278 = por %p276, %p277
      %p279 = scmp.ne.s32.totalorder %s267, %s268
      %p280 = scmp.eq.s32.totalorder %s27, 1
      %p281 = por %p279, %p280
      %p283 = scmp.ne.s32.totalorder %s268, %s282
      %p284 = scmp.eq.s32.totalorder %s27, 0
      %p285 = por %p283, %p284
      %s287 = sadd.s32 %s286, 1
      %p290 = scmp.eq.s32.totalorder %s21, 1
      %p291 = scmp.ne.s32.totalorder %s286, %s288
      %p292 = scmp.eq.s32.totalorder %s21, 0
      %p293 = por %p291, %p292
      %p294 = scmp.ne.s32.totalorder %s286, %s288
      %p295 = scmp.eq.s32.totalorder %s26, 1
      %p296 = por %p294, %p295
      %p297 = scmp.ne.s32.totalorder %s288, %s289
      %p298 = scmp.eq.s32.totalorder %s26, 0
      %p299 = por %p297, %p298
      %p300 = scmp.ne.s32.totalorder %s288, %s289
      %p301 = scmp.eq.s32.totalorder %s27, 1
      %p302 = por %p300, %p301
      %p304 = scmp.ne.s32.totalorder %s289, %s303
      %p305 = scmp.eq.s32.totalorder %s27, 0
      %p306 = por %p304, %p305
      %s307 = ssub.s32 %s21, %s28
      %p308 = scmp.eq.s32.totalorder %s307, 0
      %s310 = sadd.s32 %s309, 1
      %s311 = scalar_select %p308, %s309, %s310
      %p314 = pneg %p308
      %p315 = scmp.eq.s32.totalorder %s21, 1
      %p316 = por %p314, %p315
      %p317 = scmp.ne.s32.totalorder %s309, %s312
      %p318 = scmp.eq.s32.totalorder %s21, 0
      %p319 = por %p317, %p318
      %p320 = scmp.ne.s32.totalorder %s309, %s312
      %p321 = scmp.eq.s32.totalorder %s26, 1
      %p322 = por %p320, %p321
      %p323 = scmp.ne.s32.totalorder %s312, %s313
      %p324 = scmp.eq.s32.totalorder %s26, 0
      %p325 = por %p323, %p324
      %p326 = scmp.ne.s32.totalorder %s312, %s313
      %p327 = scmp.eq.s32.totalorder %s27, 1
      %p328 = por %p326, %p327
      %p330 = scmp.ne.s32.totalorder %s313, %s329
      %p331 = scmp.eq.s32.totalorder %s27, 0
      %p332 = por %p330, %p331
      %p333 = scmp.le.s32.totalorder 1, %s21
      %p334 = scmp.lt.s32.totalorder %s21, 3
      %p335 = pnand %p333, %p334
      %p336 = pneg %p335
      // Predicated region
      $region9: #{prompt_tts_forward.3} parent=5 // pred_check
        _
      $region10: #{prompt_tts_forward.3} parent=5 // pred_check_branch
        %338 = sbr.rel (%p335) target = $region12
      $region11: #{prompt_tts_forward.3} parent=5 // pred_region
        %s339 = ssub.s32 %s21, 1
        // Predicated region
        $region13: #{prompt_tts_forward.3} parent=11 // pred_check
          %p340 = pneg %p68
        $region14: #{prompt_tts_forward.3} parent=11 // pred_check_branch
          %342 = sbr.rel (%p340) target = $region16
        $region15: #{prompt_tts_forward.3} parent=11 // pred_region
          _
        $region16: #{prompt_tts_forward.3} parent=11 // pred_fallthru
          _
        // Predicated region
        $region17: #{prompt_tts_forward.3} parent=11 // pred_check
          %p343 = pneg %p89
        $region18: #{prompt_tts_forward.3} parent=11 // pred_check_branch
          %345 = sbr.rel (%p343) target = $region20
        $region19: #{prompt_tts_forward.3} parent=11 // pred_region
          _
        $region20: #{prompt_tts_forward.3} parent=11 // pred_fallthru
          _
        // Predicated region
        $region21: #{prompt_tts_forward.3} parent=11 // pred_check
          %p346 = pneg %p110
        $region22: #{prompt_tts_forward.3} parent=11 // pred_check_branch
          %348 = sbr.rel (%p346) target = $region24
        $region23: #{prompt_tts_forward.3} parent=11 // pred_region
          %s350 = ssub.s32 512, 512
          %351 = vsyncadd [#allocation3], %s350
          %s352 = sshll.u32 [#allocation2], 4
          %s353 = int_to_ptr.vmem [resolvable:$true] %s352
          %358 = dma.hbm_to_vmem [thread:$0]  %s3, 512, %s353, [#allocation3], 128, 128, 8
        $region24: #{prompt_tts_forward.3} parent=11 // pred_fallthru
          _
        // Predicated region
        $region25: #{prompt_tts_forward.3} parent=11 // pred_check
          %p359 = pneg %p131
        $region26: #{prompt_tts_forward.3} parent=11 // pred_check_branch
          %361 = sbr.rel (%p359) target = $region28
        $region27: #{prompt_tts_forward.3} parent=11 // pred_region
          _
        $region28: #{prompt_tts_forward.3} parent=11 // pred_fallthru
          _
        // Predicated region
        $region29: #{prompt_tts_forward.3} parent=11 // pred_check
          %p362 = pneg %p152
        $region30: #{prompt_tts_forward.3} parent=11 // pred_check_branch
          %364 = sbr.rel (%p362) target = $region32
        $region31: #{prompt_tts_forward.3} parent=11 // pred_region
          _
        $region32: #{prompt_tts_forward.3} parent=11 // pred_fallthru
          _
        // Predicated region
        $region33: #{prompt_tts_forward.3} parent=11 // pred_check
          %p365 = pneg %p173
        $region34: #{prompt_tts_forward.3} parent=11 // pred_check_branch
          %367 = sbr.rel (%p365) target = $region36
        $region35: #{prompt_tts_forward.3} parent=11 // pred_region
          _
        $region36: #{prompt_tts_forward.3} parent=11 // pred_fallthru
          _
        // Predicated region
        $region37: #{prompt_tts_forward.3} parent=11 // pred_check
          %p368 = pneg %p194
        $region38: #{prompt_tts_forward.3} parent=11 // pred_check_branch
          %370 = sbr.rel (%p368) target = $region40
        $region39: #{prompt_tts_forward.3} parent=11 // pred_region
          %s372 = ssub.s32 512, 512
          %373 = vsyncadd [#allocation5], %s372
          %s374 = sshll.u32 [#allocation4], 4
          %s375 = int_to_ptr.vmem [resolvable:$true] %s374
          %380 = dma.hbm_to_vmem [thread:$0]  %s7, 512, %s375, [#allocation5], 128, 128, 8
        $region40: #{prompt_tts_forward.3} parent=11 // pred_fallthru
          _
        // Predicated region
        $region41: #{prompt_tts_forward.3} parent=11 // pred_check
          %p381 = pneg %p215
        $region42: #{prompt_tts_forward.3} parent=11 // pred_check_branch
          %383 = sbr.rel (%p381) target = $region44
        $region43: #{prompt_tts_forward.3} parent=11 // pred_region
          _
        $region44: #{prompt_tts_forward.3} parent=11 // pred_fallthru
          _
        // Predicated region
        $region45: #{prompt_tts_forward.3} parent=11 // pred_check
          %p384 = pneg %p236
        $region46: #{prompt_tts_forward.3} parent=11 // pred_check_branch
          %386 = sbr.rel (%p384) target = $region48
        $region47: #{prompt_tts_forward.3} parent=11 // pred_region
          %s388 = ssub.s32 1024, 1024
          %389 = vsyncadd [#allocation5], %s388
          %s390 = sshll.u32 [#allocation6], 4
          %s391 = int_to_ptr.vmem [resolvable:$true] %s390
          %396 = dma.hbm_to_vmem [thread:$0]  %s9, 1024, %s391, [#allocation5], 128, 128, 8
        $region48: #{prompt_tts_forward.3} parent=11 // pred_fallthru
          _
        // Predicated region
        $region49: #{prompt_tts_forward.3} parent=11 // pred_check
          %p397 = pneg %p257
        $region50: #{prompt_tts_forward.3} parent=11 // pred_check_branch
          %399 = sbr.rel (%p397) target = $region52
        $region51: #{prompt_tts_forward.3} parent=11 // pred_region
          _
        $region52: #{prompt_tts_forward.3} parent=11 // pred_fallthru
          _
        // Predicated region
        $region53: #{prompt_tts_forward.3} parent=11 // pred_check
          %p400 = pneg %p278
        $region54: #{prompt_tts_forward.3} parent=11 // pred_check_branch
          %402 = sbr.rel (%p400) target = $region56
        $region55: #{prompt_tts_forward.3} parent=11 // pred_region
          _
        $region56: #{prompt_tts_forward.3} parent=11 // pred_fallthru
          _
        // Predicated region
        $region57: #{prompt_tts_forward.3} parent=11 // pred_check
          %p403 = pneg %p299
        $region58: #{prompt_tts_forward.3} parent=11 // pred_check_branch
          %405 = sbr.rel (%p403) target = $region60
        $region59: #{prompt_tts_forward.3} parent=11 // pred_region
          _
        $region60: #{prompt_tts_forward.3} parent=11 // pred_fallthru
          _
      $region12: #{prompt_tts_forward.3} parent=5 // pred_fallthru
        _
      %p406 = scmp.lt.s32.totalorder %s21, 2
      // Predicated region
      $region61: #{prompt_tts_forward.3} parent=5 // pred_check
        %p407 = pneg %p406
      $region62: #{prompt_tts_forward.3} parent=5 // pred_check_branch
        %409 = sbr.rel (%p407) target = $region64
      $region63: #{prompt_tts_forward.3} parent=5 // pred_region
        // Predicated region
        $region65: #{prompt_tts_forward.3} parent=63 // pred_check
          %p410 = pneg %p41
        $region66: #{prompt_tts_forward.3} parent=63 // pred_check_branch
          %412 = sbr.rel (%p410) target = $region68
        $region67: #{prompt_tts_forward.3} parent=63 // pred_region
          %p413 = scmp.lt.s32.totalorder %s21, 1
          %s414 = scalar_select %p413, %s21, 1
          %s415 = smul.addr %s414, 8
          %s416 = scalar_lea.vmem %s0, %s415
        $region68: #{prompt_tts_forward.3} parent=63 // pred_fallthru
          _
      $region64: #{prompt_tts_forward.3} parent=5 // pred_fallthru
        _
      %p417 = scmp.le.s32.totalorder 1, %s21
      %p418 = scmp.lt.s32.totalorder %s21, 3
      %p419 = pnand %p417, %p418
      %p420 = pneg %p419
      // Predicated region
      $region69: #{prompt_tts_forward.3} parent=5 // pred_check
        _
      $region70: #{prompt_tts_forward.3} parent=5 // pred_check_branch
        %422 = sbr.rel (%p419) target = $region72
      $region71: #{prompt_tts_forward.3} parent=5 // pred_region
        %s423 = ssub.s32 %s21, 1
        // Predicated region
        $region73: #{prompt_tts_forward.3} parent=71 // pred_check
          %p424 = pneg %p110
        $region74: #{prompt_tts_forward.3} parent=71 // pred_check_branch
          %426 = sbr.rel (%p424) target = $region76
        $region75: #{prompt_tts_forward.3} parent=71 // pred_region
          %427 = dma.done [#allocation3], 512
        $region76: #{prompt_tts_forward.3} parent=71 // pred_fallthru
          _
        // Predicated region
        $region77: #{prompt_tts_forward.3} parent=71 // pred_check
          %p428 = pneg %p194
        $region78: #{prompt_tts_forward.3} parent=71 // pred_check_branch
          %430 = sbr.rel (%p428) target = $region80
        $region79: #{prompt_tts_forward.3} parent=71 // pred_region
          %431 = dma.done [#allocation5], 512
        $region80: #{prompt_tts_forward.3} parent=71 // pred_fallthru
          _
        // Predicated region
        $region81: #{prompt_tts_forward.3} parent=71 // pred_check
          %p432 = pneg %p236
        $region82: #{prompt_tts_forward.3} parent=71 // pred_check_branch
          %434 = sbr.rel (%p432) target = $region84
        $region83: #{prompt_tts_forward.3} parent=71 // pred_region
          %435 = dma.done [#allocation5], 1024
        $region84: #{prompt_tts_forward.3} parent=71 // pred_fallthru
          _
        %p436 = scmp.lt.s32.totalorder %s26, 1
        %s437 = scalar_select %p436, %s26, 1
        %s438 = smul.addr %s437, 8
        %s439 = scalar_lea.vmem %s0, %s438
        %p440 = pneg %p47
        %p441 = pneg %p44
        %p442 = pneg %p68
        %p443 = pneg %p65
        %p444 = pneg %p89
        %p445 = pneg %p86
        %p446 = pneg %p110
        %p447 = pneg %p107
        %p448 = pneg %p131
        %p449 = pneg %p128
        %p450 = pneg %p152
        %p451 = pneg %p149
        %p452 = pneg %p173
        %p453 = pneg %p170
        %p454 = pneg %p194
        %p455 = pneg %p191
        %p456 = pneg %p215
        %p457 = pneg %p212
        %p458 = pneg %p236
        %p459 = pneg %p233
        %p460 = pneg %p257
        %p461 = pneg %p254
        %p462 = pneg %p278
        %p463 = pneg %p275
        %p464 = pneg %p299
        %p465 = pneg %p296
        %p466 = pneg %p325
        %p467 = pneg %p322
        %p468 = scmp.lt.s32.totalorder %s26, 1
        %s469 = scalar_select %p468, %s26, 1
        %s470 = smul.addr %s469, 8
        %s471 = scalar_lea.vmem %s13, %s470
        %p472 = scmp.lt.s32.totalorder %s26, 1
        %s473 = scalar_select %p472, %s26, 1
        %s474 = smul.addr %s473, 8
        %s475 = scalar_lea.vmem %s0, %s474
        %p476 = scmp.lt.s32.totalorder %s26, 1
        %s477 = scalar_select %p476, %s26, 1
        %s478 = smul.addr %s477, 8
        %s479 = scalar_lea.vmem %s13, %s478
        %v480 = vld [vmem:[%s475] sm:$0xff]
        %v481 = vld [vmem:[%s1] sm:$0xff]
        %v482 = vld [vmem:[%s1 + $0x8] sm:$0xff]
        %v483 = vld [vmem:[%s1 + $0x10] sm:$0xff]
        %v484 = vld [vmem:[%s1 + $0x18] sm:$0xff]
        %v485 = vld [vmem:[%s2] sm:$0x1]
        %v487 = vlaneseq
        %v488 = vshrl.u32 %v487, 7
        %v489 = vsub.s32 0, %v488
        %v490 = vrot.slane %v485, %v489
        %vm492 = vcmask 261120
        %v494 = vsel %vm492, %v480, 0
        %496 = vmatprep.subr.mxu0 0.0
        %497 = vmatpush1.msra.mxu0 0.0
        %498 = vmatprep.subr.mxu0 0.0
        %499 = vmatpush1.msra.mxu0 0.0
        %500 = vmatprep.subr.mxu0 0.0
        %501 = vmatpush1.msra.mxu0 0.0
        %502 = vmatprep.subr.mxu0 0.0
        %503 = vmatpush1.msra.mxu0 0.0
        %504 = vmatprep.subr.mxu0 0.0
        %505 = vmatpush1.msra.mxu0 0.0
        %506 = vmatprep.subr.mxu0 0.0
        %507 = vmatpush1.msra.mxu0 0.0
        %508 = vmatprep.subr.mxu0 0.0
        %509 = vmatpush1.msra.mxu0 0.0
        %510 = vmatprep.subr.mxu0 0.0
        %511 = vmatpush1.msra.mxu0 0.0
        %512 = vmatprep.subr.mxu0 0.0
        %513 = vmatpush1.msra.mxu0 0.0
        %514 = vmatprep.subr.mxu0 0.0
        %515 = vmatpush1.msra.mxu0 0.0
        %516 = vmatprep.subr.mxu0 0.0
        %517 = vmatpush1.msra.mxu0 0.0
        %518 = vmatprep.subr.mxu0 0.0
        %519 = vmatpush1.msra.mxu0 0.0
        %520 = vmatprep.subr.mxu0 0.0
        %521 = vmatpush1.msra.mxu0 %v484
        %522 = vmatprep.subr.mxu0 0.0
        %523 = vmatpush1.msra.mxu0 %v483
        %524 = vmatprep.subr.mxu0 0.0
        %525 = vmatpush1.msra.mxu0 %v482
        %526 = vmatprep.subr.mxu0 0.0
        %527 = vmatpush1.msra.mxu0 %v481
        %528 = vmatprep.subr.mxu0 0.0
        %529 = vmatpush2.msra.mxu0 0.0
        %530 = vmatprep.subr.mxu0 0.0
        %531 = vmatpush2.msra.mxu0 0.0
        %532 = vmatprep.subr.mxu0 0.0
        %533 = vmatpush2.msra.mxu0 0.0
        %534 = vmatprep.subr.mxu0 0.0
        %535 = vmatpush2.msra.mxu0 0.0
        %536 = vmatprep.subr.mxu0 0.0
        %537 = vmatpush2.msra.mxu0 0.0
        %538 = vmatprep.subr.mxu0 0.0
        %539 = vmatpush2.msra.mxu0 0.0
        %540 = vmatprep.subr.mxu0 0.0
        %541 = vmatpush2.msra.mxu0 0.0
        %542 = vmatprep.subr.mxu0 0.0
        %543 = vmatpush2.msra.mxu0 0.0
        %544 = vmatprep.subr.mxu0 0.0
        %545 = vmatpush2.msra.mxu0 0.0
        %546 = vmatprep.subr.mxu0 0.0
        %547 = vmatpush2.msra.mxu0 0.0
        %548 = vmatprep.subr.mxu0 0.0
        %549 = vmatpush2.msra.mxu0 0.0
        %550 = vmatprep.subr.mxu0 0.0
        %551 = vmatpush2.msra.mxu0 0.0
        %552 = vmatprep.subr.mxu0 0.0
        %553 = vmatpush2.msra.mxu0 0.0
        %554 = vmatprep.subr.mxu0 0.0
        %555 = vmatpush2.msra.mxu0 0.0
        %556 = vmatprep.subr.mxu0 0.0
        %557 = vmatpush2.msra.mxu0 0.0
        %558 = vmatprep.subr.mxu0 0.0
        %559 = vmatpush2.msra.mxu0 0.0
        %560 = vmatprep.mubr.f32.mxu0 0.0
        %561 = vmatmul.mubr.f32.gmra.mxu0 %v494
        %v562 = vpop.f32.mrf.mxu0
        %v563 = vadd.f32 %v490, %v562
        %v564 = vpop.f32.mrf.mxu0
        %565 = vdwg.mxu0
        %567 = vrot.lane.b32.xlu0 %v563, 96
        %v568 = vpop.permute.xlu0 %567
        %v569 = vsel %vm492, %v563, 0
        %v571 = vsel %vm492, %v568, 0
        %573 = vmatprep.subr.mxu0 0.0
        %574 = vmatpush1.xpose.msra.mxu0 0.0
        %575 = vmatprep.subr.mxu0 0.0
        %576 = vmatpush1.xpose.msra.mxu0 0.0
        %577 = vmatprep.subr.mxu0 0.0
        %578 = vmatpush1.xpose.msra.mxu0 0.0
        %579 = vmatprep.subr.mxu0 0.0
        %580 = vmatpush1.xpose.msra.mxu0 0.0
        %581 = vmatprep.subr.mxu0 0.0
        %582 = vmatpush1.xpose.msra.mxu0 0.0
        %583 = vmatprep.subr.mxu0 0.0
        %584 = vmatpush1.xpose.msra.mxu0 0.0
        %585 = vmatprep.subr.mxu0 0.0
        %586 = vmatpush1.xpose.msra.mxu0 0.0
        %587 = vmatprep.subr.mxu0 0.0
        %588 = vmatpush1.xpose.msra.mxu0 0.0
        %589 = vmatprep.subr.mxu0 0.0
        %590 = vmatpush1.xpose.msra.mxu0 0.0
        %591 = vmatprep.subr.mxu0 0.0
        %592 = vmatpush1.xpose.msra.mxu0 0.0
        %593 = vmatprep.subr.mxu0 0.0
        %594 = vmatpush1.xpose.msra.mxu0 0.0
        %595 = vmatprep.subr.mxu0 0.0
        %596 = vmatpush1.xpose.msra.mxu0 0.0
        %597 = vmatprep.subr.mxu0 0.0
        %598 = vmatpush1.xpose.msra.mxu0 0.0
        %599 = vmatprep.subr.mxu0 0.0
        %600 = vmatpush1.xpose.msra.mxu0 0.0
        %601 = vmatprep.subr.mxu0 0.0
        %602 = vmatpush1.xpose.msra.mxu0 0.0
        %603 = vmatprep.subr.mxu0 0.0
        %604 = vmatpush1.xpose.msra.mxu0 %v571
        %605 = vmatprep.subr.mxu0 0.0
        %606 = vmatpush2.xpose.msra.mxu0 0.0
        %607 = vmatprep.subr.mxu0 0.0
        %608 = vmatpush2.xpose.msra.mxu0 0.0
        %609 = vmatprep.subr.mxu0 0.0
        %610 = vmatpush2.xpose.msra.mxu0 0.0
        %611 = vmatprep.subr.mxu0 0.0
        %612 = vmatpush2.xpose.msra.mxu0 0.0
        %613 = vmatprep.subr.mxu0 0.0
        %614 = vmatpush2.xpose.msra.mxu0 0.0
        %615 = vmatprep.subr.mxu0 0.0
        %616 = vmatpush2.xpose.msra.mxu0 0.0
        %617 = vmatprep.subr.mxu0 0.0
        %618 = vmatpush2.xpose.msra.mxu0 0.0
        %619 = vmatprep.subr.mxu0 0.0
        %620 = vmatpush2.xpose.msra.mxu0 0.0
        %621 = vmatprep.subr.mxu0 0.0
        %622 = vmatpush2.xpose.msra.mxu0 0.0
        %623 = vmatprep.subr.mxu0 0.0
        %624 = vmatpush2.xpose.msra.mxu0 0.0
        %625 = vmatprep.subr.mxu0 0.0
        %626 = vmatpush2.xpose.msra.mxu0 0.0
        %627 = vmatprep.subr.mxu0 0.0
        %628 = vmatpush2.xpose.msra.mxu0 0.0
        %629 = vmatprep.subr.mxu0 0.0
        %630 = vmatpush2.xpose.msra.mxu0 0.0
        %631 = vmatprep.subr.mxu0 0.0
        %632 = vmatpush2.xpose.msra.mxu0 0.0
        %633 = vmatprep.subr.mxu0 0.0
        %634 = vmatpush2.xpose.msra.mxu0 0.0
        %635 = vmatprep.subr.mxu0 0.0
        %636 = vmatpush2.xpose.msra.mxu0 0.0
        %637 = vmatprep.mubr.f32.mxu0 0.0
        %638 = vmatmul.mubr.f32.gmra.mxu0 %v569
        %v639 = vpop.f32.mrf.mxu0
        %v640 = vadd.f32 0.0, %v639
        %v641 = vpop.f32.mrf.mxu0
        %642 = vdwg.mxu0
        %v643 = vmul.f32 %v640, 0.17677669
        %vm644 = vcmask 64512
        %v645 = vsel %vm644, %v643, -inf
        %646 = vmax.xlane.f32.xlu0 %v645
        %v647 = vpop.xlane.xlu0 %646
        %v648 = vsub.f32 %v643, %v647
        %v649 = vmul.f32 %v648, 1.442695
        %v650 = vpow.pop %v649
        %v651 = vsel %vm644, %v650, 0.0
        %652 = vadd.xlane.f32.xlu0 %v651
        %v653 = vpop.xlane.xlu0 %652
        %v654 = vrcp.pop %v653
        %v655 = vmul.f32 %v650, %v654
        %656 = vrot.lane.b32.xlu0 %v563, 64
        %v657 = vpop.permute.xlu0 %656
        %v660 = vsel %vm644, %v655, 0
        %662 = vmatprep.subr.mxu0 0.0
        %663 = vmatpush1.msra.mxu0 0.0
        %664 = vmatprep.subr.mxu0 0.0
        %665 = vmatpush1.msra.mxu0 0.0
        %666 = vmatprep.subr.mxu0 0.0
        %667 = vmatpush1.msra.mxu0 0.0
        %668 = vmatprep.subr.mxu0 0.0
        %669 = vmatpush1.msra.mxu0 0.0
        %670 = vmatprep.subr.mxu0 0.0
        %671 = vmatpush1.msra.mxu0 0.0
        %672 = vmatprep.subr.mxu0 0.0
        %673 = vmatpush1.msra.mxu0 0.0
        %674 = vmatprep.subr.mxu0 0.0
        %675 = vmatpush1.msra.mxu0 0.0
        %676 = vmatprep.subr.mxu0 0.0
        %677 = vmatpush1.msra.mxu0 0.0
        %678 = vmatprep.subr.mxu0 0.0
        %679 = vmatpush1.msra.mxu0 0.0
        %680 = vmatprep.subr.mxu0 0.0
        %681 = vmatpush1.msra.mxu0 0.0
        %682 = vmatprep.subr.mxu0 0.0
        %683 = vmatpush1.msra.mxu0 0.0
        %684 = vmatprep.subr.mxu0 0.0
        %685 = vmatpush1.msra.mxu0 0.0
        %686 = vmatprep.subr.mxu0 0.0
        %687 = vmatpush1.msra.mxu0 0.0
        %688 = vmatprep.subr.mxu0 0.0
        %689 = vmatpush1.msra.mxu0 0.0
        %690 = vmatprep.subr.mxu0 0.0
        %691 = vmatpush1.msra.mxu0 0.0
        %692 = vmatprep.subr.mxu0 0.0
        %693 = vmatpush1.msra.mxu0 %v657
        %694 = vmatprep.subr.mxu0 0.0
        %695 = vmatpush2.msra.mxu0 0.0
        %696 = vmatprep.subr.mxu0 0.0
        %697 = vmatpush2.msra.mxu0 0.0
        %698 = vmatprep.subr.mxu0 0.0
        %699 = vmatpush2.msra.mxu0 0.0
        %700 = vmatprep.subr.mxu0 0.0
        %701 = vmatpush2.msra.mxu0 0.0
        %702 = vmatprep.subr.mxu0 0.0
        %703 = vmatpush2.msra.mxu0 0.0
        %704 = vmatprep.subr.mxu0 0.0
        %705 = vmatpush2.msra.mxu0 0.0
        %706 = vmatprep.subr.mxu0 0.0
        %707 = vmatpush2.msra.mxu0 0.0
        %708 = vmatprep.subr.mxu0 0.0
        %709 = vmatpush2.msra.mxu0 0.0
        %710 = vmatprep.subr.mxu0 0.0
        %711 = vmatpush2.msra.mxu0 0.0
        %712 = vmatprep.subr.mxu0 0.0
        %713 = vmatpush2.msra.mxu0 0.0
        %714 = vmatprep.subr.mxu0 0.0
        %715 = vmatpush2.msra.mxu0 0.0
        %716 = vmatprep.subr.mxu0 0.0
        %717 = vmatpush2.msra.mxu0 0.0
        %718 = vmatprep.subr.mxu0 0.0
        %719 = vmatpush2.msra.mxu0 0.0
        %720 = vmatprep.subr.mxu0 0.0
        %721 = vmatpush2.msra.mxu0 0.0
        %722 = vmatprep.subr.mxu0 0.0
        %723 = vmatpush2.msra.mxu0 0.0
        %724 = vmatprep.subr.mxu0 0.0
        %725 = vmatpush2.msra.mxu0 0.0
        %726 = vmatprep.mubr.f32.mxu0 0.0
        %727 = vmatmul.mubr.f32.gmra.mxu0 %v660
        %v728 = vpop.f32.mrf.mxu0
        %v729 = vadd.f32 0.0, %v728
        %v730 = vpop.f32.mrf.mxu0
        %731 = vdwg.mxu0
        %v732 = vld [vmem:[#allocation2] sm:$0xff]
        %v733 = vld [vmem:[#allocation2 + $0x8] sm:$0xff]
        %v734 = vld [vmem:[#allocation2 + $0x10] sm:$0xff]
        %v735 = vld [vmem:[#allocation2 + $0x18] sm:$0xff]
        %v736 = vld [vmem:[%s4] sm:$0x1]
        %v738 = vlaneseq
        %v739 = vshrl.u32 %v738, 7
        %v740 = vsub.s32 0, %v739
        %v741 = vrot.slane %v736, %v740
        %v744 = vsel %vm492, %v729, 0
        %746 = vmatprep.subr.mxu0 0.0
        %747 = vmatpush1.msra.mxu0 0.0
        %748 = vmatprep.subr.mxu0 0.0
        %749 = vmatpush1.msra.mxu0 0.0
        %750 = vmatprep.subr.mxu0 0.0
        %751 = vmatpush1.msra.mxu0 0.0
        %752 = vmatprep.subr.mxu0 0.0
        %753 = vmatpush1.msra.mxu0 0.0
        %754 = vmatprep.subr.mxu0 0.0
        %755 = vmatpush1.msra.mxu0 0.0
        %756 = vmatprep.subr.mxu0 0.0
        %757 = vmatpush1.msra.mxu0 0.0
        %758 = vmatprep.subr.mxu0 0.0
        %759 = vmatpush1.msra.mxu0 0.0
        %760 = vmatprep.subr.mxu0 0.0
        %761 = vmatpush1.msra.mxu0 0.0
        %762 = vmatprep.subr.mxu0 0.0
        %763 = vmatpush1.msra.mxu0 0.0
        %764 = vmatprep.subr.mxu0 0.0
        %765 = vmatpush1.msra.mxu0 0.0
        %766 = vmatprep.subr.mxu0 0.0
        %767 = vmatpush1.msra.mxu0 0.0
        %768 = vmatprep.subr.mxu0 0.0
        %769 = vmatpush1.msra.mxu0 0.0
        %770 = vmatprep.subr.mxu0 0.0
        %771 = vmatpush1.msra.mxu0 %v735
        %772 = vmatprep.subr.mxu0 0.0
        %773 = vmatpush1.msra.mxu0 %v734
        %774 = vmatprep.subr.mxu0 0.0
        %775 = vmatpush1.msra.mxu0 %v733
        %776 = vmatprep.subr.mxu0 0.0
        %777 = vmatpush1.msra.mxu0 %v732
        %778 = vmatprep.subr.mxu0 0.0
        %779 = vmatpush2.msra.mxu0 0.0
        %780 = vmatprep.subr.mxu0 0.0
        %781 = vmatpush2.msra.mxu0 0.0
        %782 = vmatprep.subr.mxu0 0.0
        %783 = vmatpush2.msra.mxu0 0.0
        %784 = vmatprep.subr.mxu0 0.0
        %785 = vmatpush2.msra.mxu0 0.0
        %786 = vmatprep.subr.mxu0 0.0
        %787 = vmatpush2.msra.mxu0 0.0
        %788 = vmatprep.subr.mxu0 0.0
        %789 = vmatpush2.msra.mxu0 0.0
        %790 = vmatprep.subr.mxu0 0.0
        %791 = vmatpush2.msra.mxu0 0.0
        %792 = vmatprep.subr.mxu0 0.0
        %793 = vmatpush2.msra.mxu0 0.0
        %794 = vmatprep.subr.mxu0 0.0
        %795 = vmatpush2.msra.mxu0 0.0
        %796 = vmatprep.subr.mxu0 0.0
        %797 = vmatpush2.msra.mxu0 0.0
        %798 = vmatprep.subr.mxu0 0.0
        %799 = vmatpush2.msra.mxu0 0.0
        %800 = vmatprep.subr.mxu0 0.0
        %801 = vmatpush2.msra.mxu0 0.0
        %802 = vmatprep.subr.mxu0 0.0
        %803 = vmatpush2.msra.mxu0 0.0
        %804 = vmatprep.subr.mxu0 0.0
        %805 = vmatpush2.msra.mxu0 0.0
        %806 = vmatprep.subr.mxu0 0.0
        %807 = vmatpush2.msra.mxu0 0.0
        %808 = vmatprep.subr.mxu0 0.0
        %809 = vmatpush2.msra.mxu0 0.0
        %810 = vmatprep.mubr.f32.mxu0 0.0
        %811 = vmatmul.mubr.f32.gmra.mxu0 %v744
        %v812 = vpop.f32.mrf.mxu0
        %v813 = vadd.f32 %v741, %v812
        %v814 = vpop.f32.mrf.mxu0
        %815 = vdwg.mxu0
        %v816 = vadd.f32 %v480, %v813
        %v817 = vld [vmem:[%s5] sm:$0x1]
        %v818 = vld [vmem:[%s6] sm:$0x1]
        %v819 = vsel %vm492, %v816, 0.0
        %820 = vadd.xlane.f32.xlu0 %v819
        %v821 = vpop.xlane.xlu0 %820
        %v822 = vrcp.pop 32.0
        %v823 = vmul.f32 %v821, %v822
        %v824 = vsub.f32 %v816, %v823
        %v825 = vmul.f32 %v824, %v824
        %v826 = vsel %vm492, %v825, 0.0
        %827 = vadd.xlane.f32.xlu0 %v826
        %v828 = vpop.xlane.xlu0 %827
        %v829 = vmul.f32 %v828, %v822
        %v830 = vadd.f32 %v829, 1e-05
        %v831 = vrsqrt.pop %v830
        %v832 = vmul.f32 %v824, %v831
        %v834 = vlaneseq
        %v835 = vshrl.u32 %v834, 7
        %v836 = vsub.s32 0, %v835
        %v837 = vrot.slane %v817, %v836
        %v839 = vmul.f32 %v832, %v837
        %v841 = vlaneseq
        %v842 = vshrl.u32 %v841, 7
        %v843 = vsub.s32 0, %v842
        %v844 = vrot.slane %v818, %v843
        %v846 = vadd.f32 %v839, %v844
        %v847 = vld [vmem:[#allocation4] sm:$0xff]
        %v848 = vld [vmem:[#allocation4 + $0x8] sm:$0xff]
        %v849 = vld [vmem:[#allocation4 + $0x10] sm:$0xff]
        %v850 = vld [vmem:[#allocation4 + $0x18] sm:$0xff]
        %v851 = vld [vmem:[%s8] sm:$0x1]
        %v853 = vlaneseq
        %v854 = vshrl.u32 %v853, 7
        %v855 = vsub.s32 0, %v854
        %v856 = vrot.slane %v851, %v855
        %v859 = vsel %vm492, %v846, 0
        %861 = vmatprep.subr.mxu0 0.0
        %862 = vmatpush1.msra.mxu0 0.0
        %863 = vmatprep.subr.mxu0 0.0
        %864 = vmatpush1.msra.mxu0 0.0
        %865 = vmatprep.subr.mxu0 0.0
        %866 = vmatpush1.msra.mxu0 0.0
        %867 = vmatprep.subr.mxu0 0.0
        %868 = vmatpush1.msra.mxu0 0.0
        %869 = vmatprep.subr.mxu0 0.0
        %870 = vmatpush1.msra.mxu0 0.0
        %871 = vmatprep.subr.mxu0 0.0
        %872 = vmatpush1.msra.mxu0 0.0
        %873 = vmatprep.subr.mxu0 0.0
        %874 = vmatpush1.msra.mxu0 0.0
        %875 = vmatprep.subr.mxu0 0.0
        %876 = vmatpush1.msra.mxu0 0.0
        %877 = vmatprep.subr.mxu0 0.0
        %878 = vmatpush1.msra.mxu0 0.0
        %879 = vmatprep.subr.mxu0 0.0
        %880 = vmatpush1.msra.mxu0 0.0
        %881 = vmatprep.subr.mxu0 0.0
        %882 = vmatpush1.msra.mxu0 0.0
        %883 = vmatprep.subr.mxu0 0.0
        %884 = vmatpush1.msra.mxu0 0.0
        %885 = vmatprep.subr.mxu0 0.0
        %886 = vmatpush1.msra.mxu0 %v850
        %887 = vmatprep.subr.mxu0 0.0
        %888 = vmatpush1.msra.mxu0 %v849
        %889 = vmatprep.subr.mxu0 0.0
        %890 = vmatpush1.msra.mxu0 %v848
        %891 = vmatprep.subr.mxu0 0.0
        %892 = vmatpush1.msra.mxu0 %v847
        %893 = vmatprep.subr.mxu0 0.0
        %894 = vmatpush2.msra.mxu0 0.0
        %895 = vmatprep.subr.mxu0 0.0
        %896 = vmatpush2.msra.mxu0 0.0
        %897 = vmatprep.subr.mxu0 0.0
        %898 = vmatpush2.msra.mxu0 0.0
        %899 = vmatprep.subr.mxu0 0.0
        %900 = vmatpush2.msra.mxu0 0.0
        %901 = vmatprep.subr.mxu0 0.0
        %902 = vmatpush2.msra.mxu0 0.0
        %903 = vmatprep.subr.mxu0 0.0
        %904 = vmatpush2.msra.mxu0 0.0
        %905 = vmatprep.subr.mxu0 0.0
        %906 = vmatpush2.msra.mxu0 0.0
        %907 = vmatprep.subr.mxu0 0.0
        %908 = vmatpush2.msra.mxu0 0.0
        %909 = vmatprep.subr.mxu0 0.0
        %910 = vmatpush2.msra.mxu0 0.0
        %911 = vmatprep.subr.mxu0 0.0
        %912 = vmatpush2.msra.mxu0 0.0
        %913 = vmatprep.subr.mxu0 0.0
        %914 = vmatpush2.msra.mxu0 0.0
        %915 = vmatprep.subr.mxu0 0.0
        %916 = vmatpush2.msra.mxu0 0.0
        %917 = vmatprep.subr.mxu0 0.0
        %918 = vmatpush2.msra.mxu0 0.0
        %919 = vmatprep.subr.mxu0 0.0
        %920 = vmatpush2.msra.mxu0 0.0
        %921 = vmatprep.subr.mxu0 0.0
        %922 = vmatpush2.msra.mxu0 0.0
        %923 = vmatprep.subr.mxu0 0.0
        %924 = vmatpush2.msra.mxu0 0.0
        %925 = vmatprep.mubr.f32.mxu0 0.0
        %926 = vmatmul.mubr.f32.gmra.mxu0 %v859
        %v927 = vpop.f32.mrf.mxu0
        %v928 = vadd.f32 %v856, %v927
        %v929 = vpop.f32.mrf.mxu0
        %930 = vdwg.mxu0
        %v931 = vmax.f32 %v928, 0.0
        %v932 = vld [vmem:[#allocation6] sm:$0xff]
        %v933 = vld [vmem:[#allocation6 + $0x8] sm:$0xff]
        %v934 = vld [vmem:[#allocation6 + $0x10] sm:$0xff]
        %v935 = vld [vmem:[#allocation6 + $0x18] sm:$0xff]
        %v936 = vld [vmem:[#allocation6 + $0x20] sm:$0xff]
        %v937 = vld [vmem:[#allocation6 + $0x28] sm:$0xff]
        %v938 = vld [vmem:[#allocation6 + $0x30] sm:$0xff]
        %v939 = vld [vmem:[#allocation6 + $0x38] sm:$0xff]
        %v940 = vld [vmem:[%s10] sm:$0x1]
        %v942 = vlaneseq
        %v943 = vshrl.u32 %v942, 7
        %v944 = vsub.s32 0, %v943
        %v945 = vrot.slane %v940, %v944
        %vm947 = vcmask 523264
        %v949 = vsel %vm947, %v931, 0
        %951 = vmatprep.subr.mxu0 0.0
        %952 = vmatpush1.msra.mxu0 0.0
        %953 = vmatprep.subr.mxu0 0.0
        %954 = vmatpush1.msra.mxu0 0.0
        %955 = vmatprep.subr.mxu0 0.0
        %956 = vmatpush1.msra.mxu0 0.0
        %957 = vmatprep.subr.mxu0 0.0
        %958 = vmatpush1.msra.mxu0 0.0
        %959 = vmatprep.subr.mxu0 0.0
        %960 = vmatpush1.msra.mxu0 0.0
        %961 = vmatprep.subr.mxu0 0.0
        %962 = vmatpush1.msra.mxu0 0.0
        %963 = vmatprep.subr.mxu0 0.0
        %964 = vmatpush1.msra.mxu0 0.0
        %965 = vmatprep.subr.mxu0 0.0
        %966 = vmatpush1.msra.mxu0 0.0
        %967 = vmatprep.subr.mxu0 0.0
        %968 = vmatpush1.msra.mxu0 %v939
        %969 = vmatprep.subr.mxu0 0.0
        %970 = vmatpush1.msra.mxu0 %v938
        %971 = vmatprep.subr.mxu0 0.0
        %972 = vmatpush1.msra.mxu0 %v937
        %973 = vmatprep.subr.mxu0 0.0
        %974 = vmatpush1.msra.mxu0 %v936
        %975 = vmatprep.subr.mxu0 0.0
        %976 = vmatpush1.msra.mxu0 %v935
        %977 = vmatprep.subr.mxu0 0.0
        %978 = vmatpush1.msra.mxu0 %v934
        %979 = vmatprep.subr.mxu0 0.0
        %980 = vmatpush1.msra.mxu0 %v933
        %981 = vmatprep.subr.mxu0 0.0
        %982 = vmatpush1.msra.mxu0 %v932
        %983 = vmatprep.subr.mxu0 0.0
        %984 = vmatpush2.msra.mxu0 0.0
        %985 = vmatprep.subr.mxu0 0.0
        %986 = vmatpush2.msra.mxu0 0.0
        %987 = vmatprep.subr.mxu0 0.0
        %988 = vmatpush2.msra.mxu0 0.0
        %989 = vmatprep.subr.mxu0 0.0
        %990 = vmatpush2.msra.mxu0 0.0
        %991 = vmatprep.subr.mxu0 0.0
        %992 = vmatpush2.msra.mxu0 0.0
        %993 = vmatprep.subr.mxu0 0.0
        %994 = vmatpush2.msra.mxu0 0.0
        %995 = vmatprep.subr.mxu0 0.0
        %996 = vmatpush2.msra.mxu0 0.0
        %997 = vmatprep.subr.mxu0 0.0
        %998 = vmatpush2.msra.mxu0 0.0
        %999 = vmatprep.subr.mxu0 0.0
        %1000 = vmatpush2.msra.mxu0 0.0
        %1001 = vmatprep.subr.mxu0 0.0
        %1002 = vmatpush2.msra.mxu0 0.0
        %1003 = vmatprep.subr.mxu0 0.0
        %1004 = vmatpush2.msra.mxu0 0.0
        %1005 = vmatprep.subr.mxu0 0.0
        %1006 = vmatpush2.msra.mxu0 0.0
        %1007 = vmatprep.subr.mxu0 0.0
        %1008 = vmatpush2.msra.mxu0 0.0
        %1009 = vmatprep.subr.mxu0 0.0
        %1010 = vmatpush2.msra.mxu0 0.0
        %1011 = vmatprep.subr.mxu0 0.0
        %1012 = vmatpush2.msra.mxu0 0.0
        %1013 = vmatprep.subr.mxu0 0.0
        %1014 = vmatpush2.msra.mxu0 0.0
        %1015 = vmatprep.mubr.f32.mxu0 0.0
        %1016 = vmatmul.mubr.f32.gmra.mxu0 %v949
        %v1017 = vpop.f32.mrf.mxu0
        %v1018 = vadd.f32 %v945, %v1017
        %v1019 = vpop.f32.mrf.mxu0
        %1020 = vdwg.mxu0
        %v1021 = vadd.f32 %v846, %v1018
        %v1022 = vld [vmem:[%s11] sm:$0x1]
        %v1023 = vld [vmem:[%s12] sm:$0x1]
        %v1024 = vsel %vm492, %v1021, 0.0
        %1025 = vadd.xlane.f32.xlu0 %v1024
        %v1026 = vpop.xlane.xlu0 %1025
        %v1027 = vmul.f32 %v1026, %v822
        %v1028 = vsub.f32 %v1021, %v1027
        %v1029 = vmul.f32 %v1028, %v1028
        %v1030 = vsel %vm492, %v1029, 0.0
        %1031 = vadd.xlane.f32.xlu0 %v1030
        %v1032 = vpop.xlane.xlu0 %1031
        %v1033 = vmul.f32 %v1032, %v822
        %v1034 = vadd.f32 %v1033, 1e-05
        %v1035 = vrsqrt.pop %v1034
        %v1036 = vmul.f32 %v1028, %v1035
        %v1038 = vlaneseq
        %v1039 = vshrl.u32 %v1038, 7
        %v1040 = vsub.s32 0, %v1039
        %v1041 = vrot.slane %v1022, %v1040
        %v1043 = vmul.f32 %v1036, %v1041
        %v1045 = vlaneseq
        %v1046 = vshrl.u32 %v1045, 7
        %v1047 = vsub.s32 0, %v1046
        %v1048 = vrot.slane %v1023, %v1047
        %v1050 = vadd.f32 %v1043, %v1048
        %1051 = vst.msk [vmem:[%s479] sm:$0xff] %vm492, %v1050
        %p1052 = scmp.lt.s32.totalorder %s26, 1
        %s1053 = scalar_select %p1052, %s26, 1
        %s1054 = smul.addr %s1053, 8
        %s1055 = scalar_lea.vmem %s13, %s1054
        // Predicated region
        $region85: #{prompt_tts_forward.3} parent=71 // pred_check
          %p1056 = pneg %p322
        $region86: #{prompt_tts_forward.3} parent=71 // pred_check_branch
          %1058 = sbr.rel (%p1056) target = $region88
        $region87: #{prompt_tts_forward.3} parent=71 // pred_region
          _
        $region88: #{prompt_tts_forward.3} parent=71 // pred_fallthru
          _
      $region72: #{prompt_tts_forward.3} parent=5 // pred_fallthru
        _
      %p1059 = scmp.le.s32.totalorder 2, %s21
      // Predicated region
      $region89: #{prompt_tts_forward.3} parent=5 // pred_check
        %p1060 = pneg %p1059
      $region90: #{prompt_tts_forward.3} parent=5 // pred_check_branch
        %1062 = sbr.rel (%p1060) target = $region92
      $region91: #{prompt_tts_forward.3} parent=5 // pred_region
        %s1063 = ssub.s32 %s21, 2
        // Predicated region
        $region93: #{prompt_tts_forward.3} parent=91 // pred_check
          %p1064 = pneg %p328
        $region94: #{prompt_tts_forward.3} parent=91 // pred_check_branch
          %1066 = sbr.rel (%p1064) target = $region96
        $region95: #{prompt_tts_forward.3} parent=91 // pred_region
          %p1067 = scmp.lt.s32.totalorder %s27, 1
          %s1068 = scalar_select %p1067, %s27, 1
          %s1069 = smul.addr %s1068, 8
          %s1070 = scalar_lea.vmem %s13, %s1069
        $region96: #{prompt_tts_forward.3} parent=91 // pred_fallthru
          _
      $region92: #{prompt_tts_forward.3} parent=5 // pred_fallthru
        _
    $region6: #{prompt_tts_forward.3} parent=1 // loop_footer
      %s25 = sadd.s32 1, %s21
    $region7: #{prompt_tts_forward.3} parent=1 // loop_footer_branch
      %20 = sbr.rel target = $region3
    $region8: #{prompt_tts_forward.3} parent=1 // loop_exit
      _
    %1071 = vsyncpa [#allocation3], 1
    %s1072 = scalar_lea.sflag [#allocation3], 1
    %1073 = vsyncpa %s1072, 1
    %1074 = vsyncpa [#allocation5], 1

// kernel: prompt_tts_forward.5
$region0: #{prompt_tts_forward.5}
  #allocation0 [shape = 'u32[]', space=smem, size = 0x4, offset = 0x4, fixed_abs, tag = 'smem constant byte address 0x4 - core index']
  #allocation1 [shape = 'u32[144,128]{1,0:T(1,128)}', space=vmem, size = 0x12000, scoped, tag = 'internal scratch']
  %s0 = inlined_call_operand.vmem [shape: f32[2,32,32], index: 0, kind: input, shape index: {}]
  %s1 = inlined_call_operand.vmem [shape: f32[32,96], index: 1, kind: input, shape index: {}]
  %s2 = inlined_call_operand.vmem [shape: f32[1,96], index: 2, kind: input, shape index: {}]
  %s3 = inlined_call_operand.vmem [shape: f32[32,32], index: 3, kind: input, shape index: {}]
  %s4 = inlined_call_operand.vmem [shape: f32[1,32], index: 4, kind: input, shape index: {}, may-alias: {4,6,10,12}]
  %s5 = inlined_call_operand.vmem [shape: f32[1,32], index: 5, kind: input, shape index: {}, may-alias: {5,11}]
  %s6 = inlined_call_operand.vmem [shape: f32[1,32], index: 6, kind: input, shape index: {}, may-alias: {4,6,10,12}]
  %s7 = inlined_call_operand.vmem [shape: f32[32,64], index: 7, kind: input, shape index: {}]
  %s8 = inlined_call_operand.vmem [shape: f32[1,64], index: 8, kind: input, shape index: {}]
  %s9 = inlined_call_operand.vmem [shape: f32[64,32], index: 9, kind: input, shape index: {}]
  %s10 = inlined_call_operand.vmem [shape: f32[1,32], index: 10, kind: input, shape index: {}, may-alias: {4,6,10,12}]
  %s11 = inlined_call_operand.vmem [shape: f32[1,32], index: 11, kind: input, shape index: {}, may-alias: {5,11}]
  %s12 = inlined_call_operand.vmem [shape: f32[1,32], index: 12, kind: input, shape index: {}, may-alias: {4,6,10,12}]
  %s13 = inlined_call_operand.vmem [shape: f32[32,16], index: 13, kind: input, shape index: {}]
  %s14 = inlined_call_operand.vmem [shape: f32[1,16], index: 14, kind: input, shape index: {}]
  %s15 = inlined_call_operand.vmem [shape: f32[2,32,16], index: 15, kind: output, shape index: {}]
  %s16 = sld [smem:[#allocation0]]
  $region93: #{prompt_tts_forward.5} parent=0
    _
  %s18 = ssub.s32 1, %s16
  %s19 = scalar_select 0, %s18, %s16
  loop: start=0, step=1, limit=4
  $region2: #{prompt_tts_forward.5} parent=0 // loop_pre_header
    _
  $region3: #{prompt_tts_forward.5} parent=0 // loop_header
    %s21 = sphi 0, %s25
    %p22 = scmp.ge.s32.totalorder %s21, 4
    %s31 = sphi 0, %s33
    %s34 = sphi 0, %s31
    %s35 = sphi 0, %s34
    %s51 = sphi 0, %s35
    %s55 = sphi 0, %s55
    %s57 = sphi 0, %s55
    %s58 = sphi 0, %s57
    %s72 = sphi 0, %s58
    %s76 = sphi 0, %s76
    %s78 = sphi 0, %s76
    %s79 = sphi 0, %s78
    %s93 = sphi 0, %s79
    %s97 = sphi 0, %s97
    %s99 = sphi 0, %s97
    %s100 = sphi 0, %s99
    %s114 = sphi 0, %s100
    %s118 = sphi 0, %s118
    %s120 = sphi 0, %s118
    %s121 = sphi 0, %s120
    %s135 = sphi 0, %s121
    %s139 = sphi 0, %s139
    %s141 = sphi 0, %s139
    %s142 = sphi 0, %s141
    %s156 = sphi 0, %s142
    %s160 = sphi 0, %s160
    %s162 = sphi 0, %s160
    %s163 = sphi 0, %s162
    %s177 = sphi 0, %s163
    %s181 = sphi 0, %s181
    %s183 = sphi 0, %s181
    %s184 = sphi 0, %s183
    %s198 = sphi 0, %s184
    %s202 = sphi 0, %s202
    %s204 = sphi 0, %s202
    %s205 = sphi 0, %s204
    %s219 = sphi 0, %s205
    %s223 = sphi 0, %s223
    %s225 = sphi 0, %s223
    %s226 = sphi 0, %s225
    %s240 = sphi 0, %s226
    %s244 = sphi 0, %s244
    %s246 = sphi 0, %s244
    %s247 = sphi 0, %s246
    %s261 = sphi 0, %s247
    %s265 = sphi 0, %s265
    %s267 = sphi 0, %s265
    %s268 = sphi 0, %s267
    %s282 = sphi 0, %s268
    %s286 = sphi 0, %s286
    %s288 = sphi 0, %s286
    %s289 = sphi 0, %s288
    %s303 = sphi 0, %s289
    %s307 = sphi 0, %s307
    %s309 = sphi 0, %s307
    %s310 = sphi 0, %s309
    %s324 = sphi 0, %s310
    %s328 = sphi 0, %s328
    %s330 = sphi 0, %s328
    %s331 = sphi 0, %s330
    %s345 = sphi 0, %s331
    %s351 = sphi 0, %s353
    %s354 = sphi 0, %s351
    %s355 = sphi 0, %s354
    %s371 = sphi 0, %s355
  $region4: #{prompt_tts_forward.5} parent=0 // loop_header_branch
    %24 = sbr.rel (%p22) target = $region8
  $region5: #{prompt_tts_forward.5} parent=0 // loop_body
    %s26 = ssub.s32 %s21, 1
    %s27 = ssub.s32 %s21, 2
    %s28 = sadd.s32 %s21, 1
    %s29 = ssub.s32 %s21, %s28
    %p30 = scmp.eq.s32.totalorder %s29, 0
    %s32 = sadd.s32 %s31, 1
    %s33 = scalar_select %p30, %s31, %s32
    %p36 = pneg %p30
    %p37 = scmp.eq.s32.totalorder %s21, 1
    %p38 = por %p36, %p37
    %p39 = scmp.ne.s32.totalorder %s31, %s34
    %p40 = scmp.eq.s32.totalorder %s21, 0
    %p41 = por %p39, %p40
    %p42 = scmp.ne.s32.totalorder %s31, %s34
    %p43 = scmp.eq.s32.totalorder %s26, 1
    %p44 = por %p42, %p43
    %p45 = scmp.ne.s32.totalorder %s34, %s35
    %p46 = scmp.eq.s32.totalorder %s26, 0
    %p47 = por %p45, %p46
    %p48 = scmp.ne.s32.totalorder %s34, %s35
    %p49 = scmp.eq.s32.totalorder %s27, 1
    %p50 = por %p48, %p49
    %p52 = scmp.ne.s32.totalorder %s35, %s51
    %p53 = scmp.eq.s32.totalorder %s27, 0
    %p54 = por %p52, %p53
    %s56 = sadd.s32 %s55, 1
    %p59 = scmp.eq.s32.totalorder %s21, 1
    %p60 = scmp.ne.s32.totalorder %s55, %s57
    %p61 = scmp.eq.s32.totalorder %s21, 0
    %p62 = por %p60, %p61
    %p63 = scmp.ne.s32.totalorder %s55, %s57
    %p64 = scmp.eq.s32.totalorder %s26, 1
    %p65 = por %p63, %p64
    %p66 = scmp.ne.s32.totalorder %s57, %s58
    %p67 = scmp.eq.s32.totalorder %s26, 0
    %p68 = por %p66, %p67
    %p69 = scmp.ne.s32.totalorder %s57, %s58
    %p70 = scmp.eq.s32.totalorder %s27, 1
    %p71 = por %p69, %p70
    %p73 = scmp.ne.s32.totalorder %s58, %s72
    %p74 = scmp.eq.s32.totalorder %s27, 0
    %p75 = por %p73, %p74
    %s77 = sadd.s32 %s76, 1
    %p80 = scmp.eq.s32.totalorder %s21, 1
    %p81 = scmp.ne.s32.totalorder %s76, %s78
    %p82 = scmp.eq.s32.totalorder %s21, 0
    %p83 = por %p81, %p82
    %p84 = scmp.ne.s32.totalorder %s76, %s78
    %p85 = scmp.eq.s32.totalorder %s26, 1
    %p86 = por %p84, %p85
    %p87 = scmp.ne.s32.totalorder %s78, %s79
    %p88 = scmp.eq.s32.totalorder %s26, 0
    %p89 = por %p87, %p88
    %p90 = scmp.ne.s32.totalorder %s78, %s79
    %p91 = scmp.eq.s32.totalorder %s27, 1
    %p92 = por %p90, %p91
    %p94 = scmp.ne.s32.totalorder %s79, %s93
    %p95 = scmp.eq.s32.totalorder %s27, 0
    %p96 = por %p94, %p95
    %s98 = sadd.s32 %s97, 1
    %p101 = scmp.eq.s32.totalorder %s21, 1
    %p102 = scmp.ne.s32.totalorder %s97, %s99
    %p103 = scmp.eq.s32.totalorder %s21, 0
    %p104 = por %p102, %p103
    %p105 = scmp.ne.s32.totalorder %s97, %s99
    %p106 = scmp.eq.s32.totalorder %s26, 1
    %p107 = por %p105, %p106
    %p108 = scmp.ne.s32.totalorder %s99, %s100
    %p109 = scmp.eq.s32.totalorder %s26, 0
    %p110 = por %p108, %p109
    %p111 = scmp.ne.s32.totalorder %s99, %s100
    %p112 = scmp.eq.s32.totalorder %s27, 1
    %p113 = por %p111, %p112
    %p115 = scmp.ne.s32.totalorder %s100, %s114
    %p116 = scmp.eq.s32.totalorder %s27, 0
    %p117 = por %p115, %p116
    %s119 = sadd.s32 %s118, 1
    %p122 = scmp.eq.s32.totalorder %s21, 1
    %p123 = scmp.ne.s32.totalorder %s118, %s120
    %p124 = scmp.eq.s32.totalorder %s21, 0
    %p125 = por %p123, %p124
    %p126 = scmp.ne.s32.totalorder %s118, %s120
    %p127 = scmp.eq.s32.totalorder %s26, 1
    %p128 = por %p126, %p127
    %p129 = scmp.ne.s32.totalorder %s120, %s121
    %p130 = scmp.eq.s32.totalorder %s26, 0
    %p131 = por %p129, %p130
    %p132 = scmp.ne.s32.totalorder %s120, %s121
    %p133 = scmp.eq.s32.totalorder %s27, 1
    %p134 = por %p132, %p133
    %p136 = scmp.ne.s32.totalorder %s121, %s135
    %p137 = scmp.eq.s32.totalorder %s27, 0
    %p138 = por %p136, %p137
    %s140 = sadd.s32 %s139, 1
    %p143 = scmp.eq.s32.totalorder %s21, 1
    %p144 = scmp.ne.s32.totalorder %s139, %s141
    %p145 = scmp.eq.s32.totalorder %s21, 0
    %p146 = por %p144, %p145
    %p147 = scmp.ne.s32.totalorder %s139, %s141
    %p148 = scmp.eq.s32.totalorder %s26, 1
    %p149 = por %p147, %p148
    %p150 = scmp.ne.s32.totalorder %s141, %s142
    %p151 = scmp.eq.s32.totalorder %s26, 0
    %p152 = por %p150, %p151
    %p153 = scmp.ne.s32.totalorder %s141, %s142
    %p154 = scmp.eq.s32.totalorder %s27, 1
    %p155 = por %p153, %p154
    %p157 = scmp.ne.s32.totalorder %s142, %s156
    %p158 = scmp.eq.s32.totalorder %s27, 0
    %p159 = por %p157, %p158
    %s161 = sadd.s32 %s160, 1
    %p164 = scmp.eq.s32.totalorder %s21, 1
    %p165 = scmp.ne.s32.totalorder %s160, %s162
    %p166 = scmp.eq.s32.totalorder %s21, 0
    %p167 = por %p165, %p166
    %p168 = scmp.ne.s32.totalorder %s160, %s162
    %p169 = scmp.eq.s32.totalorder %s26, 1
    %p170 = por %p168, %p169
    %p171 = scmp.ne.s32.totalorder %s162, %s163
    %p172 = scmp.eq.s32.totalorder %s26, 0
    %p173 = por %p171, %p172
    %p174 = scmp.ne.s32.totalorder %s162, %s163
    %p175 = scmp.eq.s32.totalorder %s27, 1
    %p176 = por %p174, %p175
    %p178 = scmp.ne.s32.totalorder %s163, %s177
    %p179 = scmp.eq.s32.totalorder %s27, 0
    %p180 = por %p178, %p179
    %s182 = sadd.s32 %s181, 1
    %p185 = scmp.eq.s32.totalorder %s21, 1
    %p186 = scmp.ne.s32.totalorder %s181, %s183
    %p187 = scmp.eq.s32.totalorder %s21, 0
    %p188 = por %p186, %p187
    %p189 = scmp.ne.s32.totalorder %s181, %s183
    %p190 = scmp.eq.s32.totalorder %s26, 1
    %p191 = por %p189, %p190
    %p192 = scmp.ne.s32.totalorder %s183, %s184
    %p193 = scmp.eq.s32.totalorder %s26, 0
    %p194 = por %p192, %p193
    %p195 = scmp.ne.s32.totalorder %s183, %s184
    %p196 = scmp.eq.s32.totalorder %s27, 1
    %p197 = por %p195, %p196
    %p199 = scmp.ne.s32.totalorder %s184, %s198
    %p200 = scmp.eq.s32.totalorder %s27, 0
    %p201 = por %p199, %p200
    %s203 = sadd.s32 %s202, 1
    %p206 = scmp.eq.s32.totalorder %s21, 1
    %p207 = scmp.ne.s32.totalorder %s202, %s204
    %p208 = scmp.eq.s32.totalorder %s21, 0
    %p209 = por %p207, %p208
    %p210 = scmp.ne.s32.totalorder %s202, %s204
    %p211 = scmp.eq.s32.totalorder %s26, 1
    %p212 = por %p210, %p211
    %p213 = scmp.ne.s32.totalorder %s204, %s205
    %p214 = scmp.eq.s32.totalorder %s26, 0
    %p215 = por %p213, %p214
    %p216 = scmp.ne.s32.totalorder %s204, %s205
    %p217 = scmp.eq.s32.totalorder %s27, 1
    %p218 = por %p216, %p217
    %p220 = scmp.ne.s32.totalorder %s205, %s219
    %p221 = scmp.eq.s32.totalorder %s27, 0
    %p222 = por %p220, %p221
    %s224 = sadd.s32 %s223, 1
    %p227 = scmp.eq.s32.totalorder %s21, 1
    %p228 = scmp.ne.s32.totalorder %s223, %s225
    %p229 = scmp.eq.s32.totalorder %s21, 0
    %p230 = por %p228, %p229
    %p231 = scmp.ne.s32.totalorder %s223, %s225
    %p232 = scmp.eq.s32.totalorder %s26, 1
    %p233 = por %p231, %p232
    %p234 = scmp.ne.s32.totalorder %s225, %s226
    %p235 = scmp.eq.s32.totalorder %s26, 0
    %p236 = por %p234, %p235
    %p237 = scmp.ne.s32.totalorder %s225, %s226
    %p238 = scmp.eq.s32.totalorder %s27, 1
    %p239 = por %p237, %p238
    %p241 = scmp.ne.s32.totalorder %s226, %s240
    %p242 = scmp.eq.s32.totalorder %s27, 0
    %p243 = por %p241, %p242
    %s245 = sadd.s32 %s244, 1
    %p248 = scmp.eq.s32.totalorder %s21, 1
    %p249 = scmp.ne.s32.totalorder %s244, %s246
    %p250 = scmp.eq.s32.totalorder %s21, 0
    %p251 = por %p249, %p250
    %p252 = scmp.ne.s32.totalorder %s244, %s246
    %p253 = scmp.eq.s32.totalorder %s26, 1
    %p254 = por %p252, %p253
    %p255 = scmp.ne.s32.totalorder %s246, %s247
    %p256 = scmp.eq.s32.totalorder %s26, 0
    %p257 = por %p255, %p256
    %p258 = scmp.ne.s32.totalorder %s246, %s247
    %p259 = scmp.eq.s32.totalorder %s27, 1
    %p260 = por %p258, %p259
    %p262 = scmp.ne.s32.totalorder %s247, %s261
    %p263 = scmp.eq.s32.totalorder %s27, 0
    %p264 = por %p262, %p263
    %s266 = sadd.s32 %s265, 1
    %p269 = scmp.eq.s32.totalorder %s21, 1
    %p270 = scmp.ne.s32.totalorder %s265, %s267
    %p271 = scmp.eq.s32.totalorder %s21, 0
    %p272 = por %p270, %p271
    %p273 = scmp.ne.s32.totalorder %s265, %s267
    %p274 = scmp.eq.s32.totalorder %s26, 1
    %p275 = por %p273, %p274
    %p276 = scmp.ne.s32.totalorder %s267, %s268
    %p277 = scmp.eq.s32.totalorder %s26, 0
    %p278 = por %p276, %p277
    %p279 = scmp.ne.s32.totalorder %s267, %s268
    %p280 = scmp.eq.s32.totalorder %s27, 1
    %p281 = por %p279, %p280
    %p283 = scmp.ne.s32.totalorder %s268, %s282
    %p284 = scmp.eq.s32.totalorder %s27, 0
    %p285 = por %p283, %p284
    %s287 = sadd.s32 %s286, 1
    %p290 = scmp.eq.s32.totalorder %s21, 1
    %p291 = scmp.ne.s32.totalorder %s286, %s288
    %p292 = scmp.eq.s32.totalorder %s21, 0
    %p293 = por %p291, %p292
    %p294 = scmp.ne.s32.totalorder %s286, %s288
    %p295 = scmp.eq.s32.totalorder %s26, 1
    %p296 = por %p294, %p295
    %p297 = scmp.ne.s32.totalorder %s288, %s289
    %p298 = scmp.eq.s32.totalorder %s26, 0
    %p299 = por %p297, %p298
    %p300 = scmp.ne.s32.totalorder %s288, %s289
    %p301 = scmp.eq.s32.totalorder %s27, 1
    %p302 = por %p300, %p301
    %p304 = scmp.ne.s32.totalorder %s289, %s303
    %p305 = scmp.eq.s32.totalorder %s27, 0
    %p306 = por %p304, %p305
    %s308 = sadd.s32 %s307, 1
    %p311 = scmp.eq.s32.totalorder %s21, 1
    %p312 = scmp.ne.s32.totalorder %s307, %s309
    %p313 = scmp.eq.s32.totalorder %s21, 0
    %p314 = por %p312, %p313
    %p315 = scmp.ne.s32.totalorder %s307, %s309
    %p316 = scmp.eq.s32.totalorder %s26, 1
    %p317 = por %p315, %p316
    %p318 = scmp.ne.s32.totalorder %s309, %s310
    %p319 = scmp.eq.s32.totalorder %s26, 0
    %p320 = por %p318, %p319
    %p321 = scmp.ne.s32.totalorder %s309, %s310
    %p322 = scmp.eq.s32.totalorder %s27, 1
    %p323 = por %p321, %p322
    %p325 = scmp.ne.s32.totalorder %s310, %s324
    %p326 = scmp.eq.s32.totalorder %s27, 0
    %p327 = por %p325, %p326
    %s329 = sadd.s32 %s328, 1
    %p332 = scmp.eq.s32.totalorder %s21, 1
    %p333 = scmp.ne.s32.totalorder %s328, %s330
    %p334 = scmp.eq.s32.totalorder %s21, 0
    %p335 = por %p333, %p334
    %p336 = scmp.ne.s32.totalorder %s328, %s330
    %p337 = scmp.eq.s32.totalorder %s26, 1
    %p338 = por %p336, %p337
    %p339 = scmp.ne.s32.totalorder %s330, %s331
    %p340 = scmp.eq.s32.totalorder %s26, 0
    %p341 = por %p339, %p340
    %p342 = scmp.ne.s32.totalorder %s330, %s331
    %p343 = scmp.eq.s32.totalorder %s27, 1
    %p344 = por %p342, %p343
    %p346 = scmp.ne.s32.totalorder %s331, %s345
    %p347 = scmp.eq.s32.totalorder %s27, 0
    %p348 = por %p346, %p347
    %s349 = ssub.s32 %s21, %s28
    %p350 = scmp.eq.s32.totalorder %s349, 0
    %s352 = sadd.s32 %s351, 1
    %s353 = scalar_select %p350, %s351, %s352
    %p356 = pneg %p350
    %p357 = scmp.eq.s32.totalorder %s21, 1
    %p358 = por %p356, %p357
    %p359 = scmp.ne.s32.totalorder %s351, %s354
    %p360 = scmp.eq.s32.totalorder %s21, 0
    %p361 = por %p359, %p360
    %p362 = scmp.ne.s32.totalorder %s351, %s354
    %p363 = scmp.eq.s32.totalorder %s26, 1
    %p364 = por %p362, %p363
    %p365 = scmp.ne.s32.totalorder %s354, %s355
    %p366 = scmp.eq.s32.totalorder %s26, 0
    %p367 = por %p365, %p366
    %p368 = scmp.ne.s32.totalorder %s354, %s355
    %p369 = scmp.eq.s32.totalorder %s27, 1
    %p370 = por %p368, %p369
    %p372 = scmp.ne.s32.totalorder %s355, %s371
    %p373 = scmp.eq.s32.totalorder %s27, 0
    %p374 = por %p372, %p373
    %p375 = scmp.le.s32.totalorder 1, %s21
    %p376 = scmp.lt.s32.totalorder %s21, 3
    %p377 = pnand %p375, %p376
    %p378 = pneg %p377
    // Predicated region
    $region9: #{prompt_tts_forward.5} parent=5 // pred_check
      _
    $region10: #{prompt_tts_forward.5} parent=5 // pred_check_branch
      %380 = sbr.rel (%p377) target = $region12
    $region11: #{prompt_tts_forward.5} parent=5 // pred_region
      %s381 = ssub.s32 %s21, 1
      // Predicated region
      $region13: #{prompt_tts_forward.5} parent=11 // pred_check
        %p382 = pneg %p68
      $region14: #{prompt_tts_forward.5} parent=11 // pred_check_branch
        %384 = sbr.rel (%p382) target = $region16
      $region15: #{prompt_tts_forward.5} parent=11 // pred_region
        _
      $region16: #{prompt_tts_forward.5} parent=11 // pred_fallthru
        _
      // Predicated region
      $region17: #{prompt_tts_forward.5} parent=11 // pred_check
        %p385 = pneg %p89
      $region18: #{prompt_tts_forward.5} parent=11 // pred_check_branch
        %387 = sbr.rel (%p385) target = $region20
      $region19: #{prompt_tts_forward.5} parent=11 // pred_region
        _
      $region20: #{prompt_tts_forward.5} parent=11 // pred_fallthru
        _
      // Predicated region
      $region21: #{prompt_tts_forward.5} parent=11 // pred_check
        %p388 = pneg %p110
      $region22: #{prompt_tts_forward.5} parent=11 // pred_check_branch
        %390 = sbr.rel (%p388) target = $region24
      $region23: #{prompt_tts_forward.5} parent=11 // pred_region
        _
      $region24: #{prompt_tts_forward.5} parent=11 // pred_fallthru
        _
      // Predicated region
      $region25: #{prompt_tts_forward.5} parent=11 // pred_check
        %p391 = pneg %p131
      $region26: #{prompt_tts_forward.5} parent=11 // pred_check_branch
        %393 = sbr.rel (%p391) target = $region28
      $region27: #{prompt_tts_forward.5} parent=11 // pred_region
        _
      $region28: #{prompt_tts_forward.5} parent=11 // pred_fallthru
        _
      // Predicated region
      $region29: #{prompt_tts_forward.5} parent=11 // pred_check
        %p394 = pneg %p152
      $region30: #{prompt_tts_forward.5} parent=11 // pred_check_branch
        %396 = sbr.rel (%p394) target = $region32
      $region31: #{prompt_tts_forward.5} parent=11 // pred_region
        _
      $region32: #{prompt_tts_forward.5} parent=11 // pred_fallthru
        _
      // Predicated region
      $region33: #{prompt_tts_forward.5} parent=11 // pred_check
        %p397 = pneg %p173
      $region34: #{prompt_tts_forward.5} parent=11 // pred_check_branch
        %399 = sbr.rel (%p397) target = $region36
      $region35: #{prompt_tts_forward.5} parent=11 // pred_region
        _
      $region36: #{prompt_tts_forward.5} parent=11 // pred_fallthru
        _
      // Predicated region
      $region37: #{prompt_tts_forward.5} parent=11 // pred_check
        %p400 = pneg %p194
      $region38: #{prompt_tts_forward.5} parent=11 // pred_check_branch
        %402 = sbr.rel (%p400) target = $region40
      $region39: #{prompt_tts_forward.5} parent=11 // pred_region
        _
      $region40: #{prompt_tts_forward.5} parent=11 // pred_fallthru
        _
      // Predicated region
      $region41: #{prompt_tts_forward.5} parent=11 // pred_check
        %p403 = pneg %p215
      $region42: #{prompt_tts_forward.5} parent=11 // pred_check_branch
        %405 = sbr.rel (%p403) target = $region44
      $region43: #{prompt_tts_forward.5} parent=11 // pred_region
        _
      $region44: #{prompt_tts_forward.5} parent=11 // pred_fallthru
        _
      // Predicated region
      $region45: #{prompt_tts_forward.5} parent=11 // pred_check
        %p406 = pneg %p236
      $region46: #{prompt_tts_forward.5} parent=11 // pred_check_branch
        %408 = sbr.rel (%p406) target = $region48
      $region47: #{prompt_tts_forward.5} parent=11 // pred_region
        _
      $region48: #{prompt_tts_forward.5} parent=11 // pred_fallthru
        _
      // Predicated region
      $region49: #{prompt_tts_forward.5} parent=11 // pred_check
        %p409 = pneg %p257
      $region50: #{prompt_tts_forward.5} parent=11 // pred_check_branch
        %411 = sbr.rel (%p409) target = $region52
      $region51: #{prompt_tts_forward.5} parent=11 // pred_region
        _
      $region52: #{prompt_tts_forward.5} parent=11 // pred_fallthru
        _
      // Predicated region
      $region53: #{prompt_tts_forward.5} parent=11 // pred_check
        %p412 = pneg %p278
      $region54: #{prompt_tts_forward.5} parent=11 // pred_check_branch
        %414 = sbr.rel (%p412) target = $region56
      $region55: #{prompt_tts_forward.5} parent=11 // pred_region
        _
      $region56: #{prompt_tts_forward.5} parent=11 // pred_fallthru
        _
      // Predicated region
      $region57: #{prompt_tts_forward.5} parent=11 // pred_check
        %p415 = pneg %p299
      $region58: #{prompt_tts_forward.5} parent=11 // pred_check_branch
        %417 = sbr.rel (%p415) target = $region60
      $region59: #{prompt_tts_forward.5} parent=11 // pred_region
        _
      $region60: #{prompt_tts_forward.5} parent=11 // pred_fallthru
        _
      // Predicated region
      $region61: #{prompt_tts_forward.5} parent=11 // pred_check
        %p418 = pneg %p320
      $region62: #{prompt_tts_forward.5} parent=11 // pred_check_branch
        %420 = sbr.rel (%p418) target = $region64
      $region63: #{prompt_tts_forward.5} parent=11 // pred_region
        _
      $region64: #{prompt_tts_forward.5} parent=11 // pred_fallthru
        _
      // Predicated region
      $region65: #{prompt_tts_forward.5} parent=11 // pred_check
        %p421 = pneg %p341
      $region66: #{prompt_tts_forward.5} parent=11 // pred_check_branch
        %423 = sbr.rel (%p421) target = $region68
      $region67: #{prompt_tts_forward.5} parent=11 // pred_region
        _
      $region68: #{prompt_tts_forward.5} parent=11 // pred_fallthru
        _
    $region12: #{prompt_tts_forward.5} parent=5 // pred_fallthru
      _
    %p424 = scmp.lt.s32.totalorder %s21, 2
    // Predicated region
    $region69: #{prompt_tts_forward.5} parent=5 // pred_check
      %p425 = pneg %p424
    $region70: #{prompt_tts_forward.5} parent=5 // pred_check_branch
      %427 = sbr.rel (%p425) target = $region72
    $region71: #{prompt_tts_forward.5} parent=5 // pred_region
      // Predicated region
      $region73: #{prompt_tts_forward.5} parent=71 // pred_check
        %p428 = pneg %p41
      $region74: #{prompt_tts_forward.5} parent=71 // pred_check_branch
        %430 = sbr.rel (%p428) target = $region76
      $region75: #{prompt_tts_forward.5} parent=71 // pred_region
        %p431 = scmp.lt.s32.totalorder %s21, 1
        %s432 = scalar_select %p431, %s21, 1
        %s433 = smul.addr %s432, 4
        %s434 = smul.addr %s433, 8
        %s435 = scalar_lea.vmem %s0, %s434
      $region76: #{prompt_tts_forward.5} parent=71 // pred_fallthru
        _
    $region72: #{prompt_tts_forward.5} parent=5 // pred_fallthru
      _
    %p436 = scmp.le.s32.totalorder 1, %s21
    %p437 = scmp.lt.s32.totalorder %s21, 3
    %p438 = pnand %p436, %p437
    %p439 = pneg %p438
    // Predicated region
    $region77: #{prompt_tts_forward.5} parent=5 // pred_check
      _
    $region78: #{prompt_tts_forward.5} parent=5 // pred_check_branch
      %441 = sbr.rel (%p438) target = $region80
    $region79: #{prompt_tts_forward.5} parent=5 // pred_region
      %s442 = ssub.s32 %s21, 1
      %p443 = scmp.lt.s32.totalorder %s26, 1
      %s444 = scalar_select %p443, %s26, 1
      %s445 = smul.addr %s444, 4
      %s446 = smul.addr %s445, 8
      %s447 = scalar_lea.vmem %s0, %s446
      %p448 = pneg %p47
      %p449 = pneg %p44
      %p450 = pneg %p68
      %p451 = pneg %p65
      %p452 = pneg %p89
      %p453 = pneg %p86
      %p454 = pneg %p110
      %p455 = pneg %p107
      %p456 = pneg %p131
      %p457 = pneg %p128
      %p458 = pneg %p152
      %p459 = pneg %p149
      %p460 = pneg %p173
      %p461 = pneg %p170
      %p462 = pneg %p194
      %p463 = pneg %p191
      %p464 = pneg %p215
      %p465 = pneg %p212
      %p466 = pneg %p236
      %p467 = pneg %p233
      %p468 = pneg %p257
      %p469 = pneg %p254
      %p470 = pneg %p278
      %p471 = pneg %p275
      %p472 = pneg %p299
      %p473 = pneg %p296
      %p474 = pneg %p320
      %p475 = pneg %p317
      %p476 = pneg %p341
      %p477 = pneg %p338
      %p478 = pneg %p367
      %p479 = pneg %p364
      %p480 = scmp.lt.s32.totalorder %s26, 1
      %s481 = scalar_select %p480, %s26, 1
      %s482 = smul.addr %s481, 4
      %s483 = smul.addr %s482, 8
      %s484 = scalar_lea.vmem %s15, %s483
      %p485 = scmp.lt.s32.totalorder %s26, 1
      %s486 = scalar_select %p485, %s26, 1
      %s487 = smul.addr %s486, 4
      %s488 = smul.addr %s487, 8
      %s489 = scalar_lea.vmem %s0, %s488
      %p490 = scmp.lt.s32.totalorder %s26, 1
      %s491 = scalar_select %p490, %s26, 1
      %s492 = smul.addr %s491, 4
      %s493 = smul.addr %s492, 8
      %s494 = scalar_lea.vmem %s15, %s493
      %v495 = vld [vmem:[%s489] sm:$0xff]
      %v496 = vld [vmem:[%s489 + $0x8] sm:$0xff]
      %v497 = vld [vmem:[%s489 + $0x10] sm:$0xff]
      %v498 = vld [vmem:[%s489 + $0x18] sm:$0xff]
      %v499 = vld [vmem:[%s1] sm:$0xff]
      %v500 = vld [vmem:[%s1 + $0x8] sm:$0xff]
      %v501 = vld [vmem:[%s1 + $0x10] sm:$0xff]
      %v502 = vld [vmem:[%s1 + $0x18] sm:$0xff]
      %v503 = vld [vmem:[%s2] sm:$0x1]
      %v505 = vlaneseq
      %v506 = vshrl.u32 %v505, 7
      %v507 = vsub.s32 0, %v506
      %v508 = vrot.slane %v503, %v507
      %vm510 = vcmask 261120
      %v512 = vsel %vm510, %v495, 0
      %v515 = vsel %vm510, %v496, 0
      %v518 = vsel %vm510, %v497, 0
      %v521 = vsel %vm510, %v498, 0
      %523 = vmatprep.subr.mxu0 0.0
      %524 = vmatpush1.msra.mxu0 0.0
      %525 = vmatprep.subr.mxu0 0.0
      %526 = vmatpush1.msra.mxu0 0.0
      %527 = vmatprep.subr.mxu0 0.0
      %528 = vmatpush1.msra.mxu0 0.0
      %529 = vmatprep.subr.mxu0 0.0
      %530 = vmatpush1.msra.mxu0 0.0
      %531 = vmatprep.subr.mxu0 0.0
      %532 = vmatpush1.msra.mxu0 0.0
      %533 = vmatprep.subr.mxu0 0.0
      %534 = vmatpush1.msra.mxu0 0.0
      %535 = vmatprep.subr.mxu0 0.0
      %536 = vmatpush1.msra.mxu0 0.0
      %537 = vmatprep.subr.mxu0 0.0
      %538 = vmatpush1.msra.mxu0 0.0
      %539 = vmatprep.subr.mxu0 0.0
      %540 = vmatpush1.msra.mxu0 0.0
      %541 = vmatprep.subr.mxu0 0.0
      %542 = vmatpush1.msra.mxu0 0.0
      %543 = vmatprep.subr.mxu0 0.0
      %544 = vmatpush1.msra.mxu0 0.0
      %545 = vmatprep.subr.mxu0 0.0
      %546 = vmatpush1.msra.mxu0 0.0
      %547 = vmatprep.subr.mxu0 0.0
      %548 = vmatpush1.msra.mxu0 %v502
      %549 = vmatprep.subr.mxu0 0.0
      %550 = vmatpush1.msra.mxu0 %v501
      %551 = vmatprep.subr.mxu0 0.0
      %552 = vmatpush1.msra.mxu0 %v500
      %553 = vmatprep.subr.mxu0 0.0
      %554 = vmatpush1.msra.mxu0 %v499
      %555 = vmatprep.subr.mxu0 0.0
      %556 = vmatpush2.msra.mxu0 0.0
      %557 = vmatprep.subr.mxu0 0.0
      %558 = vmatpush2.msra.mxu0 0.0
      %559 = vmatprep.subr.mxu0 0.0
      %560 = vmatpush2.msra.mxu0 0.0
      %561 = vmatprep.subr.mxu0 0.0
      %562 = vmatpush2.msra.mxu0 0.0
      %563 = vmatprep.subr.mxu0 0.0
      %564 = vmatpush2.msra.mxu0 0.0
      %565 = vmatprep.subr.mxu0 0.0
      %566 = vmatpush2.msra.mxu0 0.0
      %567 = vmatprep.subr.mxu0 0.0
      %568 = vmatpush2.msra.mxu0 0.0
      %569 = vmatprep.subr.mxu0 0.0
      %570 = vmatpush2.msra.mxu0 0.0
      %571 = vmatprep.subr.mxu0 0.0
      %572 = vmatpush2.msra.mxu0 0.0
      %573 = vmatprep.subr.mxu0 0.0
      %574 = vmatpush2.msra.mxu0 0.0
      %575 = vmatprep.subr.mxu0 0.0
      %576 = vmatpush2.msra.mxu0 0.0
      %577 = vmatprep.subr.mxu0 0.0
      %578 = vmatpush2.msra.mxu0 0.0
      %579 = vmatprep.subr.mxu0 0.0
      %580 = vmatpush2.msra.mxu0 0.0
      %581 = vmatprep.subr.mxu0 0.0
      %582 = vmatpush2.msra.mxu0 0.0
      %583 = vmatprep.subr.mxu0 0.0
      %584 = vmatpush2.msra.mxu0 0.0
      %585 = vmatprep.subr.mxu0 0.0
      %586 = vmatpush2.msra.mxu0 0.0
      %587 = vmatprep.mubr.f32.mxu0 0.0
      %588 = vmatmul.mubr.f32.gmra.mxu0 %v512
      %v589 = vpop.f32.mrf.mxu0
      %v590 = vadd.f32 %v508, %v589
      %v591 = vpop.f32.mrf.mxu0
      %592 = vmatprep.mubr.f32.mxu0 0.0
      %593 = vmatmul.mubr.f32.gmra.mxu0 %v515
      %v594 = vpop.f32.mrf.mxu0
      %v595 = vadd.f32 %v508, %v594
      %v596 = vpop.f32.mrf.mxu0
      %597 = vmatprep.mubr.f32.mxu0 0.0
      %598 = vmatmul.mubr.f32.gmra.mxu0 %v518
      %v599 = vpop.f32.mrf.mxu0
      %v600 = vadd.f32 %v508, %v599
      %v601 = vpop.f32.mrf.mxu0
      %602 = vmatprep.mubr.f32.mxu0 0.0
      %603 = vmatmul.mubr.f32.gmra.mxu0 %v521
      %v604 = vpop.f32.mrf.mxu0
      %v605 = vadd.f32 %v508, %v604
      %v606 = vpop.f32.mrf.mxu0
      %607 = vdwg.mxu0
      %612 = vrot.lane.b32.xlu0 %v590, 96
      %v613 = vpop.permute.xlu0 %612
      %614 = vrot.lane.b32.xlu0 %v595, 96
      %v615 = vpop.permute.xlu0 %614
      %616 = vrot.lane.b32.xlu0 %v600, 96
      %v617 = vpop.permute.xlu0 %616
      %618 = vrot.lane.b32.xlu0 %v605, 96
      %v619 = vpop.permute.xlu0 %618
      %v620 = vsel %vm510, %v590, 0
      %v622 = vsel %vm510, %v595, 0
      %v624 = vsel %vm510, %v600, 0
      %v626 = vsel %vm510, %v605, 0
      %v628 = vsel %vm510, %v613, 0
      %v630 = vsel %vm510, %v615, 0
      %v632 = vsel %vm510, %v617, 0
      %v634 = vsel %vm510, %v619, 0
      %636 = vmatprep.subr.mxu0 0.0
      %637 = vmatpush1.xpose.msra.mxu0 0.0
      %638 = vmatprep.subr.mxu0 0.0
      %639 = vmatpush1.xpose.msra.mxu0 0.0
      %640 = vmatprep.subr.mxu0 0.0
      %641 = vmatpush1.xpose.msra.mxu0 0.0
      %642 = vmatprep.subr.mxu0 0.0
      %643 = vmatpush1.xpose.msra.mxu0 0.0
      %644 = vmatprep.subr.mxu0 0.0
      %645 = vmatpush1.xpose.msra.mxu0 0.0
      %646 = vmatprep.subr.mxu0 0.0
      %647 = vmatpush1.xpose.msra.mxu0 0.0
      %648 = vmatprep.subr.mxu0 0.0
      %649 = vmatpush1.xpose.msra.mxu0 0.0
      %650 = vmatprep.subr.mxu0 0.0
      %651 = vmatpush1.xpose.msra.mxu0 0.0
      %652 = vmatprep.subr.mxu0 0.0
      %653 = vmatpush1.xpose.msra.mxu0 0.0
      %654 = vmatprep.subr.mxu0 0.0
      %655 = vmatpush1.xpose.msra.mxu0 0.0
      %656 = vmatprep.subr.mxu0 0.0
      %657 = vmatpush1.xpose.msra.mxu0 0.0
      %658 = vmatprep.subr.mxu0 0.0
      %659 = vmatpush1.xpose.msra.mxu0 0.0
      %660 = vmatprep.subr.mxu0 0.0
      %661 = vmatpush1.xpose.msra.mxu0 %v634
      %662 = vmatprep.subr.mxu0 0.0
      %663 = vmatpush1.xpose.msra.mxu0 %v632
      %664 = vmatprep.subr.mxu0 0.0
      %665 = vmatpush1.xpose.msra.mxu0 %v630
      %666 = vmatprep.subr.mxu0 0.0
      %667 = vmatpush1.xpose.msra.mxu0 %v628
      %668 = vmatprep.subr.mxu0 0.0
      %669 = vmatpush2.xpose.msra.mxu0 0.0
      %670 = vmatprep.subr.mxu0 0.0
      %671 = vmatpush2.xpose.msra.mxu0 0.0
      %672 = vmatprep.subr.mxu0 0.0
      %673 = vmatpush2.xpose.msra.mxu0 0.0
      %674 = vmatprep.subr.mxu0 0.0
      %675 = vmatpush2.xpose.msra.mxu0 0.0
      %676 = vmatprep.subr.mxu0 0.0
      %677 = vmatpush2.xpose.msra.mxu0 0.0
      %678 = vmatprep.subr.mxu0 0.0
      %679 = vmatpush2.xpose.msra.mxu0 0.0
      %680 = vmatprep.subr.mxu0 0.0
      %681 = vmatpush2.xpose.msra.mxu0 0.0
      %682 = vmatprep.subr.mxu0 0.0
      %683 = vmatpush2.xpose.msra.mxu0 0.0
      %684 = vmatprep.subr.mxu0 0.0
      %685 = vmatpush2.xpose.msra.mxu0 0.0
      %686 = vmatprep.subr.mxu0 0.0
      %687 = vmatpush2.xpose.msra.mxu0 0.0
      %688 = vmatprep.subr.mxu0 0.0
      %689 = vmatpush2.xpose.msra.mxu0 0.0
      %690 = vmatprep.subr.mxu0 0.0
      %691 = vmatpush2.xpose.msra.mxu0 0.0
      %692 = vmatprep.subr.mxu0 0.0
      %693 = vmatpush2.xpose.msra.mxu0 0.0
      %694 = vmatprep.subr.mxu0 0.0
      %695 = vmatpush2.xpose.msra.mxu0 0.0
      %696 = vmatprep.subr.mxu0 0.0
      %697 = vmatpush2.xpose.msra.mxu0 0.0
      %698 = vmatprep.subr.mxu0 0.0
      %699 = vmatpush2.xpose.msra.mxu0 0.0
      %700 = vmatprep.mubr.f32.mxu0 0.0
      %701 = vmatmul.mubr.f32.gmra.mxu0 %v620
      %v702 = vpop.f32.mrf.mxu0
      %v703 = vadd.f32 0.0, %v702
      %v704 = vpop.f32.mrf.mxu0
      %705 = vmatprep.mubr.f32.mxu0 0.0
      %706 = vmatmul.mubr.f32.gmra.mxu0 %v622
      %v707 = vpop.f32.mrf.mxu0
      %v708 = vadd.f32 0.0, %v707
      %v709 = vpop.f32.mrf.mxu0
      %710 = vmatprep.mubr.f32.mxu0 0.0
      %711 = vmatmul.mubr.f32.gmra.mxu0 %v624
      %v712 = vpop.f32.mrf.mxu0
      %v713 = vadd.f32 0.0, %v712
      %v714 = vpop.f32.mrf.mxu0
      %715 = vmatprep.mubr.f32.mxu0 0.0
      %716 = vmatmul.mubr.f32.gmra.mxu0 %v626
      %v717 = vpop.f32.mrf.mxu0
      %v718 = vadd.f32 0.0, %v717
      %v719 = vpop.f32.mrf.mxu0
      %720 = vdwg.mxu0
      %v721 = vmul.f32 %v703, 0.17677669
      %v722 = vmul.f32 %v708, 0.17677669
      %v723 = vmul.f32 %v713, 0.17677669
      %v724 = vmul.f32 %v718, 0.17677669
      %v725 = vsel %vm510, %v721, -inf
      %726 = vmax.xlane.f32.xlu0 %v725
      %v727 = vpop.xlane.xlu0 %726
      %v728 = vsel %vm510, %v722, -inf
      %729 = vmax.xlane.f32.xlu0 %v728
      %v730 = vpop.xlane.xlu0 %729
      %v731 = vsel %vm510, %v723, -inf
      %732 = vmax.xlane.f32.xlu0 %v731
      %v733 = vpop.xlane.xlu0 %732
      %v734 = vsel %vm510, %v724, -inf
      %735 = vmax.xlane.f32.xlu0 %v734
      %v736 = vpop.xlane.xlu0 %735
      %v737 = vsub.f32 %v721, %v727
      %v738 = vsub.f32 %v722, %v730
      %v739 = vsub.f32 %v723, %v733
      %v740 = vsub.f32 %v724, %v736
      %v741 = vmul.f32 %v737, 1.442695
      %v742 = vpow.pop %v741
      %v743 = vmul.f32 %v738, 1.442695
      %v744 = vpow.pop %v743
      %v745 = vmul.f32 %v739, 1.442695
      %v746 = vpow.pop %v745
      %v747 = vmul.f32 %v740, 1.442695
      %v748 = vpow.pop %v747
      %v749 = vsel %vm510, %v742, 0.0
      %750 = vadd.xlane.f32.xlu0 %v749
      %v751 = vpop.xlane.xlu0 %750
      %v752 = vsel %vm510, %v744, 0.0
      %753 = vadd.xlane.f32.xlu0 %v752
      %v754 = vpop.xlane.xlu0 %753
      %v755 = vsel %vm510, %v746, 0.0
      %756 = vadd.xlane.f32.xlu0 %v755
      %v757 = vpop.xlane.xlu0 %756
      %v758 = vsel %vm510, %v748, 0.0
      %759 = vadd.xlane.f32.xlu0 %v758
      %v760 = vpop.xlane.xlu0 %759
      %v761 = vrcp.pop %v751
      %v762 = vrcp.pop %v754
      %v763 = vrcp.pop %v757
      %v764 = vrcp.pop %v760
      %v765 = vmul.f32 %v742, %v761
      %v766 = vmul.f32 %v744, %v762
      %v767 = vmul.f32 %v746, %v763
      %v768 = vmul.f32 %v748, %v764
      %769 = vrot.lane.b32.xlu0 %v590, 64
      %v770 = vpop.permute.xlu0 %769
      %771 = vrot.lane.b32.xlu0 %v595, 64
      %v772 = vpop.permute.xlu0 %771
      %773 = vrot.lane.b32.xlu0 %v600, 64
      %v774 = vpop.permute.xlu0 %773
      %775 = vrot.lane.b32.xlu0 %v605, 64
      %v776 = vpop.permute.xlu0 %775
      %v782 = vsel %vm510, %v765, 0
      %v785 = vsel %vm510, %v766, 0
      %v788 = vsel %vm510, %v767, 0
      %v791 = vsel %vm510, %v768, 0
      %793 = vmatprep.subr.mxu0 0.0
      %794 = vmatpush1.msra.mxu0 0.0
      %795 = vmatprep.subr.mxu0 0.0
      %796 = vmatpush1.msra.mxu0 0.0
      %797 = vmatprep.subr.mxu0 0.0
      %798 = vmatpush1.msra.mxu0 0.0
      %799 = vmatprep.subr.mxu0 0.0
      %800 = vmatpush1.msra.mxu0 0.0
      %801 = vmatprep.subr.mxu0 0.0
      %802 = vmatpush1.msra.mxu0 0.0
      %803 = vmatprep.subr.mxu0 0.0
      %804 = vmatpush1.msra.mxu0 0.0
      %805 = vmatprep.subr.mxu0 0.0
      %806 = vmatpush1.msra.mxu0 0.0
      %807 = vmatprep.subr.mxu0 0.0
      %808 = vmatpush1.msra.mxu0 0.0
      %809 = vmatprep.subr.mxu0 0.0
      %810 = vmatpush1.msra.mxu0 0.0
      %811 = vmatprep.subr.mxu0 0.0
      %812 = vmatpush1.msra.mxu0 0.0
      %813 = vmatprep.subr.mxu0 0.0
      %814 = vmatpush1.msra.mxu0 0.0
      %815 = vmatprep.subr.mxu0 0.0
      %816 = vmatpush1.msra.mxu0 0.0
      %817 = vmatprep.subr.mxu0 0.0
      %818 = vmatpush1.msra.mxu0 %v776
      %819 = vmatprep.subr.mxu0 0.0
      %820 = vmatpush1.msra.mxu0 %v774
      %821 = vmatprep.subr.mxu0 0.0
      %822 = vmatpush1.msra.mxu0 %v772
      %823 = vmatprep.subr.mxu0 0.0
      %824 = vmatpush1.msra.mxu0 %v770
      %825 = vmatprep.subr.mxu0 0.0
      %826 = vmatpush2.msra.mxu0 0.0
      %827 = vmatprep.subr.mxu0 0.0
      %828 = vmatpush2.msra.mxu0 0.0
      %829 = vmatprep.subr.mxu0 0.0
      %830 = vmatpush2.msra.mxu0 0.0
      %831 = vmatprep.subr.mxu0 0.0
      %832 = vmatpush2.msra.mxu0 0.0
      %833 = vmatprep.subr.mxu0 0.0
      %834 = vmatpush2.msra.mxu0 0.0
      %835 = vmatprep.subr.mxu0 0.0
      %836 = vmatpush2.msra.mxu0 0.0
      %837 = vmatprep.subr.mxu0 0.0
      %838 = vmatpush2.msra.mxu0 0.0
      %839 = vmatprep.subr.mxu0 0.0
      %840 = vmatpush2.msra.mxu0 0.0
      %841 = vmatprep.subr.mxu0 0.0
      %842 = vmatpush2.msra.mxu0 0.0
      %843 = vmatprep.subr.mxu0 0.0
      %844 = vmatpush2.msra.mxu0 0.0
      %845 = vmatprep.subr.mxu0 0.0
      %846 = vmatpush2.msra.mxu0 0.0
      %847 = vmatprep.subr.mxu0 0.0
      %848 = vmatpush2.msra.mxu0 0.0
      %849 = vmatprep.subr.mxu0 0.0
      %850 = vmatpush2.msra.mxu0 0.0
      %851 = vmatprep.subr.mxu0 0.0
      %852 = vmatpush2.msra.mxu0 0.0
      %853 = vmatprep.subr.mxu0 0.0
      %854 = vmatpush2.msra.mxu0 0.0
      %855 = vmatprep.subr.mxu0 0.0
      %856 = vmatpush2.msra.mxu0 0.0
      %857 = vmatprep.mubr.f32.mxu0 0.0
      %858 = vmatmul.mubr.f32.gmra.mxu0 %v782
      %v859 = vpop.f32.mrf.mxu0
      %v860 = vadd.f32 0.0, %v859
      %v861 = vpop.f32.mrf.mxu0
      %862 = vmatprep.mubr.f32.mxu0 0.0
      %863 = vmatmul.mubr.f32.gmra.mxu0 %v785
      %v864 = vpop.f32.mrf.mxu0
      %v865 = vadd.f32 0.0, %v864
      %v866 = vpop.f32.mrf.mxu0
      %867 = vmatprep.mubr.f32.mxu0 0.0
      %868 = vmatmul.mubr.f32.gmra.mxu0 %v788
      %v869 = vpop.f32.mrf.mxu0
      %v870 = vadd.f32 0.0, %v869
      %v871 = vpop.f32.mrf.mxu0
      %872 = vmatprep.mubr.f32.mxu0 0.0
      %873 = vmatmul.mubr.f32.gmra.mxu0 %v791
      %v874 = vpop.f32.mrf.mxu0
      %v875 = vadd.f32 0.0, %v874
      %v876 = vpop.f32.mrf.mxu0
      %877 = vdwg.mxu0
      %v878 = vld [vmem:[%s3] sm:$0xff]
      %v879 = vld [vmem:[%s3 + $0x8] sm:$0xff]
      %v880 = vld [vmem:[%s3 + $0x10] sm:$0xff]
      %v881 = vld [vmem:[%s3 + $0x18] sm:$0xff]
      %v882 = vld [vmem:[%s4] sm:$0x1]
      %v884 = vlaneseq
      %v885 = vshrl.u32 %v884, 7
      %v886 = vsub.s32 0, %v885
      %v887 = vrot.slane %v882, %v886
      %v890 = vsel %vm510, %v860, 0
      %v893 = vsel %vm510, %v865, 0
      %v896 = vsel %vm510, %v870, 0
      %v899 = vsel %vm510, %v875, 0
      %901 = vmatprep.subr.mxu0 0.0
      %902 = vmatpush1.msra.mxu0 0.0
      %903 = vmatprep.subr.mxu0 0.0
      %904 = vmatpush1.msra.mxu0 0.0
      %905 = vmatprep.subr.mxu0 0.0
      %906 = vmatpush1.msra.mxu0 0.0
      %907 = vmatprep.subr.mxu0 0.0
      %908 = vmatpush1.msra.mxu0 0.0
      %909 = vmatprep.subr.mxu0 0.0
      %910 = vmatpush1.msra.mxu0 0.0
      %911 = vmatprep.subr.mxu0 0.0
      %912 = vmatpush1.msra.mxu0 0.0
      %913 = vmatprep.subr.mxu0 0.0
      %914 = vmatpush1.msra.mxu0 0.0
      %915 = vmatprep.subr.mxu0 0.0
      %916 = vmatpush1.msra.mxu0 0.0
      %917 = vmatprep.subr.mxu0 0.0
      %918 = vmatpush1.msra.mxu0 0.0
      %919 = vmatprep.subr.mxu0 0.0
      %920 = vmatpush1.msra.mxu0 0.0
      %921 = vmatprep.subr.mxu0 0.0
      %922 = vmatpush1.msra.mxu0 0.0
      %923 = vmatprep.subr.mxu0 0.0
      %924 = vmatpush1.msra.mxu0 0.0
      %925 = vmatprep.subr.mxu0 0.0
      %926 = vmatpush1.msra.mxu0 %v881
      %927 = vmatprep.subr.mxu0 0.0
      %928 = vmatpush1.msra.mxu0 %v880
      %929 = vmatprep.subr.mxu0 0.0
      %930 = vmatpush1.msra.mxu0 %v879
      %931 = vmatprep.subr.mxu0 0.0
      %932 = vmatpush1.msra.mxu0 %v878
      %933 = vmatprep.subr.mxu0 0.0
      %934 = vmatpush2.msra.mxu0 0.0
      %935 = vmatprep.subr.mxu0 0.0
      %936 = vmatpush2.msra.mxu0 0.0
      %937 = vmatprep.subr.mxu0 0.0
      %938 = vmatpush2.msra.mxu0 0.0
      %939 = vmatprep.subr.mxu0 0.0
      %940 = vmatpush2.msra.mxu0 0.0
      %941 = vmatprep.subr.mxu0 0.0
      %942 = vmatpush2.msra.mxu0 0.0
      %943 = vmatprep.subr.mxu0 0.0
      %944 = vmatpush2.msra.mxu0 0.0
      %945 = vmatprep.subr.mxu0 0.0
      %946 = vmatpush2.msra.mxu0 0.0
      %947 = vmatprep.subr.mxu0 0.0
      %948 = vmatpush2.msra.mxu0 0.0
      %949 = vmatprep.subr.mxu0 0.0
      %950 = vmatpush2.msra.mxu0 0.0
      %951 = vmatprep.subr.mxu0 0.0
      %952 = vmatpush2.msra.mxu0 0.0
      %953 = vmatprep.subr.mxu0 0.0
      %954 = vmatpush2.msra.mxu0 0.0
      %955 = vmatprep.subr.mxu0 0.0
      %956 = vmatpush2.msra.mxu0 0.0
      %957 = vmatprep.subr.mxu0 0.0
      %958 = vmatpush2.msra.mxu0 0.0
      %959 = vmatprep.subr.mxu0 0.0
      %960 = vmatpush2.msra.mxu0 0.0
      %961 = vmatprep.subr.mxu0 0.0
      %962 = vmatpush2.msra.mxu0 0.0
      %963 = vmatprep.subr.mxu0 0.0
      %964 = vmatpush2.msra.mxu0 0.0
      %965 = vmatprep.mubr.f32.mxu0 0.0
      %966 = vmatmul.mubr.f32.gmra.mxu0 %v890
      %v967 = vpop.f32.mrf.mxu0
      %v968 = vadd.f32 %v887, %v967
      %v969 = vpop.f32.mrf.mxu0
      %970 = vmatprep.mubr.f32.mxu0 0.0
      %971 = vmatmul.mubr.f32.gmra.mxu0 %v893
      %v972 = vpop.f32.mrf.mxu0
      %v973 = vadd.f32 %v887, %v972
      %v974 = vpop.f32.mrf.mxu0
      %975 = vmatprep.mubr.f32.mxu0 0.0
      %976 = vmatmul.mubr.f32.gmra.mxu0 %v896
      %v977 = vpop.f32.mrf.mxu0
      %v978 = vadd.f32 %v887, %v977
      %v979 = vpop.f32.mrf.mxu0
      %980 = vmatprep.mubr.f32.mxu0 0.0
      %981 = vmatmul.mubr.f32.gmra.mxu0 %v899
      %v982 = vpop.f32.mrf.mxu0
      %v983 = vadd.f32 %v887, %v982
      %v984 = vpop.f32.mrf.mxu0
      %985 = vdwg.mxu0
      %v986 = vadd.f32 %v495, %v968
      %v987 = vadd.f32 %v496, %v973
      %v988 = vadd.f32 %v497, %v978
      %v989 = vadd.f32 %v498, %v983
      %v990 = vld [vmem:[%s5] sm:$0x1]
      %v991 = vld [vmem:[%s6] sm:$0x1]
      %v992 = vsel %vm510, %v986, 0.0
      %993 = vadd.xlane.f32.xlu0 %v992
      %v994 = vpop.xlane.xlu0 %993
      %v995 = vsel %vm510, %v987, 0.0
      %996 = vadd.xlane.f32.xlu0 %v995
      %v997 = vpop.xlane.xlu0 %996
      %v998 = vsel %vm510, %v988, 0.0
      %999 = vadd.xlane.f32.xlu0 %v998
      %v1000 = vpop.xlane.xlu0 %999
      %v1001 = vsel %vm510, %v989, 0.0
      %1002 = vadd.xlane.f32.xlu0 %v1001
      %v1003 = vpop.xlane.xlu0 %1002
      %v1004 = vrcp.pop 32.0
      %v1005 = vmul.f32 %v994, %v1004
      %v1006 = vmul.f32 %v997, %v1004
      %v1007 = vmul.f32 %v1000, %v1004
      %v1008 = vmul.f32 %v1003, %v1004
      %v1009 = vsub.f32 %v986, %v1005
      %v1010 = vsub.f32 %v987, %v1006
      %v1011 = vsub.f32 %v988, %v1007
      %v1012 = vsub.f32 %v989, %v1008
      %v1013 = vmul.f32 %v1009, %v1009
      %v1014 = vmul.f32 %v1010, %v1010
      %v1015 = vmul.f32 %v1011, %v1011
      %v1016 = vmul.f32 %v1012, %v1012
      %v1017 = vsel %vm510, %v1013, 0.0
      %1018 = vadd.xlane.f32.xlu0 %v1017
      %v1019 = vpop.xlane.xlu0 %1018
      %v1020 = vsel %vm510, %v1014, 0.0
      %1021 = vadd.xlane.f32.xlu0 %v1020
      %v1022 = vpop.xlane.xlu0 %1021
      %v1023 = vsel %vm510, %v1015, 0.0
      %1024 = vadd.xlane.f32.xlu0 %v1023
      %v1025 = vpop.xlane.xlu0 %1024
      %v1026 = vsel %vm510, %v1016, 0.0
      %1027 = vadd.xlane.f32.xlu0 %v1026
      %v1028 = vpop.xlane.xlu0 %1027
      %v1029 = vmul.f32 %v1019, %v1004
      %v1030 = vmul.f32 %v1022, %v1004
      %v1031 = vmul.f32 %v1025, %v1004
      %v1032 = vmul.f32 %v1028, %v1004
      %v1033 = vadd.f32 %v1029, 1e-05
      %v1034 = vadd.f32 %v1030, 1e-05
      %v1035 = vadd.f32 %v1031, 1e-05
      %v1036 = vadd.f32 %v1032, 1e-05
      %v1037 = vrsqrt.pop %v1033
      %v1038 = vrsqrt.pop %v1034
      %v1039 = vrsqrt.pop %v1035
      %v1040 = vrsqrt.pop %v1036
      %v1041 = vmul.f32 %v1009, %v1037
      %v1042 = vmul.f32 %v1010, %v1038
      %v1043 = vmul.f32 %v1011, %v1039
      %v1044 = vmul.f32 %v1012, %v1040
      %v1046 = vlaneseq
      %v1047 = vshrl.u32 %v1046, 7
      %v1048 = vsub.s32 0, %v1047
      %v1049 = vrot.slane %v990, %v1048
      %v1051 = vmul.f32 %v1041, %v1049
      %v1052 = vmul.f32 %v1042, %v1049
      %v1053 = vmul.f32 %v1043, %v1049
      %v1054 = vmul.f32 %v1044, %v1049
      %v1056 = vlaneseq
      %v1057 = vshrl.u32 %v1056, 7
      %v1058 = vsub.s32 0, %v1057
      %v1059 = vrot.slane %v991, %v1058
      %v1061 = vadd.f32 %v1051, %v1059
      %v1062 = vadd.f32 %v1052, %v1059
      %v1063 = vadd.f32 %v1053, %v1059
      %v1064 = vadd.f32 %v1054, %v1059
      %v1065 = vld [vmem:[%s7] sm:$0xff]
      %v1066 = vld [vmem:[%s7 + $0x8] sm:$0xff]
      %v1067 = vld [vmem:[%s7 + $0x10] sm:$0xff]
      %v1068 = vld [vmem:[%s7 + $0x18] sm:$0xff]
      %v1069 = vld [vmem:[%s8] sm:$0x1]
      %v1071 = vlaneseq
      %v1072 = vshrl.u32 %v1071, 7
      %v1073 = vsub.s32 0, %v1072
      %v1074 = vrot.slane %v1069, %v1073
      %v1077 = vsel %vm510, %v1061, 0
      %v1080 = vsel %vm510, %v1062, 0
      %v1083 = vsel %vm510, %v1063, 0
      %v1086 = vsel %vm510, %v1064, 0
      %1088 = vmatprep.subr.mxu0 0.0
      %1089 = vmatpush1.msra.mxu0 0.0
      %1090 = vmatprep.subr.mxu0 0.0
      %1091 = vmatpush1.msra.mxu0 0.0
      %1092 = vmatprep.subr.mxu0 0.0
      %1093 = vmatpush1.msra.mxu0 0.0
      %1094 = vmatprep.subr.mxu0 0.0
      %1095 = vmatpush1.msra.mxu0 0.0
      %1096 = vmatprep.subr.mxu0 0.0
      %1097 = vmatpush1.msra.mxu0 0.0
      %1098 = vmatprep.subr.mxu0 0.0
      %1099 = vmatpush1.msra.mxu0 0.0
      %1100 = vmatprep.subr.mxu0 0.0
      %1101 = vmatpush1.msra.mxu0 0.0
      %1102 = vmatprep.subr.mxu0 0.0
      %1103 = vmatpush1.msra.mxu0 0.0
      %1104 = vmatprep.subr.mxu0 0.0
      %1105 = vmatpush1.msra.mxu0 0.0
      %1106 = vmatprep.subr.mxu0 0.0
      %1107 = vmatpush1.msra.mxu0 0.0
      %1108 = vmatprep.subr.mxu0 0.0
      %1109 = vmatpush1.msra.mxu0 0.0
      %1110 = vmatprep.subr.mxu0 0.0
      %1111 = vmatpush1.msra.mxu0 0.0
      %1112 = vmatprep.subr.mxu0 0.0
      %1113 = vmatpush1.msra.mxu0 %v1068
      %1114 = vmatprep.subr.mxu0 0.0
      %1115 = vmatpush1.msra.mxu0 %v1067
      %1116 = vmatprep.subr.mxu0 0.0
      %1117 = vmatpush1.msra.mxu0 %v1066
      %1118 = vmatprep.subr.mxu0 0.0
      %1119 = vmatpush1.msra.mxu0 %v1065
      %1120 = vmatprep.subr.mxu0 0.0
      %1121 = vmatpush2.msra.mxu0 0.0
      %1122 = vmatprep.subr.mxu0 0.0
      %1123 = vmatpush2.msra.mxu0 0.0
      %1124 = vmatprep.subr.mxu0 0.0
      %1125 = vmatpush2.msra.mxu0 0.0
      %1126 = vmatprep.subr.mxu0 0.0
      %1127 = vmatpush2.msra.mxu0 0.0
      %1128 = vmatprep.subr.mxu0 0.0
      %1129 = vmatpush2.msra.mxu0 0.0
      %1130 = vmatprep.subr.mxu0 0.0
      %1131 = vmatpush2.msra.mxu0 0.0
      %1132 = vmatprep.subr.mxu0 0.0
      %1133 = vmatpush2.msra.mxu0 0.0
      %1134 = vmatprep.subr.mxu0 0.0
      %1135 = vmatpush2.msra.mxu0 0.0
      %1136 = vmatprep.subr.mxu0 0.0
      %1137 = vmatpush2.msra.mxu0 0.0
      %1138 = vmatprep.subr.mxu0 0.0
      %1139 = vmatpush2.msra.mxu0 0.0
      %1140 = vmatprep.subr.mxu0 0.0
      %1141 = vmatpush2.msra.mxu0 0.0
      %1142 = vmatprep.subr.mxu0 0.0
      %1143 = vmatpush2.msra.mxu0 0.0
      %1144 = vmatprep.subr.mxu0 0.0
      %1145 = vmatpush2.msra.mxu0 0.0
      %1146 = vmatprep.subr.mxu0 0.0
      %1147 = vmatpush2.msra.mxu0 0.0
      %1148 = vmatprep.subr.mxu0 0.0
      %1149 = vmatpush2.msra.mxu0 0.0
      %1150 = vmatprep.subr.mxu0 0.0
      %1151 = vmatpush2.msra.mxu0 0.0
      %1152 = vmatprep.mubr.f32.mxu0 0.0
      %1153 = vmatmul.mubr.f32.gmra.mxu0 %v1077
      %v1154 = vpop.f32.mrf.mxu0
      %v1155 = vadd.f32 %v1074, %v1154
      %v1156 = vpop.f32.mrf.mxu0
      %1157 = vmatprep.mubr.f32.mxu0 0.0
      %1158 = vmatmul.mubr.f32.gmra.mxu0 %v1080
      %v1159 = vpop.f32.mrf.mxu0
      %v1160 = vadd.f32 %v1074, %v1159
      %v1161 = vpop.f32.mrf.mxu0
      %1162 = vmatprep.mubr.f32.mxu0 0.0
      %1163 = vmatmul.mubr.f32.gmra.mxu0 %v1083
      %v1164 = vpop.f32.mrf.mxu0
      %v1165 = vadd.f32 %v1074, %v1164
      %v1166 = vpop.f32.mrf.mxu0
      %1167 = vmatprep.mubr.f32.mxu0 0.0
      %1168 = vmatmul.mubr.f32.gmra.mxu0 %v1086
      %v1169 = vpop.f32.mrf.mxu0
      %v1170 = vadd.f32 %v1074, %v1169
      %v1171 = vpop.f32.mrf.mxu0
      %1172 = vdwg.mxu0
      %v1173 = vmax.f32 %v1155, 0.0
      %v1174 = vmax.f32 %v1160, 0.0
      %v1175 = vmax.f32 %v1165, 0.0
      %v1176 = vmax.f32 %v1170, 0.0
      %v1177 = vld [vmem:[%s9] sm:$0xff]
      %v1178 = vld [vmem:[%s9 + $0x8] sm:$0xff]
      %v1179 = vld [vmem:[%s9 + $0x10] sm:$0xff]
      %v1180 = vld [vmem:[%s9 + $0x18] sm:$0xff]
      %v1181 = vld [vmem:[%s9 + $0x20] sm:$0xff]
      %v1182 = vld [vmem:[%s9 + $0x28] sm:$0xff]
      %v1183 = vld [vmem:[%s9 + $0x30] sm:$0xff]
      %v1184 = vld [vmem:[%s9 + $0x38] sm:$0xff]
      %v1185 = vld [vmem:[%s10] sm:$0x1]
      %v1187 = vlaneseq
      %v1188 = vshrl.u32 %v1187, 7
      %v1189 = vsub.s32 0, %v1188
      %v1190 = vrot.slane %v1185, %v1189
      %vm1192 = vcmask 523264
      %v1194 = vsel %vm1192, %v1173, 0
      %v1197 = vsel %vm1192, %v1174, 0
      %v1200 = vsel %vm1192, %v1175, 0
      %v1203 = vsel %vm1192, %v1176, 0
      %1205 = vmatprep.subr.mxu0 0.0
      %1206 = vmatpush1.msra.mxu0 0.0
      %1207 = vmatprep.subr.mxu0 0.0
      %1208 = vmatpush1.msra.mxu0 0.0
      %1209 = vmatprep.subr.mxu0 0.0
      %1210 = vmatpush1.msra.mxu0 0.0
      %1211 = vmatprep.subr.mxu0 0.0
      %1212 = vmatpush1.msra.mxu0 0.0
      %1213 = vmatprep.subr.mxu0 0.0
      %1214 = vmatpush1.msra.mxu0 0.0
      %1215 = vmatprep.subr.mxu0 0.0
      %1216 = vmatpush1.msra.mxu0 0.0
      %1217 = vmatprep.subr.mxu0 0.0
      %1218 = vmatpush1.msra.mxu0 0.0
      %1219 = vmatprep.subr.mxu0 0.0
      %1220 = vmatpush1.msra.mxu0 0.0
      %1221 = vmatprep.subr.mxu0 0.0
      %1222 = vmatpush1.msra.mxu0 %v1184
      %1223 = vmatprep.subr.mxu0 0.0
      %1224 = vmatpush1.msra.mxu0 %v1183
      %1225 = vmatprep.subr.mxu0 0.0
      %1226 = vmatpush1.msra.mxu0 %v1182
      %1227 = vmatprep.subr.mxu0 0.0
      %1228 = vmatpush1.msra.mxu0 %v1181
      %1229 = vmatprep.subr.mxu0 0.0
      %1230 = vmatpush1.msra.mxu0 %v1180
      %1231 = vmatprep.subr.mxu0 0.0
      %1232 = vmatpush1.msra.mxu0 %v1179
      %1233 = vmatprep.subr.mxu0 0.0
      %1234 = vmatpush1.msra.mxu0 %v1178
      %1235 = vmatprep.subr.mxu0 0.0
      %1236 = vmatpush1.msra.mxu0 %v1177
      %1237 = vmatprep.subr.mxu0 0.0
      %1238 = vmatpush2.msra.mxu0 0.0
      %1239 = vmatprep.subr.mxu0 0.0
      %1240 = vmatpush2.msra.mxu0 0.0
      %1241 = vmatprep.subr.mxu0 0.0
      %1242 = vmatpush2.msra.mxu0 0.0
      %1243 = vmatprep.subr.mxu0 0.0
      %1244 = vmatpush2.msra.mxu0 0.0
      %1245 = vmatprep.subr.mxu0 0.0
      %1246 = vmatpush2.msra.mxu0 0.0
      %1247 = vmatprep.subr.mxu0 0.0
      %1248 = vmatpush2.msra.mxu0 0.0
      %1249 = vmatprep.subr.mxu0 0.0
      %1250 = vmatpush2.msra.mxu0 0.0
      %1251 = vmatprep.subr.mxu0 0.0
      %1252 = vmatpush2.msra.mxu0 0.0
      %1253 = vmatprep.subr.mxu0 0.0
      %1254 = vmatpush2.msra.mxu0 0.0
      %1255 = vmatprep.subr.mxu0 0.0
      %1256 = vmatpush2.msra.mxu0 0.0
      %1257 = vmatprep.subr.mxu0 0.0
      %1258 = vmatpush2.msra.mxu0 0.0
      %1259 = vmatprep.subr.mxu0 0.0
      %1260 = vmatpush2.msra.mxu0 0.0
      %1261 = vmatprep.subr.mxu0 0.0
      %1262 = vmatpush2.msra.mxu0 0.0
      %1263 = vmatprep.subr.mxu0 0.0
      %1264 = vmatpush2.msra.mxu0 0.0
      %1265 = vmatprep.subr.mxu0 0.0
      %1266 = vmatpush2.msra.mxu0 0.0
      %1267 = vmatprep.subr.mxu0 0.0
      %1268 = vmatpush2.msra.mxu0 0.0
      %1269 = vmatprep.mubr.f32.mxu0 0.0
      %1270 = vmatmul.mubr.f32.gmra.mxu0 %v1194
      %v1271 = vpop.f32.mrf.mxu0
      %v1272 = vadd.f32 %v1190, %v1271
      %v1273 = vpop.f32.mrf.mxu0
      %1274 = vmatprep.mubr.f32.mxu0 0.0
      %1275 = vmatmul.mubr.f32.gmra.mxu0 %v1197
      %v1276 = vpop.f32.mrf.mxu0
      %v1277 = vadd.f32 %v1190, %v1276
      %v1278 = vpop.f32.mrf.mxu0
      %1279 = vmatprep.mubr.f32.mxu0 0.0
      %1280 = vmatmul.mubr.f32.gmra.mxu0 %v1200
      %v1281 = vpop.f32.mrf.mxu0
      %v1282 = vadd.f32 %v1190, %v1281
      %v1283 = vpop.f32.mrf.mxu0
      %1284 = vmatprep.mubr.f32.mxu0 0.0
      %1285 = vmatmul.mubr.f32.gmra.mxu0 %v1203
      %v1286 = vpop.f32.mrf.mxu0
      %v1287 = vadd.f32 %v1190, %v1286
      %v1288 = vpop.f32.mrf.mxu0
      %1289 = vdwg.mxu0
      %v1290 = vadd.f32 %v1061, %v1272
      %v1291 = vadd.f32 %v1062, %v1277
      %v1292 = vadd.f32 %v1063, %v1282
      %v1293 = vadd.f32 %v1064, %v1287
      %v1294 = vld [vmem:[%s11] sm:$0x1]
      %v1295 = vld [vmem:[%s12] sm:$0x1]
      %v1296 = vsel %vm510, %v1290, 0.0
      %1297 = vadd.xlane.f32.xlu0 %v1296
      %v1298 = vpop.xlane.xlu0 %1297
      %v1299 = vsel %vm510, %v1291, 0.0
      %1300 = vadd.xlane.f32.xlu0 %v1299
      %v1301 = vpop.xlane.xlu0 %1300
      %v1302 = vsel %vm510, %v1292, 0.0
      %1303 = vadd.xlane.f32.xlu0 %v1302
      %v1304 = vpop.xlane.xlu0 %1303
      %v1305 = vsel %vm510, %v1293, 0.0
      %1306 = vadd.xlane.f32.xlu0 %v1305
      %v1307 = vpop.xlane.xlu0 %1306
      %v1308 = vmul.f32 %v1298, %v1004
      %v1309 = vmul.f32 %v1301, %v1004
      %v1310 = vmul.f32 %v1304, %v1004
      %v1311 = vmul.f32 %v1307, %v1004
      %v1312 = vsub.f32 %v1290, %v1308
      %v1313 = vsub.f32 %v1291, %v1309
      %v1314 = vsub.f32 %v1292, %v1310
      %v1315 = vsub.f32 %v1293, %v1311
      %v1316 = vmul.f32 %v1312, %v1312
      %v1317 = vmul.f32 %v1313, %v1313
      %v1318 = vmul.f32 %v1314, %v1314
      %v1319 = vmul.f32 %v1315, %v1315
      %v1320 = vsel %vm510, %v1316, 0.0
      %1321 = vadd.xlane.f32.xlu0 %v1320
      %v1322 = vpop.xlane.xlu0 %1321
      %v1323 = vsel %vm510, %v1317, 0.0
      %1324 = vadd.xlane.f32.xlu0 %v1323
      %v1325 = vpop.xlane.xlu0 %1324
      %v1326 = vsel %vm510, %v1318, 0.0
      %1327 = vadd.xlane.f32.xlu0 %v1326
      %v1328 = vpop.xlane.xlu0 %1327
      %v1329 = vsel %vm510, %v1319, 0.0
      %1330 = vadd.xlane.f32.xlu0 %v1329
      %v1331 = vpop.xlane.xlu0 %1330
      %v1332 = vmul.f32 %v1322, %v1004
      %v1333 = vmul.f32 %v1325, %v1004
      %v1334 = vmul.f32 %v1328, %v1004
      %v1335 = vmul.f32 %v1331, %v1004
      %v1336 = vadd.f32 %v1332, 1e-05
      %v1337 = vadd.f32 %v1333, 1e-05
      %v1338 = vadd.f32 %v1334, 1e-05
      %v1339 = vadd.f32 %v1335, 1e-05
      %v1340 = vrsqrt.pop %v1336
      %v1341 = vrsqrt.pop %v1337
      %v1342 = vrsqrt.pop %v1338
      %v1343 = vrsqrt.pop %v1339
      %v1344 = vmul.f32 %v1312, %v1340
      %v1345 = vmul.f32 %v1313, %v1341
      %v1346 = vmul.f32 %v1314, %v1342
      %v1347 = vmul.f32 %v1315, %v1343
      %v1349 = vlaneseq
      %v1350 = vshrl.u32 %v1349, 7
      %v1351 = vsub.s32 0, %v1350
      %v1352 = vrot.slane %v1294, %v1351
      %v1354 = vmul.f32 %v1344, %v1352
      %v1355 = vmul.f32 %v1345, %v1352
      %v1356 = vmul.f32 %v1346, %v1352
      %v1357 = vmul.f32 %v1347, %v1352
      %v1359 = vlaneseq
      %v1360 = vshrl.u32 %v1359, 7
      %v1361 = vsub.s32 0, %v1360
      %v1362 = vrot.slane %v1295, %v1361
      %v1364 = vadd.f32 %v1354, %v1362
      %v1365 = vadd.f32 %v1355, %v1362
      %v1366 = vadd.f32 %v1356, %v1362
      %v1367 = vadd.f32 %v1357, %v1362
      %v1368 = vld [vmem:[%s13] sm:$0xff]
      %v1369 = vld [vmem:[%s13 + $0x8] sm:$0xff]
      %v1370 = vld [vmem:[%s13 + $0x10] sm:$0xff]
      %v1371 = vld [vmem:[%s13 + $0x18] sm:$0xff]
      %v1372 = vld [vmem:[%s14] sm:$0x1]
      %v1374 = vlaneseq
      %v1375 = vshrl.u32 %v1374, 7
      %v1376 = vsub.s32 0, %v1375
      %v1377 = vrot.slane %v1372, %v1376
      %v1380 = vsel %vm510, %v1364, 0
      %v1383 = vsel %vm510, %v1365, 0
      %v1386 = vsel %vm510, %v1366, 0
      %v1389 = vsel %vm510, %v1367, 0
      %1391 = vmatprep.subr.mxu0 0.0
      %1392 = vmatpush1.msra.mxu0 0.0
      %1393 = vmatprep.subr.mxu0 0.0
      %1394 = vmatpush1.msra.mxu0 0.0
      %1395 = vmatprep.subr.mxu0 0.0
      %1396 = vmatpush1.msra.mxu0 0.0
      %1397 = vmatprep.subr.mxu0 0.0
      %1398 = vmatpush1.msra.mxu0 0.0
      %1399 = vmatprep.subr.mxu0 0.0
      %1400 = vmatpush1.msra.mxu0 0.0
      %1401 = vmatprep.subr.mxu0 0.0
      %1402 = vmatpush1.msra.mxu0 0.0
      %1403 = vmatprep.subr.mxu0 0.0
      %1404 = vmatpush1.msra.mxu0 0.0
      %1405 = vmatprep.subr.mxu0 0.0
      %1406 = vmatpush1.msra.mxu0 0.0
      %1407 = vmatprep.subr.mxu0 0.0
      %1408 = vmatpush1.msra.mxu0 0.0
      %1409 = vmatprep.subr.mxu0 0.0
      %1410 = vmatpush1.msra.mxu0 0.0
      %1411 = vmatprep.subr.mxu0 0.0
      %1412 = vmatpush1.msra.mxu0 0.0
      %1413 = vmatprep.subr.mxu0 0.0
      %1414 = vmatpush1.msra.mxu0 0.0
      %1415 = vmatprep.subr.mxu0 0.0
      %1416 = vmatpush1.msra.mxu0 %v1371
      %1417 = vmatprep.subr.mxu0 0.0
      %1418 = vmatpush1.msra.mxu0 %v1370
      %1419 = vmatprep.subr.mxu0 0.0
      %1420 = vmatpush1.msra.mxu0 %v1369
      %1421 = vmatprep.subr.mxu0 0.0
      %1422 = vmatpush1.msra.mxu0 %v1368
      %1423 = vmatprep.subr.mxu0 0.0
      %1424 = vmatpush2.msra.mxu0 0.0
      %1425 = vmatprep.subr.mxu0 0.0
      %1426 = vmatpush2.msra.mxu0 0.0
      %1427 = vmatprep.subr.mxu0 0.0
      %1428 = vmatpush2.msra.mxu0 0.0
      %1429 = vmatprep.subr.mxu0 0.0
      %1430 = vmatpush2.msra.mxu0 0.0
      %1431 = vmatprep.subr.mxu0 0.0
      %1432 = vmatpush2.msra.mxu0 0.0
      %1433 = vmatprep.subr.mxu0 0.0
      %1434 = vmatpush2.msra.mxu0 0.0
      %1435 = vmatprep.subr.mxu0 0.0
      %1436 = vmatpush2.msra.mxu0 0.0
      %1437 = vmatprep.subr.mxu0 0.0
      %1438 = vmatpush2.msra.mxu0 0.0
      %1439 = vmatprep.subr.mxu0 0.0
      %1440 = vmatpush2.msra.mxu0 0.0
      %1441 = vmatprep.subr.mxu0 0.0
      %1442 = vmatpush2.msra.mxu0 0.0
      %1443 = vmatprep.subr.mxu0 0.0
      %1444 = vmatpush2.msra.mxu0 0.0
      %1445 = vmatprep.subr.mxu0 0.0
      %1446 = vmatpush2.msra.mxu0 0.0
      %1447 = vmatprep.subr.mxu0 0.0
      %1448 = vmatpush2.msra.mxu0 0.0
      %1449 = vmatprep.subr.mxu0 0.0
      %1450 = vmatpush2.msra.mxu0 0.0
      %1451 = vmatprep.subr.mxu0 0.0
      %1452 = vmatpush2.msra.mxu0 0.0
      %1453 = vmatprep.subr.mxu0 0.0
      %1454 = vmatpush2.msra.mxu0 0.0
      %1455 = vmatprep.mubr.f32.mxu0 0.0
      %1456 = vmatmul.mubr.f32.gmra.mxu0 %v1380
      %v1457 = vpop.f32.mrf.mxu0
      %v1458 = vadd.f32 %v1377, %v1457
      %v1459 = vpop.f32.mrf.mxu0
      %1460 = vmatprep.mubr.f32.mxu0 0.0
      %1461 = vmatmul.mubr.f32.gmra.mxu0 %v1383
      %v1462 = vpop.f32.mrf.mxu0
      %v1463 = vadd.f32 %v1377, %v1462
      %v1464 = vpop.f32.mrf.mxu0
      %1465 = vmatprep.mubr.f32.mxu0 0.0
      %1466 = vmatmul.mubr.f32.gmra.mxu0 %v1386
      %v1467 = vpop.f32.mrf.mxu0
      %v1468 = vadd.f32 %v1377, %v1467
      %v1469 = vpop.f32.mrf.mxu0
      %1470 = vmatprep.mubr.f32.mxu0 0.0
      %1471 = vmatmul.mubr.f32.gmra.mxu0 %v1389
      %v1472 = vpop.f32.mrf.mxu0
      %v1473 = vadd.f32 %v1377, %v1472
      %v1474 = vpop.f32.mrf.mxu0
      %1475 = vdwg.mxu0
      %vm1476 = vcmask 130048
      %1477 = vst.msk [vmem:[%s494] sm:$0xff] %vm1476, %v1458
      %1478 = vst.msk [vmem:[%s494 + $0x8] sm:$0xff] %vm1476, %v1463
      %1479 = vst.msk [vmem:[%s494 + $0x10] sm:$0xff] %vm1476, %v1468
      %1480 = vst.msk [vmem:[%s494 + $0x18] sm:$0xff] %vm1476, %v1473
      %p1481 = scmp.lt.s32.totalorder %s26, 1
      %s1482 = scalar_select %p1481, %s26, 1
      %s1483 = smul.addr %s1482, 4
      %s1484 = smul.addr %s1483, 8
      %s1485 = scalar_lea.vmem %s15, %s1484
      // Predicated region
      $region81: #{prompt_tts_forward.5} parent=79 // pred_check
        %p1486 = pneg %p364
      $region82: #{prompt_tts_forward.5} parent=79 // pred_check_branch
        %1488 = sbr.rel (%p1486) target = $region84
      $region83: #{prompt_tts_forward.5} parent=79 // pred_region
        _
      $region84: #{prompt_tts_forward.5} parent=79 // pred_fallthru
        _
    $region80: #{prompt_tts_forward.5} parent=5 // pred_fallthru
      _
    %p1489 = scmp.le.s32.totalorder 2, %s21
    // Predicated region
    $region85: #{prompt_tts_forward.5} parent=5 // pred_check
      %p1490 = pneg %p1489
    $region86: #{prompt_tts_forward.5} parent=5 // pred_check_branch
      %1492 = sbr.rel (%p1490) target = $region88
    $region87: #{prompt_tts_forward.5} parent=5 // pred_region
      %s1493 = ssub.s32 %s21, 2
      // Predicated region
      $region89: #{prompt_tts_forward.5} parent=87 // pred_check
        %p1494 = pneg %p370
      $region90: #{prompt_tts_forward.5} parent=87 // pred_check_branch
        %1496 = sbr.rel (%p1494) target = $region92
      $region91: #{prompt_tts_forward.5} parent=87 // pred_region
        %p1497 = scmp.lt.s32.totalorder %s27, 1
        %s1498 = scalar_select %p1497, %s27, 1
        %s1499 = smul.addr %s1498, 4
        %s1500 = smul.addr %s1499, 8
        %s1501 = scalar_lea.vmem %s15, %s1500
      $region92: #{prompt_tts_forward.5} parent=87 // pred_fallthru
        _
    $region88: #{prompt_tts_forward.5} parent=5 // pred_fallthru
      _
  $region6: #{prompt_tts_forward.5} parent=0 // loop_footer
    %s25 = sadd.s32 1, %s21
  $region7: #{prompt_tts_forward.5} parent=0 // loop_footer_branch
    %20 = sbr.rel target = $region3
  $region8: #{prompt_tts_forward.5} parent=0 // loop_exit
    _

// kernel: prompt_tts_forward.4
$region0: #{prompt_tts_forward.4}
  #allocation0 [shape = 'u32[]', space=smem, size = 0x4, offset = 0x4, fixed_abs, tag = 'smem constant byte address 0x4 - core index']
  #allocation1 [shape = 'u32[144,128]{1,0:T(1,128)}', space=vmem, size = 0x12000, scoped, tag = 'internal scratch']
  %s0 = inlined_call_operand.vmem [shape: f32[2,8,32], index: 0, kind: input, shape index: {}]
  %s1 = inlined_call_operand.vmem [shape: f32[2,1,32], index: 1, kind: input, shape index: {}]
  %s2 = inlined_call_operand.vmem [shape: f32[2,1,32], index: 2, kind: input, shape index: {}]
  %s3 = inlined_call_operand.hbm [shape: f32[2,1,32], index: 3, kind: input, shape index: {}]
  %s4 = inlined_call_operand.vmem [shape: f32[128,32], index: 4, kind: input, shape index: {}]
  %s5 = inlined_call_operand.vmem [shape: f32[1,32], index: 5, kind: input, shape index: {}, may-alias: {5,17}]
  %s6 = inlined_call_operand.hbm [shape: f32[3,32,96], index: 6, kind: input, shape index: {}]
  %s7 = inlined_call_operand.vmem [shape: f32[1,96], index: 7, kind: input, shape index: {}, may-alias: {7,9,11,13}]
  %s8 = inlined_call_operand.vmem [shape: f32[1,96], index: 8, kind: input, shape index: {}, may-alias: {8,12}]
  %s9 = inlined_call_operand.vmem [shape: f32[1,96], index: 9, kind: input, shape index: {}, may-alias: {7,9,11,13}]
  %s10 = inlined_call_operand.vmem [shape: f32[3,96,96], index: 10, kind: input, shape index: {}]
  %s11 = inlined_call_operand.vmem [shape: f32[1,96], index: 11, kind: input, shape index: {}, may-alias: {7,9,11,13}]
  %s12 = inlined_call_operand.vmem [shape: f32[1,96], index: 12, kind: input, shape index: {}, may-alias: {8,12}]
  %s13 = inlined_call_operand.vmem [shape: f32[1,96], index: 13, kind: input, shape index: {}, may-alias: {7,9,11,13}]
  %s14 = inlined_call_operand.hbm [shape: f32[96,3], index: 14, kind: input, shape index: {}]
  %s15 = inlined_call_operand.vmem [shape: f32[1,3], index: 15, kind: input, shape index: {}]
  %s16 = inlined_call_operand.hbm [shape: f32[3,2,32], index: 16, kind: input, shape index: {}]
  %s17 = inlined_call_operand.vmem [shape: f32[1,32], index: 17, kind: input, shape index: {}, may-alias: {5,17}]
  %s18 = inlined_call_operand.vmem [shape: f32[2,8,32], index: 18, kind: output, shape index: {0}]
  %s19 = inlined_call_operand.vmem [shape: f32[2,8,1], index: 19, kind: output, shape index: {1}]
  %20 = xla_tuple %s18, %s19
  %s21 = sld [smem:[#allocation0]]
  $region129: #{prompt_tts_forward.4} parent=0
    _
  %s23 = ssub.s32 1, %s21
  %s24 = scalar_select 0, %s23, %s21
  $region1: #{prompt_tts_forward.4} parent=0
    #allocation2 [shape = 'u8[1024]{0}', space=vmem, size = 0x400, scoped, tag = 'input window, operand 3']
    #allocation3 [shape = 's32[2]{0}', space=sflag, size = 0x8, scoped, tag = 'scoped memory for prompt_tts_forward.4']
    #allocation4 [shape = 'u8[49152]{0}', space=vmem, size = 0xc000, scoped, tag = 'input window, operand 6, single buffered']
    #allocation5 [shape = 's32[1]{0}', space=sflag, size = 0x4, scoped, tag = 'scoped memory for prompt_tts_forward.4']
    #allocation6 [shape = 'u8[49152]{0}', space=vmem, size = 0xc000, scoped, tag = 'input window, operand 14, single buffered']
    #allocation7 [shape = 'u8[3072]{0}', space=vmem, size = 0xc00, scoped, tag = 'input window, operand 16, single buffered']
    #allocation8 [shape = 's32[1]{0}', space=sflag, size = 0x4, scoped, tag = 'scoped memory for prompt_tts_forward.4']
    %25 = vsyncpa [#allocation3], 0
    %s26 = scalar_lea.sflag [#allocation3], 1
    %27 = vsyncpa %s26, 0
    %28 = vsyncpa [#allocation5], 0
    %29 = vsyncpa [#allocation8], 0
    loop: start=0, step=1, limit=4
    $region2: #{prompt_tts_forward.4} parent=1 // loop_pre_header
      _
    $region3: #{prompt_tts_forward.4} parent=1 // loop_header
      %s31 = sphi 0, %s35
      %p32 = scmp.ge.s32.totalorder %s31, 4
      %s41 = sphi 0, %s43
      %s44 = sphi 0, %s41
      %s45 = sphi 0, %s44
      %s61 = sphi 0, %s45
      %s67 = sphi 0, %s69
      %s70 = sphi 0, %s67
      %s71 = sphi 0, %s70
      %s87 = sphi 0, %s71
      %s93 = sphi 0, %s95
      %s96 = sphi 0, %s93
      %s97 = sphi 0, %s96
      %s113 = sphi 0, %s97
      %s119 = sphi 0, %s121
      %s122 = sphi 0, %s119
      %s123 = sphi 0, %s122
      %s139 = sphi 0, %s123
      %s143 = sphi 0, %s143
      %s145 = sphi 0, %s143
      %s146 = sphi 0, %s145
      %s160 = sphi 0, %s146
      %s164 = sphi 0, %s164
      %s166 = sphi 0, %s164
      %s167 = sphi 0, %s166
      %s181 = sphi 0, %s167
      %s185 = sphi 0, %s185
      %s187 = sphi 0, %s185
      %s188 = sphi 0, %s187
      %s202 = sphi 0, %s188
      %s206 = sphi 0, %s206
      %s208 = sphi 0, %s206
      %s209 = sphi 0, %s208
      %s223 = sphi 0, %s209
      %s227 = sphi 0, %s227
      %s229 = sphi 0, %s227
      %s230 = sphi 0, %s229
      %s244 = sphi 0, %s230
      %s248 = sphi 0, %s248
      %s250 = sphi 0, %s248
      %s251 = sphi 0, %s250
      %s265 = sphi 0, %s251
      %s269 = sphi 0, %s269
      %s271 = sphi 0, %s269
      %s272 = sphi 0, %s271
      %s286 = sphi 0, %s272
      %s290 = sphi 0, %s290
      %s292 = sphi 0, %s290
      %s293 = sphi 0, %s292
      %s307 = sphi 0, %s293
      %s311 = sphi 0, %s311
      %s313 = sphi 0, %s311
      %s314 = sphi 0, %s313
      %s328 = sphi 0, %s314
      %s332 = sphi 0, %s332
      %s334 = sphi 0, %s332
      %s335 = sphi 0, %s334
      %s349 = sphi 0, %s335
      %s353 = sphi 0, %s353
      %s355 = sphi 0, %s353
      %s356 = sphi 0, %s355
      %s370 = sphi 0, %s356
      %s374 = sphi 0, %s374
      %s376 = sphi 0, %s374
      %s377 = sphi 0, %s376
      %s391 = sphi 0, %s377
      %s395 = sphi 0, %s395
      %s397 = sphi 0, %s395
      %s398 = sphi 0, %s397
      %s412 = sphi 0, %s398
      %s416 = sphi 0, %s416
      %s418 = sphi 0, %s416
      %s419 = sphi 0, %s418
      %s433 = sphi 0, %s419
      %s439 = sphi 0, %s441
      %s442 = sphi 0, %s439
      %s443 = sphi 0, %s442
      %s459 = sphi 0, %s443
      %s465 = sphi 0, %s467
      %s468 = sphi 0, %s465
      %s469 = sphi 0, %s468
      %s485 = sphi 0, %s469
    $region4: #{prompt_tts_forward.4} parent=1 // loop_header_branch
      %34 = sbr.rel (%p32) target = $region8
    $region5: #{prompt_tts_forward.4} parent=1 // loop_body
      %s36 = ssub.s32 %s31, 1
      %s37 = ssub.s32 %s31, 2
      %s38 = sadd.s32 %s31, 1
      %s39 = ssub.s32 %s31, %s38
      %p40 = scmp.eq.s32.totalorder %s39, 0
      %s42 = sadd.s32 %s41, 1
      %s43 = scalar_select %p40, %s41, %s42
      %p46 = pneg %p40
      %p47 = scmp.eq.s32.totalorder %s31, 1
      %p48 = por %p46, %p47
      %p49 = scmp.ne.s32.totalorder %s41, %s44
      %p50 = scmp.eq.s32.totalorder %s31, 0
      %p51 = por %p49, %p50
      %p52 = scmp.ne.s32.totalorder %s41, %s44
      %p53 = scmp.eq.s32.totalorder %s36, 1
      %p54 = por %p52, %p53
      %p55 = scmp.ne.s32.totalorder %s44, %s45
      %p56 = scmp.eq.s32.totalorder %s36, 0
      %p57 = por %p55, %p56
      %p58 = scmp.ne.s32.totalorder %s44, %s45
      %p59 = scmp.eq.s32.totalorder %s37, 1
      %p60 = por %p58, %p59
      %p62 = scmp.ne.s32.totalorder %s45, %s61
      %p63 = scmp.eq.s32.totalorder %s37, 0
      %p64 = por %p62, %p63
      %s65 = ssub.s32 %s31, %s38
      %p66 = scmp.eq.s32.totalorder %s65, 0
      %s68 = sadd.s32 %s67, 1
      %s69 = scalar_select %p66, %s67, %s68
      %p72 = pneg %p66
      %p73 = scmp.eq.s32.totalorder %s31, 1
      %p74 = por %p72, %p73
      %p75 = scmp.ne.s32.totalorder %s67, %s70
      %p76 = scmp.eq.s32.totalorder %s31, 0
      %p77 = por %p75, %p76
      %p78 = scmp.ne.s32.totalorder %s67, %s70
      %p79 = scmp.eq.s32.totalorder %s36, 1
      %p80 = por %p78, %p79
      %p81 = scmp.ne.s32.totalorder %s70, %s71
      %p82 = scmp.eq.s32.totalorder %s36, 0
      %p83 = por %p81, %p82
      %p84 = scmp.ne.s32.totalorder %s70, %s71
      %p85 = scmp.eq.s32.totalorder %s37, 1
      %p86 = por %p84, %p85
      %p88 = scmp.ne.s32.totalorder %s71, %s87
      %p89 = scmp.eq.s32.totalorder %s37, 0
      %p90 = por %p88, %p89
      %s91 = ssub.s32 %s31, %s38
      %p92 = scmp.eq.s32.totalorder %s91, 0
      %s94 = sadd.s32 %s93, 1
      %s95 = scalar_select %p92, %s93, %s94
      %p98 = pneg %p92
      %p99 = scmp.eq.s32.totalorder %s31, 1
      %p100 = por %p98, %p99
      %p101 = scmp.ne.s32.totalorder %s93, %s96
      %p102 = scmp.eq.s32.totalorder %s31, 0
      %p103 = por %p101, %p102
      %p104 = scmp.ne.s32.totalorder %s93, %s96
      %p105 = scmp.eq.s32.totalorder %s36, 1
      %p106 = por %p104, %p105
      %p107 = scmp.ne.s32.totalorder %s96, %s97
      %p108 = scmp.eq.s32.totalorder %s36, 0
      %p109 = por %p107, %p108
      %p110 = scmp.ne.s32.totalorder %s96, %s97
      %p111 = scmp.eq.s32.totalorder %s37, 1
      %p112 = por %p110, %p111
      %p114 = scmp.ne.s32.totalorder %s97, %s113
      %p115 = scmp.eq.s32.totalorder %s37, 0
      %p116 = por %p114, %p115
      %s117 = ssub.s32 %s31, %s38
      %p118 = scmp.eq.s32.totalorder %s117, 0
      %s120 = sadd.s32 %s119, 1
      %s121 = scalar_select %p118, %s119, %s120
      %p124 = pneg %p118
      %p125 = scmp.eq.s32.totalorder %s31, 1
      %p126 = por %p124, %p125
      %p127 = scmp.ne.s32.totalorder %s119, %s122
      %p128 = scmp.eq.s32.totalorder %s31, 0
      %p129 = por %p127, %p128
      %p130 = scmp.ne.s32.totalorder %s119, %s122
      %p131 = scmp.eq.s32.totalorder %s36, 1
      %p132 = por %p130, %p131
      %p133 = scmp.ne.s32.totalorder %s122, %s123
      %p134 = scmp.eq.s32.totalorder %s36, 0
      %p135 = por %p133, %p134
      %p136 = scmp.ne.s32.totalorder %s122, %s123
      %p137 = scmp.eq.s32.totalorder %s37, 1
      %p138 = por %p136, %p137
      %p140 = scmp.ne.s32.totalorder %s123, %s139
      %p141 = scmp.eq.s32.totalorder %s37, 0
      %p142 = por %p140, %p141
      %s144 = sadd.s32 %s143, 1
      %p147 = scmp.eq.s32.totalorder %s31, 1
      %p148 = scmp.ne.s32.totalorder %s143, %s145
      %p149 = scmp.eq.s32.totalorder %s31, 0
      %p150 = por %p148, %p149
      %p151 = scmp.ne.s32.totalorder %s143, %s145
      %p152 = scmp.eq.s32.totalorder %s36, 1
      %p153 = por %p151, %p152
      %p154 = scmp.ne.s32.totalorder %s145, %s146
      %p155 = scmp.eq.s32.totalorder %s36, 0
      %p156 = por %p154, %p155
      %p157 = scmp.ne.s32.totalorder %s145, %s146
      %p158 = scmp.eq.s32.totalorder %s37, 1
      %p159 = por %p157, %p158
      %p161 = scmp.ne.s32.totalorder %s146, %s160
      %p162 = scmp.eq.s32.totalorder %s37, 0
      %p163 = por %p161, %p162
      %s165 = sadd.s32 %s164, 1
      %p168 = scmp.eq.s32.totalorder %s31, 1
      %p169 = scmp.ne.s32.totalorder %s164, %s166
      %p170 = scmp.eq.s32.totalorder %s31, 0
      %p171 = por %p169, %p170
      %p172 = scmp.ne.s32.totalorder %s164, %s166
      %p173 = scmp.eq.s32.totalorder %s36, 1
      %p174 = por %p172, %p173
      %p175 = scmp.ne.s32.totalorder %s166, %s167
      %p176 = scmp.eq.s32.totalorder %s36, 0
      %p177 = por %p175, %p176
      %p178 = scmp.ne.s32.totalorder %s166, %s167
      %p179 = scmp.eq.s32.totalorder %s37, 1
      %p180 = por %p178, %p179
      %p182 = scmp.ne.s32.totalorder %s167, %s181
      %p183 = scmp.eq.s32.totalorder %s37, 0
      %p184 = por %p182, %p183
      %s186 = sadd.s32 %s185, 1
      %p189 = scmp.eq.s32.totalorder %s31, 1
      %p190 = scmp.ne.s32.totalorder %s185, %s187
      %p191 = scmp.eq.s32.totalorder %s31, 0
      %p192 = por %p190, %p191
      %p193 = scmp.ne.s32.totalorder %s185, %s187
      %p194 = scmp.eq.s32.totalorder %s36, 1
      %p195 = por %p193, %p194
      %p196 = scmp.ne.s32.totalorder %s187, %s188
      %p197 = scmp.eq.s32.totalorder %s36, 0
      %p198 = por %p196, %p197
      %p199 = scmp.ne.s32.totalorder %s187, %s188
      %p200 = scmp.eq.s32.totalorder %s37, 1
      %p201 = por %p199, %p200
      %p203 = scmp.ne.s32.totalorder %s188, %s202
      %p204 = scmp.eq.s32.totalorder %s37, 0
      %p205 = por %p203, %p204
      %s207 = sadd.s32 %s206, 1
      %p210 = scmp.eq.s32.totalorder %s31, 1
      %p211 = scmp.ne.s32.totalorder %s206, %s208
      %p212 = scmp.eq.s32.totalorder %s31, 0
      %p213 = por %p211, %p212
      %p214 = scmp.ne.s32.totalorder %s206, %s208
      %p215 = scmp.eq.s32.totalorder %s36, 1
      %p216 = por %p214, %p215
      %p217 = scmp.ne.s32.totalorder %s208, %s209
      %p218 = scmp.eq.s32.totalorder %s36, 0
      %p219 = por %p217, %p218
      %p220 = scmp.ne.s32.totalorder %s208, %s209
      %p221 = scmp.eq.s32.totalorder %s37, 1
      %p222 = por %p220, %p221
      %p224 = scmp.ne.s32.totalorder %s209, %s223
      %p225 = scmp.eq.s32.totalorder %s37, 0
      %p226 = por %p224, %p225
      %s228 = sadd.s32 %s227, 1
      %p231 = scmp.eq.s32.totalorder %s31, 1
      %p232 = scmp.ne.s32.totalorder %s227, %s229
      %p233 = scmp.eq.s32.totalorder %s31, 0
      %p234 = por %p232, %p233
      %p235 = scmp.ne.s32.totalorder %s227, %s229
      %p236 = scmp.eq.s32.totalorder %s36, 1
      %p237 = por %p235, %p236
      %p238 = scmp.ne.s32.totalorder %s229, %s230
      %p239 = scmp.eq.s32.totalorder %s36, 0
      %p240 = por %p238, %p239
      %p241 = scmp.ne.s32.totalorder %s229, %s230
      %p242 = scmp.eq.s32.totalorder %s37, 1
      %p243 = por %p241, %p242
      %p245 = scmp.ne.s32.totalorder %s230, %s244
      %p246 = scmp.eq.s32.totalorder %s37, 0
      %p247 = por %p245, %p246
      %s249 = sadd.s32 %s248, 1
      %p252 = scmp.eq.s32.totalorder %s31, 1
      %p253 = scmp.ne.s32.totalorder %s248, %s250
      %p254 = scmp.eq.s32.totalorder %s31, 0
      %p255 = por %p253, %p254
      %p256 = scmp.ne.s32.totalorder %s248, %s250
      %p257 = scmp.eq.s32.totalorder %s36, 1
      %p258 = por %p256, %p257
      %p259 = scmp.ne.s32.totalorder %s250, %s251
      %p260 = scmp.eq.s32.totalorder %s36, 0
      %p261 = por %p259, %p260
      %p262 = scmp.ne.s32.totalorder %s250, %s251
      %p263 = scmp.eq.s32.totalorder %s37, 1
      %p264 = por %p262, %p263
      %p266 = scmp.ne.s32.totalorder %s251, %s265
      %p267 = scmp.eq.s32.totalorder %s37, 0
      %p268 = por %p266, %p267
      %s270 = sadd.s32 %s269, 1
      %p273 = scmp.eq.s32.totalorder %s31, 1
      %p274 = scmp.ne.s32.totalorder %s269, %s271
      %p275 = scmp.eq.s32.totalorder %s31, 0
      %p276 = por %p274, %p275
      %p277 = scmp.ne.s32.totalorder %s269, %s271
      %p278 = scmp.eq.s32.totalorder %s36, 1
      %p279 = por %p277, %p278
      %p280 = scmp.ne.s32.totalorder %s271, %s272
      %p281 = scmp.eq.s32.totalorder %s36, 0
      %p282 = por %p280, %p281
      %p283 = scmp.ne.s32.totalorder %s271, %s272
      %p284 = scmp.eq.s32.totalorder %s37, 1
      %p285 = por %p283, %p284
      %p287 = scmp.ne.s32.totalorder %s272, %s286
      %p288 = scmp.eq.s32.totalorder %s37, 0
      %p289 = por %p287, %p288
      %s291 = sadd.s32 %s290, 1
      %p294 = scmp.eq.s32.totalorder %s31, 1
      %p295 = scmp.ne.s32.totalorder %s290, %s292
      %p296 = scmp.eq.s32.totalorder %s31, 0
      %p297 = por %p295, %p296
      %p298 = scmp.ne.s32.totalorder %s290, %s292
      %p299 = scmp.eq.s32.totalorder %s36, 1
      %p300 = por %p298, %p299
      %p301 = scmp.ne.s32.totalorder %s292, %s293
      %p302 = scmp.eq.s32.totalorder %s36, 0
      %p303 = por %p301, %p302
      %p304 = scmp.ne.s32.totalorder %s292, %s293
      %p305 = scmp.eq.s32.totalorder %s37, 1
      %p306 = por %p304, %p305
      %p308 = scmp.ne.s32.totalorder %s293, %s307
      %p309 = scmp.eq.s32.totalorder %s37, 0
      %p310 = por %p308, %p309
      %s312 = sadd.s32 %s311, 1
      %p315 = scmp.eq.s32.totalorder %s31, 1
      %p316 = scmp.ne.s32.totalorder %s311, %s313
      %p317 = scmp.eq.s32.totalorder %s31, 0
      %p318 = por %p316, %p317
      %p319 = scmp.ne.s32.totalorder %s311, %s313
      %p320 = scmp.eq.s32.totalorder %s36, 1
      %p321 = por %p319, %p320
      %p322 = scmp.ne.s32.totalorder %s313, %s314
      %p323 = scmp.eq.s32.totalorder %s36, 0
      %p324 = por %p322, %p323
      %p325 = scmp.ne.s32.totalorder %s313, %s314
      %p326 = scmp.eq.s32.totalorder %s37, 1
      %p327 = por %p325, %p326
      %p329 = scmp.ne.s32.totalorder %s314, %s328
      %p330 = scmp.eq.s32.totalorder %s37, 0
      %p331 = por %p329, %p330
      %s333 = sadd.s32 %s332, 1
      %p336 = scmp.eq.s32.totalorder %s31, 1
      %p337 = scmp.ne.s32.totalorder %s332, %s334
      %p338 = scmp.eq.s32.totalorder %s31, 0
      %p339 = por %p337, %p338
      %p340 = scmp.ne.s32.totalorder %s332, %s334
      %p341 = scmp.eq.s32.totalorder %s36, 1
      %p342 = por %p340, %p341
      %p343 = scmp.ne.s32.totalorder %s334, %s335
      %p344 = scmp.eq.s32.totalorder %s36, 0
      %p345 = por %p343, %p344
      %p346 = scmp.ne.s32.totalorder %s334, %s335
      %p347 = scmp.eq.s32.totalorder %s37, 1
      %p348 = por %p346, %p347
      %p350 = scmp.ne.s32.totalorder %s335, %s349
      %p351 = scmp.eq.s32.totalorder %s37, 0
      %p352 = por %p350, %p351
      %s354 = sadd.s32 %s353, 1
      %p357 = scmp.eq.s32.totalorder %s31, 1
      %p358 = scmp.ne.s32.totalorder %s353, %s355
      %p359 = scmp.eq.s32.totalorder %s31, 0
      %p360 = por %p358, %p359
      %p361 = scmp.ne.s32.totalorder %s353, %s355
      %p362 = scmp.eq.s32.totalorder %s36, 1
      %p363 = por %p361, %p362
      %p364 = scmp.ne.s32.totalorder %s355, %s356
      %p365 = scmp.eq.s32.totalorder %s36, 0
      %p366 = por %p364, %p365
      %p367 = scmp.ne.s32.totalorder %s355, %s356
      %p368 = scmp.eq.s32.totalorder %s37, 1
      %p369 = por %p367, %p368
      %p371 = scmp.ne.s32.totalorder %s356, %s370
      %p372 = scmp.eq.s32.totalorder %s37, 0
      %p373 = por %p371, %p372
      %s375 = sadd.s32 %s374, 1
      %p378 = scmp.eq.s32.totalorder %s31, 1
      %p379 = scmp.ne.s32.totalorder %s374, %s376
      %p380 = scmp.eq.s32.totalorder %s31, 0
      %p381 = por %p379, %p380
      %p382 = scmp.ne.s32.totalorder %s374, %s376
      %p383 = scmp.eq.s32.totalorder %s36, 1
      %p384 = por %p382, %p383
      %p385 = scmp.ne.s32.totalorder %s376, %s377
      %p386 = scmp.eq.s32.totalorder %s36, 0
      %p387 = por %p385, %p386
      %p388 = scmp.ne.s32.totalorder %s376, %s377
      %p389 = scmp.eq.s32.totalorder %s37, 1
      %p390 = por %p388, %p389
      %p392 = scmp.ne.s32.totalorder %s377, %s391
      %p393 = scmp.eq.s32.totalorder %s37, 0
      %p394 = por %p392, %p393
      %s396 = sadd.s32 %s395, 1
      %p399 = scmp.eq.s32.totalorder %s31, 1
      %p400 = scmp.ne.s32.totalorder %s395, %s397
      %p401 = scmp.eq.s32.totalorder %s31, 0
      %p402 = por %p400, %p401
      %p403 = scmp.ne.s32.totalorder %s395, %s397
      %p404 = scmp.eq.s32.totalorder %s36, 1
      %p405 = por %p403, %p404
      %p406 = scmp.ne.s32.totalorder %s397, %s398
      %p407 = scmp.eq.s32.totalorder %s36, 0
      %p408 = por %p406, %p407
      %p409 = scmp.ne.s32.totalorder %s397, %s398
      %p410 = scmp.eq.s32.totalorder %s37, 1
      %p411 = por %p409, %p410
      %p413 = scmp.ne.s32.totalorder %s398, %s412
      %p414 = scmp.eq.s32.totalorder %s37, 0
      %p415 = por %p413, %p414
      %s417 = sadd.s32 %s416, 1
      %p420 = scmp.eq.s32.totalorder %s31, 1
      %p421 = scmp.ne.s32.totalorder %s416, %s418
      %p422 = scmp.eq.s32.totalorder %s31, 0
      %p423 = por %p421, %p422
      %p424 = scmp.ne.s32.totalorder %s416, %s418
      %p425 = scmp.eq.s32.totalorder %s36, 1
      %p426 = por %p424, %p425
      %p427 = scmp.ne.s32.totalorder %s418, %s419
      %p428 = scmp.eq.s32.totalorder %s36, 0
      %p429 = por %p427, %p428
      %p430 = scmp.ne.s32.totalorder %s418, %s419
      %p431 = scmp.eq.s32.totalorder %s37, 1
      %p432 = por %p430, %p431
      %p434 = scmp.ne.s32.totalorder %s419, %s433
      %p435 = scmp.eq.s32.totalorder %s37, 0
      %p436 = por %p434, %p435
      %s437 = ssub.s32 %s31, %s38
      %p438 = scmp.eq.s32.totalorder %s437, 0
      %s440 = sadd.s32 %s439, 1
      %s441 = scalar_select %p438, %s439, %s440
      %p444 = pneg %p438
      %p445 = scmp.eq.s32.totalorder %s31, 1
      %p446 = por %p444, %p445
      %p447 = scmp.ne.s32.totalorder %s439, %s442
      %p448 = scmp.eq.s32.totalorder %s31, 0
      %p449 = por %p447, %p448
      %p450 = scmp.ne.s32.totalorder %s439, %s442
      %p451 = scmp.eq.s32.totalorder %s36, 1
      %p452 = por %p450, %p451
      %p453 = scmp.ne.s32.totalorder %s442, %s443
      %p454 = scmp.eq.s32.totalorder %s36, 0
      %p455 = por %p453, %p454
      %p456 = scmp.ne.s32.totalorder %s442, %s443
      %p457 = scmp.eq.s32.totalorder %s37, 1
      %p458 = por %p456, %p457
      %p460 = scmp.ne.s32.totalorder %s443, %s459
      %p461 = scmp.eq.s32.totalorder %s37, 0
      %p462 = por %p460, %p461
      %s463 = ssub.s32 %s31, %s38
      %p464 = scmp.eq.s32.totalorder %s463, 0
      %s466 = sadd.s32 %s465, 1
      %s467 = scalar_select %p464, %s465, %s466
      %p470 = pneg %p464
      %p471 = scmp.eq.s32.totalorder %s31, 1
      %p472 = por %p470, %p471
      %p473 = scmp.ne.s32.totalorder %s465, %s468
      %p474 = scmp.eq.s32.totalorder %s31, 0
      %p475 = por %p473, %p474
      %p476 = scmp.ne.s32.totalorder %s465, %s468
      %p477 = scmp.eq.s32.totalorder %s36, 1
      %p478 = por %p476, %p477
      %p479 = scmp.ne.s32.totalorder %s468, %s469
      %p480 = scmp.eq.s32.totalorder %s36, 0
      %p481 = por %p479, %p480
      %p482 = scmp.ne.s32.totalorder %s468, %s469
      %p483 = scmp.eq.s32.totalorder %s37, 1
      %p484 = por %p482, %p483
      %p486 = scmp.ne.s32.totalorder %s469, %s485
      %p487 = scmp.eq.s32.totalorder %s37, 0
      %p488 = por %p486, %p487
      %p489 = scmp.le.s32.totalorder 1, %s31
      %p490 = scmp.lt.s32.totalorder %s31, 3
      %p491 = pnand %p489, %p490
      %p492 = pneg %p491
      // Predicated region
      $region9: #{prompt_tts_forward.4} parent=5 // pred_check
        _
      $region10: #{prompt_tts_forward.4} parent=5 // pred_check_branch
        %494 = sbr.rel (%p491) target = $region12
      $region11: #{prompt_tts_forward.4} parent=5 // pred_region
        %s495 = ssub.s32 %s31, 1
        // Predicated region
        $region13: #{prompt_tts_forward.4} parent=11 // pred_check
          %p496 = pneg %p156
        $region14: #{prompt_tts_forward.4} parent=11 // pred_check_branch
          %498 = sbr.rel (%p496) target = $region16
        $region15: #{prompt_tts_forward.4} parent=11 // pred_region
          _
        $region16: #{prompt_tts_forward.4} parent=11 // pred_fallthru
          _
        // Predicated region
        $region17: #{prompt_tts_forward.4} parent=11 // pred_check
          %p499 = pneg %p177
        $region18: #{prompt_tts_forward.4} parent=11 // pred_check_branch
          %501 = sbr.rel (%p499) target = $region20
        $region19: #{prompt_tts_forward.4} parent=11 // pred_region
          _
        $region20: #{prompt_tts_forward.4} parent=11 // pred_fallthru
          _
        // Predicated region
        $region21: #{prompt_tts_forward.4} parent=11 // pred_check
          %p502 = pneg %p198
        $region22: #{prompt_tts_forward.4} parent=11 // pred_check_branch
          %504 = sbr.rel (%p502) target = $region24
        $region23: #{prompt_tts_forward.4} parent=11 // pred_region
          %s506 = ssub.s32 1536, 1536
          %507 = vsyncadd [#allocation5], %s506
          %s508 = sshll.u32 [#allocation4], 4
          %s509 = int_to_ptr.vmem [resolvable:$true] %s508
          %514 = dma.hbm_to_vmem [thread:$0]  %s6, 1536, %s509, [#allocation5], 128, 128, 8
        $region24: #{prompt_tts_forward.4} parent=11 // pred_fallthru
          _
        // Predicated region
        $region25: #{prompt_tts_forward.4} parent=11 // pred_check
          %p515 = pneg %p219
        $region26: #{prompt_tts_forward.4} parent=11 // pred_check_branch
          %517 = sbr.rel (%p515) target = $region28
        $region27: #{prompt_tts_forward.4} parent=11 // pred_region
          _
        $region28: #{prompt_tts_forward.4} parent=11 // pred_fallthru
          _
        // Predicated region
        $region29: #{prompt_tts_forward.4} parent=11 // pred_check
          %p518 = pneg %p240
        $region30: #{prompt_tts_forward.4} parent=11 // pred_check_branch
          %520 = sbr.rel (%p518) target = $region32
        $region31: #{prompt_tts_forward.4} parent=11 // pred_region
          _
        $region32: #{prompt_tts_forward.4} parent=11 // pred_fallthru
          _
        // Predicated region
        $region33: #{prompt_tts_forward.4} parent=11 // pred_check
          %p521 = pneg %p261
        $region34: #{prompt_tts_forward.4} parent=11 // pred_check_branch
          %523 = sbr.rel (%p521) target = $region36
        $region35: #{prompt_tts_forward.4} parent=11 // pred_region
          _
        $region36: #{prompt_tts_forward.4} parent=11 // pred_fallthru
          _
        // Predicated region
        $region37: #{prompt_tts_forward.4} parent=11 // pred_check
          %p524 = pneg %p282
        $region38: #{prompt_tts_forward.4} parent=11 // pred_check_branch
          %526 = sbr.rel (%p524) target = $region40
        $region39: #{prompt_tts_forward.4} parent=11 // pred_region
          _
        $region40: #{prompt_tts_forward.4} parent=11 // pred_fallthru
          _
        // Predicated region
        $region41: #{prompt_tts_forward.4} parent=11 // pred_check
          %p527 = pneg %p303
        $region42: #{prompt_tts_forward.4} parent=11 // pred_check_branch
          %529 = sbr.rel (%p527) target = $region44
        $region43: #{prompt_tts_forward.4} parent=11 // pred_region
          _
        $region44: #{prompt_tts_forward.4} parent=11 // pred_fallthru
          _
        // Predicated region
        $region45: #{prompt_tts_forward.4} parent=11 // pred_check
          %p530 = pneg %p324
        $region46: #{prompt_tts_forward.4} parent=11 // pred_check_branch
          %532 = sbr.rel (%p530) target = $region48
        $region47: #{prompt_tts_forward.4} parent=11 // pred_region
          _
        $region48: #{prompt_tts_forward.4} parent=11 // pred_fallthru
          _
        // Predicated region
        $region49: #{prompt_tts_forward.4} parent=11 // pred_check
          %p533 = pneg %p345
        $region50: #{prompt_tts_forward.4} parent=11 // pred_check_branch
          %535 = sbr.rel (%p533) target = $region52
        $region51: #{prompt_tts_forward.4} parent=11 // pred_region
          _
        $region52: #{prompt_tts_forward.4} parent=11 // pred_fallthru
          _
        // Predicated region
        $region53: #{prompt_tts_forward.4} parent=11 // pred_check
          %p536 = pneg %p366
        $region54: #{prompt_tts_forward.4} parent=11 // pred_check_branch
          %538 = sbr.rel (%p536) target = $region56
        $region55: #{prompt_tts_forward.4} parent=11 // pred_region
          %s540 = ssub.s32 1536, 1536
          %541 = vsyncadd [#allocation5], %s540
          %s542 = sshll.u32 [#allocation6], 4
          %s543 = int_to_ptr.vmem [resolvable:$true] %s542
          %548 = dma.hbm_to_vmem [thread:$0]  %s14, 1536, %s543, [#allocation5], 128, 128, 8
        $region56: #{prompt_tts_forward.4} parent=11 // pred_fallthru
          _
        // Predicated region
        $region57: #{prompt_tts_forward.4} parent=11 // pred_check
          %p549 = pneg %p387
        $region58: #{prompt_tts_forward.4} parent=11 // pred_check_branch
          %551 = sbr.rel (%p549) target = $region60
        $region59: #{prompt_tts_forward.4} parent=11 // pred_region
          _
        $region60: #{prompt_tts_forward.4} parent=11 // pred_fallthru
          _
        // Predicated region
        $region61: #{prompt_tts_forward.4} parent=11 // pred_check
          %p552 = pneg %p408
        $region62: #{prompt_tts_forward.4} parent=11 // pred_check_branch
          %554 = sbr.rel (%p552) target = $region64
        $region63: #{prompt_tts_forward.4} parent=11 // pred_region
          %s556 = ssub.s32 96, 96
          %557 = vsyncadd [#allocation8], %s556
          %s558 = sshll.u32 [#allocation7], 4
          %s559 = int_to_ptr.vmem [resolvable:$true] %s558
          %564 = dma.hbm_to_vmem [thread:$0]  %s16, 96, %s559, [#allocation8], 32, 32, 2
        $region64: #{prompt_tts_forward.4} parent=11 // pred_fallthru
          _
        // Predicated region
        $region65: #{prompt_tts_forward.4} parent=11 // pred_check
          %p565 = pneg %p429
        $region66: #{prompt_tts_forward.4} parent=11 // pred_check_branch
          %567 = sbr.rel (%p565) target = $region68
        $region67: #{prompt_tts_forward.4} parent=11 // pred_region
          _
        $region68: #{prompt_tts_forward.4} parent=11 // pred_fallthru
          _
      $region12: #{prompt_tts_forward.4} parent=5 // pred_fallthru
        _
      %p568 = scmp.lt.s32.totalorder %s31, 2
      // Predicated region
      $region69: #{prompt_tts_forward.4} parent=5 // pred_check
        %p569 = pneg %p568
      $region70: #{prompt_tts_forward.4} parent=5 // pred_check_branch
        %571 = sbr.rel (%p569) target = $region72
      $region71: #{prompt_tts_forward.4} parent=5 // pred_region
        // Predicated region
        $region73: #{prompt_tts_forward.4} parent=71 // pred_check
          %p572 = pneg %p51
        $region74: #{prompt_tts_forward.4} parent=71 // pred_check_branch
          %574 = sbr.rel (%p572) target = $region76
        $region75: #{prompt_tts_forward.4} parent=71 // pred_region
          %p575 = scmp.lt.s32.totalorder %s31, 1
          %s576 = scalar_select %p575, %s31, 1
          %s577 = smul.addr %s576, 8
          %s578 = scalar_lea.vmem %s0, %s577
        $region76: #{prompt_tts_forward.4} parent=71 // pred_fallthru
          _
        // Predicated region
        $region77: #{prompt_tts_forward.4} parent=71 // pred_check
          %p579 = pneg %p77
        $region78: #{prompt_tts_forward.4} parent=71 // pred_check_branch
          %581 = sbr.rel (%p579) target = $region80
        $region79: #{prompt_tts_forward.4} parent=71 // pred_region
          %p582 = scmp.lt.s32.totalorder %s31, 1
          %s583 = scalar_select %p582, %s31, 1
          %s584 = scalar_lea.vmem %s1, %s583
        $region80: #{prompt_tts_forward.4} parent=71 // pred_fallthru
          _
        // Predicated region
        $region81: #{prompt_tts_forward.4} parent=71 // pred_check
          %p585 = pneg %p103
        $region82: #{prompt_tts_forward.4} parent=71 // pred_check_branch
          %587 = sbr.rel (%p585) target = $region84
        $region83: #{prompt_tts_forward.4} parent=71 // pred_region
          %p588 = scmp.lt.s32.totalorder %s31, 1
          %s589 = scalar_select %p588, %s31, 1
          %s590 = scalar_lea.vmem %s2, %s589
        $region84: #{prompt_tts_forward.4} parent=71 // pred_fallthru
          _
        // Predicated region
        $region85: #{prompt_tts_forward.4} parent=71 // pred_check
          %p591 = pneg %p129
        $region86: #{prompt_tts_forward.4} parent=71 // pred_check_branch
          %593 = sbr.rel (%p591) target = $region88
        $region87: #{prompt_tts_forward.4} parent=71 // pred_region
          %s594 = sand.u32 %s119, 1
          %s595 = scalar_lea.sflag [#allocation3], %s594
          %s596 = sand.u32 %s119, 1
          %s597 = scalar_lea.vmem [#allocation2], %s596
          %s599 = ssub.s32 16, 16
          %600 = vsyncadd %s595, %s599
          %s601 = smul.addr %s31, 16
          %s602 = scalar_lea.hbm %s3, %s601
          %s604 = sshll.u32 %s597, 4
          %s605 = int_to_ptr.vmem [resolvable:$true] %s604
          %607 = dma.hbm_to_vmem [thread:$0]  %s602, 16, %s605, %s595
        $region88: #{prompt_tts_forward.4} parent=71 // pred_fallthru
          _
      $region72: #{prompt_tts_forward.4} parent=5 // pred_fallthru
        _
      %p608 = scmp.le.s32.totalorder 1, %s31
      %p609 = scmp.lt.s32.totalorder %s31, 3
      %p610 = pnand %p608, %p609
      %p611 = pneg %p610
      // Predicated region
      $region89: #{prompt_tts_forward.4} parent=5 // pred_check
        _
      $region90: #{prompt_tts_forward.4} parent=5 // pred_check_branch
        %613 = sbr.rel (%p610) target = $region92
      $region91: #{prompt_tts_forward.4} parent=5 // pred_region
        %s614 = ssub.s32 %s31, 1
        %s615 = sand.u32 %s122, 1
        %s616 = scalar_lea.sflag [#allocation3], %s615
        %s617 = sand.u32 %s122, 1
        %s618 = scalar_lea.vmem [#allocation2], %s617
        // Predicated region
        $region93: #{prompt_tts_forward.4} parent=91 // pred_check
          %p619 = pneg %p135
        $region94: #{prompt_tts_forward.4} parent=91 // pred_check_branch
          %621 = sbr.rel (%p619) target = $region96
        $region95: #{prompt_tts_forward.4} parent=91 // pred_region
          %622 = dma.done %s616, 16
        $region96: #{prompt_tts_forward.4} parent=91 // pred_fallthru
          _
        // Predicated region
        $region97: #{prompt_tts_forward.4} parent=91 // pred_check
          %p623 = pneg %p198
        $region98: #{prompt_tts_forward.4} parent=91 // pred_check_branch
          %625 = sbr.rel (%p623) target = $region100
        $region99: #{prompt_tts_forward.4} parent=91 // pred_region
          %626 = dma.done [#allocation5], 1536
        $region100: #{prompt_tts_forward.4} parent=91 // pred_fallthru
          _
        // Predicated region
        $region101: #{prompt_tts_forward.4} parent=91 // pred_check
          %p627 = pneg %p366
        $region102: #{prompt_tts_forward.4} parent=91 // pred_check_branch
          %629 = sbr.rel (%p627) target = $region104
        $region103: #{prompt_tts_forward.4} parent=91 // pred_region
          %630 = dma.done [#allocation5], 1536
        $region104: #{prompt_tts_forward.4} parent=91 // pred_fallthru
          _
        // Predicated region
        $region105: #{prompt_tts_forward.4} parent=91 // pred_check
          %p631 = pneg %p408
        $region106: #{prompt_tts_forward.4} parent=91 // pred_check_branch
          %633 = sbr.rel (%p631) target = $region108
        $region107: #{prompt_tts_forward.4} parent=91 // pred_region
          %634 = dma.done [#allocation8], 96
        $region108: #{prompt_tts_forward.4} parent=91 // pred_fallthru
          _
        %p635 = scmp.lt.s32.totalorder %s36, 1
        %s636 = scalar_select %p635, %s36, 1
        %s637 = smul.addr %s636, 8
        %s638 = scalar_lea.vmem %s0, %s637
        %p639 = pneg %p57
        %p640 = pneg %p54
        %p641 = scmp.lt.s32.totalorder %s36, 1
        %s642 = scalar_select %p641, %s36, 1
        %s643 = scalar_lea.vmem %s1, %s642
        %p644 = pneg %p83
        %p645 = pneg %p80
        %p646 = scmp.lt.s32.totalorder %s36, 1
        %s647 = scalar_select %p646, %s36, 1
        %s648 = scalar_lea.vmem %s2, %s647
        %p649 = pneg %p109
        %p650 = pneg %p106
        %s651 = sand.u32 %s122, 1
        %s652 = scalar_lea.sflag [#allocation3], %s651
        %s653 = sand.u32 %s122, 1
        %s654 = scalar_lea.vmem [#allocation2], %s653
        %p655 = pneg %p135
        %p656 = pneg %p132
        %p657 = pneg %p156
        %p658 = pneg %p153
        %p659 = pneg %p177
        %p660 = pneg %p174
        %p661 = pneg %p198
        %p662 = pneg %p195
        %p663 = pneg %p219
        %p664 = pneg %p216
        %p665 = pneg %p240
        %p666 = pneg %p237
        %p667 = pneg %p261
        %p668 = pneg %p258
        %p669 = pneg %p282
        %p670 = pneg %p279
        %p671 = pneg %p303
        %p672 = pneg %p300
        %p673 = pneg %p324
        %p674 = pneg %p321
        %p675 = pneg %p345
        %p676 = pneg %p342
        %p677 = pneg %p366
        %p678 = pneg %p363
        %p679 = pneg %p387
        %p680 = pneg %p384
        %p681 = pneg %p408
        %p682 = pneg %p405
        %p683 = pneg %p429
        %p684 = pneg %p426
        %p685 = pneg %p455
        %p686 = pneg %p452
        %p687 = scmp.lt.s32.totalorder %s36, 1
        %s688 = scalar_select %p687, %s36, 1
        %s689 = smul.addr %s688, 8
        %s690 = scalar_lea.vmem %s18, %s689
        %p691 = pneg %p481
        %p692 = pneg %p478
        %p693 = scmp.lt.s32.totalorder %s36, 1
        %s694 = scalar_select %p693, %s36, 1
        %s695 = smul.addr %s694, 8
        %s696 = scalar_lea.vmem %s19, %s695
        %p697 = scmp.lt.s32.totalorder %s36, 1
        %s698 = scalar_select %p697, %s36, 1
        %s699 = smul.addr %s698, 8
        %s700 = scalar_lea.vmem %s0, %s699
        %p701 = scmp.lt.s32.totalorder %s36, 1
        %s702 = scalar_select %p701, %s36, 1
        %s703 = scalar_lea.vmem %s1, %s702
        %p704 = scmp.lt.s32.totalorder %s36, 1
        %s705 = scalar_select %p704, %s36, 1
        %s706 = scalar_lea.vmem %s2, %s705
        %p707 = scmp.lt.s32.totalorder %s36, 1
        %s708 = scalar_select %p707, %s36, 1
        %s709 = smul.addr %s708, 8
        %s710 = scalar_lea.vmem %s18, %s709
        %p711 = scmp.lt.s32.totalorder %s36, 1
        %s712 = scalar_select %p711, %s36, 1
        %s713 = smul.addr %s712, 8
        %s714 = scalar_lea.vmem %s19, %s713
        %v715 = vld [vmem:[%s700] sm:$0xff]
        %v716 = vld [vmem:[%s703] sm:$0x1]
        %v718 = vlaneseq
        %v719 = vshrl.u32 %v718, 7
        %v720 = vsub.s32 0, %v719
        %v721 = vrot.slane %v716, %v720
        %v722 = vld [vmem:[%s706] sm:$0x1]
        %v724 = vlaneseq
        %v725 = vshrl.u32 %v724, 7
        %v726 = vsub.s32 0, %v725
        %v727 = vrot.slane %v722, %v726
        %v728 = vld [vmem:[%s618] sm:$0x1]
        %v730 = vlaneseq
        %v731 = vshrl.u32 %v730, 7
        %v732 = vsub.s32 0, %v731
        %v733 = vrot.slane %v728, %v732
        %734 = vrot.lane.b32.xlu0 %v721, 32
        %v735 = vpop.permute.xlu0 %734
        %737 = vrot.lane.b32.xlu0 %v727, 64
        %v738 = vpop.permute.xlu0 %737
        %740 = vrot.lane.b32.xlu0 %v733, 96
        %v741 = vpop.permute.xlu0 %740
        %vm743 = vcmask 261120
        %v744 = vsel %vm743, %v715, %v735
        %vm745 = vcmask 523264
        %v746 = vsel %vm745, %v744, %v738
        %vm747 = vcmask 785408
        %v748 = vsel %vm747, %v746, %v741
        %v749 = vld [vmem:[%s4] sm:$0xff]
        %v750 = vld [vmem:[%s4 + $0x8] sm:$0xff]
        %v751 = vld [vmem:[%s4 + $0x10] sm:$0xff]
        %v752 = vld [vmem:[%s4 + $0x18] sm:$0xff]
        %v753 = vld [vmem:[%s4 + $0x20] sm:$0xff]
        %v754 = vld [vmem:[%s4 + $0x28] sm:$0xff]
        %v755 = vld [vmem:[%s4 + $0x30] sm:$0xff]
        %v756 = vld [vmem:[%s4 + $0x38] sm:$0xff]
        %v757 = vld [vmem:[%s4 + $0x40] sm:$0xff]
        %v758 = vld [vmem:[%s4 + $0x48] sm:$0xff]
        %v759 = vld [vmem:[%s4 + $0x50] sm:$0xff]
        %v760 = vld [vmem:[%s4 + $0x58] sm:$0xff]
        %v761 = vld [vmem:[%s4 + $0x60] sm:$0xff]
        %v762 = vld [vmem:[%s4 + $0x68] sm:$0xff]
        %v763 = vld [vmem:[%s4 + $0x70] sm:$0xff]
        %v764 = vld [vmem:[%s4 + $0x78] sm:$0xff]
        %v765 = vld [vmem:[%s5] sm:$0x1]
        %v767 = vlaneseq
        %v768 = vshrl.u32 %v767, 7
        %v769 = vsub.s32 0, %v768
        %v770 = vrot.slane %v765, %v769
        %772 = vmatprep.subr.mxu0 0.0
        %773 = vmatpush1.msra.mxu0 %v764
        %774 = vmatprep.subr.mxu0 0.0
        %775 = vmatpush1.msra.mxu0 %v763
        %776 = vmatprep.subr.mxu0 0.0
        %777 = vmatpush1.msra.mxu0 %v762
        %778 = vmatprep.subr.mxu0 0.0
        %779 = vmatpush1.msra.mxu0 %v761
        %780 = vmatprep.subr.mxu0 0.0
        %781 = vmatpush1.msra.mxu0 %v760
        %782 = vmatprep.subr.mxu0 0.0
        %783 = vmatpush1.msra.mxu0 %v759
        %784 = vmatprep.subr.mxu0 0.0
        %785 = vmatpush1.msra.mxu0 %v758
        %786 = vmatprep.subr.mxu0 0.0
        %787 = vmatpush1.msra.mxu0 %v757
        %788 = vmatprep.subr.mxu0 0.0
        %789 = vmatpush1.msra.mxu0 %v756
        %790 = vmatprep.subr.mxu0 0.0
        %791 = vmatpush1.msra.mxu0 %v755
        %792 = vmatprep.subr.mxu0 0.0
        %793 = vmatpush1.msra.mxu0 %v754
        %794 = vmatprep.subr.mxu0 0.0
        %795 = vmatpush1.msra.mxu0 %v753
        %796 = vmatprep.subr.mxu0 0.0
        %797 = vmatpush1.msra.mxu0 %v752
        %798 = vmatprep.subr.mxu0 0.0
        %799 = vmatpush1.msra.mxu0 %v751
        %800 = vmatprep.subr.mxu0 0.0
        %801 = vmatpush1.msra.mxu0 %v750
        %802 = vmatprep.subr.mxu0 0.0
        %803 = vmatpush1.msra.mxu0 %v749
        %804 = vmatprep.subr.mxu0 0.0
        %805 = vmatpush2.msra.mxu0 0.0
        %806 = vmatprep.subr.mxu0 0.0
        %807 = vmatpush2.msra.mxu0 0.0
        %808 = vmatprep.subr.mxu0 0.0
        %809 = vmatpush2.msra.mxu0 0.0
        %810 = vmatprep.subr.mxu0 0.0
        %811 = vmatpush2.msra.mxu0 0.0
        %812 = vmatprep.subr.mxu0 0.0
        %813 = vmatpush2.msra.mxu0 0.0
        %814 = vmatprep.subr.mxu0 0.0
        %815 = vmatpush2.msra.mxu0 0.0
        %816 = vmatprep.subr.mxu0 0.0
        %817 = vmatpush2.msra.mxu0 0.0
        %818 = vmatprep.subr.mxu0 0.0
        %819 = vmatpush2.msra.mxu0 0.0
        %820 = vmatprep.subr.mxu0 0.0
        %821 = vmatpush2.msra.mxu0 0.0
        %822 = vmatprep.subr.mxu0 0.0
        %823 = vmatpush2.msra.mxu0 0.0
        %824 = vmatprep.subr.mxu0 0.0
        %825 = vmatpush2.msra.mxu0 0.0
        %826 = vmatprep.subr.mxu0 0.0
        %827 = vmatpush2.msra.mxu0 0.0
        %828 = vmatprep.subr.mxu0 0.0
        %829 = vmatpush2.msra.mxu0 0.0
        %830 = vmatprep.subr.mxu0 0.0
        %831 = vmatpush2.msra.mxu0 0.0
        %832 = vmatprep.subr.mxu0 0.0
        %833 = vmatpush2.msra.mxu0 0.0
        %834 = vmatprep.subr.mxu0 0.0
        %835 = vmatpush2.msra.mxu0 0.0
        %836 = vmatprep.mubr.f32.mxu0 0.0
        %837 = vmatmul.mubr.f32.gmra.mxu0 %v748
        %v838 = vpop.f32.mrf.mxu0
        %v839 = vadd.f32 %v770, %v838
        %v840 = vpop.f32.mrf.mxu0
        %841 = vdwg.mxu0
        %v842 = vld [vmem:[%s7] sm:$0x1]
        %v844 = vrot.slane %v839, 7
        %vm846 = vcmask 1040384
        %v847 = vsel %vm846, 0.0, %v844
        %v848 = vsel %vm846, %v844, 0.0
        %v849 = vld [vmem:[#allocation4] sm:$0xff]
        %v850 = vld [vmem:[#allocation4 + $0x8] sm:$0xff]
        %v851 = vld [vmem:[#allocation4 + $0x10] sm:$0xff]
        %v852 = vld [vmem:[#allocation4 + $0x18] sm:$0xff]
        %s853 = scalar_lea.vmem [#allocation4], 32
        %v854 = vld [vmem:[%s853] sm:$0xff]
        %v855 = vld [vmem:[%s853 + $0x8] sm:$0xff]
        %v856 = vld [vmem:[%s853 + $0x10] sm:$0xff]
        %v857 = vld [vmem:[%s853 + $0x18] sm:$0xff]
        %vm860 = vcmask 1046528
        %v861 = vrot.slane %v847, 1
        %v862 = vrot.slane %v848, 1
        %v863 = vsel %vm860, %v861, %v862
        %v864 = vsel %vm743, %v863, 0
        %866 = vmatprep.subr.mxu0 0.0
        %867 = vmatpush1.msra.mxu0 0.0
        %868 = vmatprep.subr.mxu0 0.0
        %869 = vmatpush1.msra.mxu0 0.0
        %870 = vmatprep.subr.mxu0 0.0
        %871 = vmatpush1.msra.mxu0 0.0
        %872 = vmatprep.subr.mxu0 0.0
        %873 = vmatpush1.msra.mxu0 0.0
        %874 = vmatprep.subr.mxu0 0.0
        %875 = vmatpush1.msra.mxu0 0.0
        %876 = vmatprep.subr.mxu0 0.0
        %877 = vmatpush1.msra.mxu0 0.0
        %878 = vmatprep.subr.mxu0 0.0
        %879 = vmatpush1.msra.mxu0 0.0
        %880 = vmatprep.subr.mxu0 0.0
        %881 = vmatpush1.msra.mxu0 0.0
        %882 = vmatprep.subr.mxu0 0.0
        %883 = vmatpush1.msra.mxu0 0.0
        %884 = vmatprep.subr.mxu0 0.0
        %885 = vmatpush1.msra.mxu0 0.0
        %886 = vmatprep.subr.mxu0 0.0
        %887 = vmatpush1.msra.mxu0 0.0
        %888 = vmatprep.subr.mxu0 0.0
        %889 = vmatpush1.msra.mxu0 0.0
        %890 = vmatprep.subr.mxu0 0.0
        %891 = vmatpush1.msra.mxu0 %v857
        %892 = vmatprep.subr.mxu0 0.0
        %893 = vmatpush1.msra.mxu0 %v856
        %894 = vmatprep.subr.mxu0 0.0
        %895 = vmatpush1.msra.mxu0 %v855
        %896 = vmatprep.subr.mxu0 0.0
        %897 = vmatpush1.msra.mxu0 %v854
        %898 = vmatprep.subr.mxu0 0.0
        %899 = vmatpush2.msra.mxu0 0.0
        %900 = vmatprep.subr.mxu0 0.0
        %901 = vmatpush2.msra.mxu0 0.0
        %902 = vmatprep.subr.mxu0 0.0
        %903 = vmatpush2.msra.mxu0 0.0
        %904 = vmatprep.subr.mxu0 0.0
        %905 = vmatpush2.msra.mxu0 0.0
        %906 = vmatprep.subr.mxu0 0.0
        %907 = vmatpush2.msra.mxu0 0.0
        %908 = vmatprep.subr.mxu0 0.0
        %909 = vmatpush2.msra.mxu0 0.0
        %910 = vmatprep.subr.mxu0 0.0
        %911 = vmatpush2.msra.mxu0 0.0
        %912 = vmatprep.subr.mxu0 0.0
        %913 = vmatpush2.msra.mxu0 0.0
        %914 = vmatprep.subr.mxu0 0.0
        %915 = vmatpush2.msra.mxu0 0.0
        %916 = vmatprep.subr.mxu0 0.0
        %917 = vmatpush2.msra.mxu0 0.0
        %918 = vmatprep.subr.mxu0 0.0
        %919 = vmatpush2.msra.mxu0 0.0
        %920 = vmatprep.subr.mxu0 0.0
        %921 = vmatpush2.msra.mxu0 0.0
        %922 = vmatprep.subr.mxu0 0.0
        %923 = vmatpush2.msra.mxu0 0.0
        %924 = vmatprep.subr.mxu0 0.0
        %925 = vmatpush2.msra.mxu0 0.0
        %926 = vmatprep.subr.mxu0 0.0
        %927 = vmatpush2.msra.mxu0 0.0
        %928 = vmatprep.subr.mxu0 0.0
        %929 = vmatpush2.msra.mxu0 0.0
        %930 = vmatprep.mubr.f32.mxu0 0.0
        %931 = vmatmul.mubr.f32.gmra.mxu0 %v864
        %v932 = vpop.f32.mrf.mxu0
        %v933 = vadd.f32 0.0, %v932
        %v934 = vpop.f32.mrf.mxu0
        %935 = vdwg.mxu0
        %v936 = vsel %vm743, %v847, 0
        %938 = vmatprep.subr.mxu0 0.0
        %939 = vmatpush1.msra.mxu0 0.0
        %940 = vmatprep.subr.mxu0 0.0
        %941 = vmatpush1.msra.mxu0 0.0
        %942 = vmatprep.subr.mxu0 0.0
        %943 = vmatpush1.msra.mxu0 0.0
        %944 = vmatprep.subr.mxu0 0.0
        %945 = vmatpush1.msra.mxu0 0.0
        %946 = vmatprep.subr.mxu0 0.0
        %947 = vmatpush1.msra.mxu0 0.0
        %948 = vmatprep.subr.mxu0 0.0
        %949 = vmatpush1.msra.mxu0 0.0
        %950 = vmatprep.subr.mxu0 0.0
        %951 = vmatpush1.msra.mxu0 0.0
        %952 = vmatprep.subr.mxu0 0.0
        %953 = vmatpush1.msra.mxu0 0.0
        %954 = vmatprep.subr.mxu0 0.0
        %955 = vmatpush1.msra.mxu0 0.0
        %956 = vmatprep.subr.mxu0 0.0
        %957 = vmatpush1.msra.mxu0 0.0
        %958 = vmatprep.subr.mxu0 0.0
        %959 = vmatpush1.msra.mxu0 0.0
        %960 = vmatprep.subr.mxu0 0.0
        %961 = vmatpush1.msra.mxu0 0.0
        %962 = vmatprep.subr.mxu0 0.0
        %963 = vmatpush1.msra.mxu0 %v852
        %964 = vmatprep.subr.mxu0 0.0
        %965 = vmatpush1.msra.mxu0 %v851
        %966 = vmatprep.subr.mxu0 0.0
        %967 = vmatpush1.msra.mxu0 %v850
        %968 = vmatprep.subr.mxu0 0.0
        %969 = vmatpush1.msra.mxu0 %v849
        %970 = vmatprep.subr.mxu0 0.0
        %971 = vmatpush2.msra.mxu0 0.0
        %972 = vmatprep.subr.mxu0 0.0
        %973 = vmatpush2.msra.mxu0 0.0
        %974 = vmatprep.subr.mxu0 0.0
        %975 = vmatpush2.msra.mxu0 0.0
        %976 = vmatprep.subr.mxu0 0.0
        %977 = vmatpush2.msra.mxu0 0.0
        %978 = vmatprep.subr.mxu0 0.0
        %979 = vmatpush2.msra.mxu0 0.0
        %980 = vmatprep.subr.mxu0 0.0
        %981 = vmatpush2.msra.mxu0 0.0
        %982 = vmatprep.subr.mxu0 0.0
        %983 = vmatpush2.msra.mxu0 0.0
        %984 = vmatprep.subr.mxu0 0.0
        %985 = vmatpush2.msra.mxu0 0.0
        %986 = vmatprep.subr.mxu0 0.0
        %987 = vmatpush2.msra.mxu0 0.0
        %988 = vmatprep.subr.mxu0 0.0
        %989 = vmatpush2.msra.mxu0 0.0
        %990 = vmatprep.subr.mxu0 0.0
        %991 = vmatpush2.msra.mxu0 0.0
        %992 = vmatprep.subr.mxu0 0.0
        %993 = vmatpush2.msra.mxu0 0.0
        %994 = vmatprep.subr.mxu0 0.0
        %995 = vmatpush2.msra.mxu0 0.0
        %996 = vmatprep.subr.mxu0 0.0
        %997 = vmatpush2.msra.mxu0 0.0
        %998 = vmatprep.subr.mxu0 0.0
        %999 = vmatpush2.msra.mxu0 0.0
        %1000 = vmatprep.subr.mxu0 0.0
        %1001 = vmatpush2.msra.mxu0 0.0
        %1002 = vmatprep.mubr.f32.mxu0 0.0
        %1003 = vmatmul.mubr.f32.gmra.mxu0 %v936
        %v1004 = vpop.f32.mrf.mxu0
        %v1005 = vadd.f32 %v933, %v1004
        %v1006 = vpop.f32.mrf.mxu0
        %1007 = vdwg.mxu0
        %s1008 = scalar_lea.vmem [#allocation4], 64
        %v1009 = vld [vmem:[%s1008] sm:$0xff]
        %v1010 = vld [vmem:[%s1008 + $0x8] sm:$0xff]
        %v1011 = vld [vmem:[%s1008 + $0x10] sm:$0xff]
        %v1012 = vld [vmem:[%s1008 + $0x18] sm:$0xff]
        %vm1013 = vcmask 1045504
        %v1014 = vrot.slane %v847, 2
        %v1015 = vrot.slane %v848, 2
        %v1016 = vsel %vm1013, %v1014, %v1015
        %v1017 = vsel %vm743, %v1016, 0
        %1019 = vmatprep.subr.mxu0 0.0
        %1020 = vmatpush1.msra.mxu0 0.0
        %1021 = vmatprep.subr.mxu0 0.0
        %1022 = vmatpush1.msra.mxu0 0.0
        %1023 = vmatprep.subr.mxu0 0.0
        %1024 = vmatpush1.msra.mxu0 0.0
        %1025 = vmatprep.subr.mxu0 0.0
        %1026 = vmatpush1.msra.mxu0 0.0
        %1027 = vmatprep.subr.mxu0 0.0
        %1028 = vmatpush1.msra.mxu0 0.0
        %1029 = vmatprep.subr.mxu0 0.0
        %1030 = vmatpush1.msra.mxu0 0.0
        %1031 = vmatprep.subr.mxu0 0.0
        %1032 = vmatpush1.msra.mxu0 0.0
        %1033 = vmatprep.subr.mxu0 0.0
        %1034 = vmatpush1.msra.mxu0 0.0
        %1035 = vmatprep.subr.mxu0 0.0
        %1036 = vmatpush1.msra.mxu0 0.0
        %1037 = vmatprep.subr.mxu0 0.0
        %1038 = vmatpush1.msra.mxu0 0.0
        %1039 = vmatprep.subr.mxu0 0.0
        %1040 = vmatpush1.msra.mxu0 0.0
        %1041 = vmatprep.subr.mxu0 0.0
        %1042 = vmatpush1.msra.mxu0 0.0
        %1043 = vmatprep.subr.mxu0 0.0
        %1044 = vmatpush1.msra.mxu0 %v1012
        %1045 = vmatprep.subr.mxu0 0.0
        %1046 = vmatpush1.msra.mxu0 %v1011
        %1047 = vmatprep.subr.mxu0 0.0
        %1048 = vmatpush1.msra.mxu0 %v1010
        %1049 = vmatprep.subr.mxu0 0.0
        %1050 = vmatpush1.msra.mxu0 %v1009
        %1051 = vmatprep.subr.mxu0 0.0
        %1052 = vmatpush2.msra.mxu0 0.0
        %1053 = vmatprep.subr.mxu0 0.0
        %1054 = vmatpush2.msra.mxu0 0.0
        %1055 = vmatprep.subr.mxu0 0.0
        %1056 = vmatpush2.msra.mxu0 0.0
        %1057 = vmatprep.subr.mxu0 0.0
        %1058 = vmatpush2.msra.mxu0 0.0
        %1059 = vmatprep.subr.mxu0 0.0
        %1060 = vmatpush2.msra.mxu0 0.0
        %1061 = vmatprep.subr.mxu0 0.0
        %1062 = vmatpush2.msra.mxu0 0.0
        %1063 = vmatprep.subr.mxu0 0.0
        %1064 = vmatpush2.msra.mxu0 0.0
        %1065 = vmatprep.subr.mxu0 0.0
        %1066 = vmatpush2.msra.mxu0 0.0
        %1067 = vmatprep.subr.mxu0 0.0
        %1068 = vmatpush2.msra.mxu0 0.0
        %1069 = vmatprep.subr.mxu0 0.0
        %1070 = vmatpush2.msra.mxu0 0.0
        %1071 = vmatprep.subr.mxu0 0.0
        %1072 = vmatpush2.msra.mxu0 0.0
        %1073 = vmatprep.subr.mxu0 0.0
        %1074 = vmatpush2.msra.mxu0 0.0
        %1075 = vmatprep.subr.mxu0 0.0
        %1076 = vmatpush2.msra.mxu0 0.0
        %1077 = vmatprep.subr.mxu0 0.0
        %1078 = vmatpush2.msra.mxu0 0.0
        %1079 = vmatprep.subr.mxu0 0.0
        %1080 = vmatpush2.msra.mxu0 0.0
        %1081 = vmatprep.subr.mxu0 0.0
        %1082 = vmatpush2.msra.mxu0 0.0
        %1083 = vmatprep.mubr.f32.mxu0 0.0
        %1084 = vmatmul.mubr.f32.gmra.mxu0 %v1017
        %v1085 = vpop.f32.mrf.mxu0
        %v1086 = vadd.f32 0.0, %v1085
        %v1087 = vpop.f32.mrf.mxu0
        %1088 = vdwg.mxu0
        %v1089 = vadd.f32 %v1005, %v1086
        %v1091 = vlaneseq
        %v1092 = vshrl.u32 %v1091, 7
        %v1093 = vsub.s32 0, %v1092
        %v1094 = vrot.slane %v842, %v1093
        %v1096 = vadd.f32 %v1089, %v1094
        %v1097 = vmax.f32 %v1096, 0.0
        %v1098 = vld [vmem:[%s8] sm:$0x1]
        %v1099 = vld [vmem:[%s9] sm:$0x1]
        %v1100 = vsel %vm743, %v1097, 0.0
        %1101 = vadd.xlane.f32.xlu0 %v1100
        %v1102 = vpop.xlane.xlu0 %1101
        %v1103 = vrcp.pop 32.0
        %v1104 = vmul.f32 %v1102, %v1103
        %v1105 = vsub.f32 %v1097, %v1104
        %v1106 = vmul.f32 %v1105, %v1105
        %v1107 = vsel %vm743, %v1106, 0.0
        %1108 = vadd.xlane.f32.xlu0 %v1107
        %v1109 = vpop.xlane.xlu0 %1108
        %v1110 = vmul.f32 %v1109, %v1103
        %v1111 = vadd.f32 %v1110, 1e-05
        %v1112 = vrsqrt.pop %v1111
        %v1113 = vmul.f32 %v1105, %v1112
        %1115 = vrot.lane.b32.xlu0 %v1097, 96
        %v1116 = vpop.permute.xlu0 %1115
        %v1118 = vsel %vm743, %v1116, 0.0
        %1119 = vadd.xlane.f32.xlu0 %v1118
        %v1120 = vpop.xlane.xlu0 %1119
        %v1121 = vmul.f32 %v1120, %v1103
        %v1122 = vsub.f32 %v1097, %v1121
        %v1123 = vmul.f32 %v1122, %v1122
        %1125 = vrot.lane.b32.xlu0 %v1123, 96
        %v1126 = vpop.permute.xlu0 %1125
        %v1128 = vsel %vm743, %v1126, 0.0
        %1129 = vadd.xlane.f32.xlu0 %v1128
        %v1130 = vpop.xlane.xlu0 %1129
        %v1131 = vmul.f32 %v1130, %v1103
        %v1132 = vadd.f32 %v1131, 1e-05
        %v1133 = vrsqrt.pop %v1132
        %v1134 = vmul.f32 %v1122, %v1133
        %1135 = vrot.lane.b32.xlu0 %v1097, 64
        %v1136 = vpop.permute.xlu0 %1135
        %v1138 = vsel %vm743, %v1136, 0.0
        %1139 = vadd.xlane.f32.xlu0 %v1138
        %v1140 = vpop.xlane.xlu0 %1139
        %v1141 = vmul.f32 %v1140, %v1103
        %v1142 = vsub.f32 %v1097, %v1141
        %v1143 = vmul.f32 %v1142, %v1142
        %1145 = vrot.lane.b32.xlu0 %v1143, 64
        %v1146 = vpop.permute.xlu0 %1145
        %v1148 = vsel %vm743, %v1146, 0.0
        %1149 = vadd.xlane.f32.xlu0 %v1148
        %v1150 = vpop.xlane.xlu0 %1149
        %v1151 = vmul.f32 %v1150, %v1103
        %v1152 = vadd.f32 %v1151, 1e-05
        %v1153 = vrsqrt.pop %v1152
        %v1154 = vmul.f32 %v1142, %v1153
        %v1155 = vsel %vm743, %v1113, %v1134
        %v1156 = vsel %vm745, %v1155, %v1154
        %v1158 = vlaneseq
        %v1159 = vshrl.u32 %v1158, 7
        %v1160 = vsub.s32 0, %v1159
        %v1161 = vrot.slane %v1098, %v1160
        %v1163 = vmul.f32 %v1156, %v1161
        %v1165 = vlaneseq
        %v1166 = vshrl.u32 %v1165, 7
        %v1167 = vsub.s32 0, %v1166
        %v1168 = vrot.slane %v1099, %v1167
        %v1170 = vadd.f32 %v1163, %v1168
        %v1171 = vld [vmem:[%s11] sm:$0x1]
        %v1173 = vrot.slane %v1170, 7
        %v1175 = vsel %vm846, 0.0, %v1173
        %v1176 = vsel %vm846, %v1173, 0.0
        %v1177 = vld [vmem:[%s10] sm:$0xff]
        %v1178 = vld [vmem:[%s10 + $0x8] sm:$0xff]
        %v1179 = vld [vmem:[%s10 + $0x10] sm:$0xff]
        %v1180 = vld [vmem:[%s10 + $0x18] sm:$0xff]
        %v1181 = vld [vmem:[%s10 + $0x20] sm:$0xff]
        %v1182 = vld [vmem:[%s10 + $0x28] sm:$0xff]
        %v1183 = vld [vmem:[%s10 + $0x30] sm:$0xff]
        %v1184 = vld [vmem:[%s10 + $0x38] sm:$0xff]
        %v1185 = vld [vmem:[%s10 + $0x40] sm:$0xff]
        %v1186 = vld [vmem:[%s10 + $0x48] sm:$0xff]
        %v1187 = vld [vmem:[%s10 + $0x50] sm:$0xff]
        %v1188 = vld [vmem:[%s10 + $0x58] sm:$0xff]
        %s1189 = scalar_lea.vmem %s10, 96
        %v1190 = vld [vmem:[%s1189] sm:$0xff]
        %v1191 = vld [vmem:[%s1189 + $0x8] sm:$0xff]
        %v1192 = vld [vmem:[%s1189 + $0x10] sm:$0xff]
        %v1193 = vld [vmem:[%s1189 + $0x18] sm:$0xff]
        %v1194 = vld [vmem:[%s1189 + $0x20] sm:$0xff]
        %v1195 = vld [vmem:[%s1189 + $0x28] sm:$0xff]
        %v1196 = vld [vmem:[%s1189 + $0x30] sm:$0xff]
        %v1197 = vld [vmem:[%s1189 + $0x38] sm:$0xff]
        %v1198 = vld [vmem:[%s1189 + $0x40] sm:$0xff]
        %v1199 = vld [vmem:[%s1189 + $0x48] sm:$0xff]
        %v1200 = vld [vmem:[%s1189 + $0x50] sm:$0xff]
        %v1201 = vld [vmem:[%s1189 + $0x58] sm:$0xff]
        %v1204 = vrot.slane %v1175, 1
        %v1205 = vrot.slane %v1176, 1
        %v1206 = vsel %vm860, %v1204, %v1205
        %v1207 = vsel %vm747, %v1206, 0
        %1209 = vmatprep.subr.mxu0 0.0
        %1210 = vmatpush1.msra.mxu0 0.0
        %1211 = vmatprep.subr.mxu0 0.0
        %1212 = vmatpush1.msra.mxu0 0.0
        %1213 = vmatprep.subr.mxu0 0.0
        %1214 = vmatpush1.msra.mxu0 0.0
        %1215 = vmatprep.subr.mxu0 0.0
        %1216 = vmatpush1.msra.mxu0 0.0
        %1217 = vmatprep.subr.mxu0 0.0
        %1218 = vmatpush1.msra.mxu0 %v1201
        %1219 = vmatprep.subr.mxu0 0.0
        %1220 = vmatpush1.msra.mxu0 %v1200
        %1221 = vmatprep.subr.mxu0 0.0
        %1222 = vmatpush1.msra.mxu0 %v1199
        %1223 = vmatprep.subr.mxu0 0.0
        %1224 = vmatpush1.msra.mxu0 %v1198
        %1225 = vmatprep.subr.mxu0 0.0
        %1226 = vmatpush1.msra.mxu0 %v1197
        %1227 = vmatprep.subr.mxu0 0.0
        %1228 = vmatpush1.msra.mxu0 %v1196
        %1229 = vmatprep.subr.mxu0 0.0
        %1230 = vmatpush1.msra.mxu0 %v1195
        %1231 = vmatprep.subr.mxu0 0.0
        %1232 = vmatpush1.msra.mxu0 %v1194
        %1233 = vmatprep.subr.mxu0 0.0
        %1234 = vmatpush1.msra.mxu0 %v1193
        %1235 = vmatprep.subr.mxu0 0.0
        %1236 = vmatpush1.msra.mxu0 %v1192
        %1237 = vmatprep.subr.mxu0 0.0
        %1238 = vmatpush1.msra.mxu0 %v1191
        %1239 = vmatprep.subr.mxu0 0.0
        %1240 = vmatpush1.msra.mxu0 %v1190
        %1241 = vmatprep.subr.mxu0 0.0
        %1242 = vmatpush2.msra.mxu0 0.0
        %1243 = vmatprep.subr.mxu0 0.0
        %1244 = vmatpush2.msra.mxu0 0.0
        %1245 = vmatprep.subr.mxu0 0.0
        %1246 = vmatpush2.msra.mxu0 0.0
        %1247 = vmatprep.subr.mxu0 0.0
        %1248 = vmatpush2.msra.mxu0 0.0
        %1249 = vmatprep.subr.mxu0 0.0
        %1250 = vmatpush2.msra.mxu0 0.0
        %1251 = vmatprep.subr.mxu0 0.0
        %1252 = vmatpush2.msra.mxu0 0.0
        %1253 = vmatprep.subr.mxu0 0.0
        %1254 = vmatpush2.msra.mxu0 0.0
        %1255 = vmatprep.subr.mxu0 0.0
        %1256 = vmatpush2.msra.mxu0 0.0
        %1257 = vmatprep.subr.mxu0 0.0
        %1258 = vmatpush2.msra.mxu0 0.0
        %1259 = vmatprep.subr.mxu0 0.0
        %1260 = vmatpush2.msra.mxu0 0.0
        %1261 = vmatprep.subr.mxu0 0.0
        %1262 = vmatpush2.msra.mxu0 0.0
        %1263 = vmatprep.subr.mxu0 0.0
        %1264 = vmatpush2.msra.mxu0 0.0
        %1265 = vmatprep.subr.mxu0 0.0
        %1266 = vmatpush2.msra.mxu0 0.0
        %1267 = vmatprep.subr.mxu0 0.0
        %1268 = vmatpush2.msra.mxu0 0.0
        %1269 = vmatprep.subr.mxu0 0.0
        %1270 = vmatpush2.msra.mxu0 0.0
        %1271 = vmatprep.subr.mxu0 0.0
        %1272 = vmatpush2.msra.mxu0 0.0
        %1273 = vmatprep.mubr.f32.mxu0 0.0
        %1274 = vmatmul.mubr.f32.gmra.mxu0 %v1207
        %v1275 = vpop.f32.mrf.mxu0
        %v1276 = vadd.f32 0.0, %v1275
        %v1277 = vpop.f32.mrf.mxu0
        %1278 = vdwg.mxu0
        %v1279 = vsel %vm747, %v1175, 0
        %1281 = vmatprep.subr.mxu0 0.0
        %1282 = vmatpush1.msra.mxu0 0.0
        %1283 = vmatprep.subr.mxu0 0.0
        %1284 = vmatpush1.msra.mxu0 0.0
        %1285 = vmatprep.subr.mxu0 0.0
        %1286 = vmatpush1.msra.mxu0 0.0
        %1287 = vmatprep.subr.mxu0 0.0
        %1288 = vmatpush1.msra.mxu0 0.0
        %1289 = vmatprep.subr.mxu0 0.0
        %1290 = vmatpush1.msra.mxu0 %v1188
        %1291 = vmatprep.subr.mxu0 0.0
        %1292 = vmatpush1.msra.mxu0 %v1187
        %1293 = vmatprep.subr.mxu0 0.0
        %1294 = vmatpush1.msra.mxu0 %v1186
        %1295 = vmatprep.subr.mxu0 0.0
        %1296 = vmatpush1.msra.mxu0 %v1185
        %1297 = vmatprep.subr.mxu0 0.0
        %1298 = vmatpush1.msra.mxu0 %v1184
        %1299 = vmatprep.subr.mxu0 0.0
        %1300 = vmatpush1.msra.mxu0 %v1183
        %1301 = vmatprep.subr.mxu0 0.0
        %1302 = vmatpush1.msra.mxu0 %v1182
        %1303 = vmatprep.subr.mxu0 0.0
        %1304 = vmatpush1.msra.mxu0 %v1181
        %1305 = vmatprep.subr.mxu0 0.0
        %1306 = vmatpush1.msra.mxu0 %v1180
        %1307 = vmatprep.subr.mxu0 0.0
        %1308 = vmatpush1.msra.mxu0 %v1179
        %1309 = vmatprep.subr.mxu0 0.0
        %1310 = vmatpush1.msra.mxu0 %v1178
        %1311 = vmatprep.subr.mxu0 0.0
        %1312 = vmatpush1.msra.mxu0 %v1177
        %1313 = vmatprep.subr.mxu0 0.0
        %1314 = vmatpush2.msra.mxu0 0.0
        %1315 = vmatprep.subr.mxu0 0.0
        %1316 = vmatpush2.msra.mxu0 0.0
        %1317 = vmatprep.subr.mxu0 0.0
        %1318 = vmatpush2.msra.mxu0 0.0
        %1319 = vmatprep.subr.mxu0 0.0
        %1320 = vmatpush2.msra.mxu0 0.0
        %1321 = vmatprep.subr.mxu0 0.0
        %1322 = vmatpush2.msra.mxu0 0.0
        %1323 = vmatprep.subr.mxu0 0.0
        %1324 = vmatpush2.msra.mxu0 0.0
        %1325 = vmatprep.subr.mxu0 0.0
        %1326 = vmatpush2.msra.mxu0 0.0
        %1327 = vmatprep.subr.mxu0 0.0
        %1328 = vmatpush2.msra.mxu0 0.0
        %1329 = vmatprep.subr.mxu0 0.0
        %1330 = vmatpush2.msra.mxu0 0.0
        %1331 = vmatprep.subr.mxu0 0.0
        %1332 = vmatpush2.msra.mxu0 0.0
        %1333 = vmatprep.subr.mxu0 0.0
        %1334 = vmatpush2.msra.mxu0 0.0
        %1335 = vmatprep.subr.mxu0 0.0
        %1336 = vmatpush2.msra.mxu0 0.0
        %1337 = vmatprep.subr.mxu0 0.0
        %1338 = vmatpush2.msra.mxu0 0.0
        %1339 = vmatprep.subr.mxu0 0.0
        %1340 = vmatpush2.msra.mxu0 0.0
        %1341 = vmatprep.subr.mxu0 0.0
        %1342 = vmatpush2.msra.mxu0 0.0
        %1343 = vmatprep.subr.mxu0 0.0
        %1344 = vmatpush2.msra.mxu0 0.0
        %1345 = vmatprep.mubr.f32.mxu0 0.0
        %1346 = vmatmul.mubr.f32.gmra.mxu0 %v1279
        %v1347 = vpop.f32.mrf.mxu0
        %v1348 = vadd.f32 %v1276, %v1347
        %v1349 = vpop.f32.mrf.mxu0
        %1350 = vdwg.mxu0
        %s1351 = scalar_lea.vmem %s10, 192
        %v1352 = vld [vmem:[%s1351] sm:$0xff]
        %v1353 = vld [vmem:[%s1351 + $0x8] sm:$0xff]
        %v1354 = vld [vmem:[%s1351 + $0x10] sm:$0xff]
        %v1355 = vld [vmem:[%s1351 + $0x18] sm:$0xff]
        %v1356 = vld [vmem:[%s1351 + $0x20] sm:$0xff]
        %v1357 = vld [vmem:[%s1351 + $0x28] sm:$0xff]
        %v1358 = vld [vmem:[%s1351 + $0x30] sm:$0xff]
        %v1359 = vld [vmem:[%s1351 + $0x38] sm:$0xff]
        %v1360 = vld [vmem:[%s1351 + $0x40] sm:$0xff]
        %v1361 = vld [vmem:[%s1351 + $0x48] sm:$0xff]
        %v1362 = vld [vmem:[%s1351 + $0x50] sm:$0xff]
        %v1363 = vld [vmem:[%s1351 + $0x58] sm:$0xff]
        %v1364 = vrot.slane %v1175, 2
        %v1365 = vrot.slane %v1176, 2
        %v1366 = vsel %vm1013, %v1364, %v1365
        %v1367 = vsel %vm747, %v1366, 0
        %1369 = vmatprep.subr.mxu0 0.0
        %1370 = vmatpush1.msra.mxu0 0.0
        %1371 = vmatprep.subr.mxu0 0.0
        %1372 = vmatpush1.msra.mxu0 0.0
        %1373 = vmatprep.subr.mxu0 0.0
        %1374 = vmatpush1.msra.mxu0 0.0
        %1375 = vmatprep.subr.mxu0 0.0
        %1376 = vmatpush1.msra.mxu0 0.0
        %1377 = vmatprep.subr.mxu0 0.0
        %1378 = vmatpush1.msra.mxu0 %v1363
        %1379 = vmatprep.subr.mxu0 0.0
        %1380 = vmatpush1.msra.mxu0 %v1362
        %1381 = vmatprep.subr.mxu0 0.0
        %1382 = vmatpush1.msra.mxu0 %v1361
        %1383 = vmatprep.subr.mxu0 0.0
        %1384 = vmatpush1.msra.mxu0 %v1360
        %1385 = vmatprep.subr.mxu0 0.0
        %1386 = vmatpush1.msra.mxu0 %v1359
        %1387 = vmatprep.subr.mxu0 0.0
        %1388 = vmatpush1.msra.mxu0 %v1358
        %1389 = vmatprep.subr.mxu0 0.0
        %1390 = vmatpush1.msra.mxu0 %v1357
        %1391 = vmatprep.subr.mxu0 0.0
        %1392 = vmatpush1.msra.mxu0 %v1356
        %1393 = vmatprep.subr.mxu0 0.0
        %1394 = vmatpush1.msra.mxu0 %v1355
        %1395 = vmatprep.subr.mxu0 0.0
        %1396 = vmatpush1.msra.mxu0 %v1354
        %1397 = vmatprep.subr.mxu0 0.0
        %1398 = vmatpush1.msra.mxu0 %v1353
        %1399 = vmatprep.subr.mxu0 0.0
        %1400 = vmatpush1.msra.mxu0 %v1352
        %1401 = vmatprep.subr.mxu0 0.0
        %1402 = vmatpush2.msra.mxu0 0.0
        %1403 = vmatprep.subr.mxu0 0.0
        %1404 = vmatpush2.msra.mxu0 0.0
        %1405 = vmatprep.subr.mxu0 0.0
        %1406 = vmatpush2.msra.mxu0 0.0
        %1407 = vmatprep.subr.mxu0 0.0
        %1408 = vmatpush2.msra.mxu0 0.0
        %1409 = vmatprep.subr.mxu0 0.0
        %1410 = vmatpush2.msra.mxu0 0.0
        %1411 = vmatprep.subr.mxu0 0.0
        %1412 = vmatpush2.msra.mxu0 0.0
        %1413 = vmatprep.subr.mxu0 0.0
        %1414 = vmatpush2.msra.mxu0 0.0
        %1415 = vmatprep.subr.mxu0 0.0
        %1416 = vmatpush2.msra.mxu0 0.0
        %1417 = vmatprep.subr.mxu0 0.0
        %1418 = vmatpush2.msra.mxu0 0.0
        %1419 = vmatprep.subr.mxu0 0.0
        %1420 = vmatpush2.msra.mxu0 0.0
        %1421 = vmatprep.subr.mxu0 0.0
        %1422 = vmatpush2.msra.mxu0 0.0
        %1423 = vmatprep.subr.mxu0 0.0
        %1424 = vmatpush2.msra.mxu0 0.0
        %1425 = vmatprep.subr.mxu0 0.0
        %1426 = vmatpush2.msra.mxu0 0.0
        %1427 = vmatprep.subr.mxu0 0.0
        %1428 = vmatpush2.msra.mxu0 0.0
        %1429 = vmatprep.subr.mxu0 0.0
        %1430 = vmatpush2.msra.mxu0 0.0
        %1431 = vmatprep.subr.mxu0 0.0
        %1432 = vmatpush2.msra.mxu0 0.0
        %1433 = vmatprep.mubr.f32.mxu0 0.0
        %1434 = vmatmul.mubr.f32.gmra.mxu0 %v1367
        %v1435 = vpop.f32.mrf.mxu0
        %v1436 = vadd.f32 0.0, %v1435
        %v1437 = vpop.f32.mrf.mxu0
        %1438 = vdwg.mxu0
        %v1439 = vadd.f32 %v1348, %v1436
        %v1441 = vlaneseq
        %v1442 = vshrl.u32 %v1441, 7
        %v1443 = vsub.s32 0, %v1442
        %v1444 = vrot.slane %v1171, %v1443
        %v1446 = vadd.f32 %v1439, %v1444
        %v1447 = vmax.f32 %v1446, 0.0
        %v1448 = vld [vmem:[%s12] sm:$0x1]
        %v1449 = vld [vmem:[%s13] sm:$0x1]
        %v1450 = vsel %vm743, %v1447, 0.0
        %1451 = vadd.xlane.f32.xlu0 %v1450
        %v1452 = vpop.xlane.xlu0 %1451
        %v1453 = vmul.f32 %v1452, %v1103
        %v1454 = vsub.f32 %v1447, %v1453
        %v1455 = vmul.f32 %v1454, %v1454
        %v1456 = vsel %vm743, %v1455, 0.0
        %1457 = vadd.xlane.f32.xlu0 %v1456
        %v1458 = vpop.xlane.xlu0 %1457
        %v1459 = vmul.f32 %v1458, %v1103
        %v1460 = vadd.f32 %v1459, 1e-05
        %v1461 = vrsqrt.pop %v1460
        %v1462 = vmul.f32 %v1454, %v1461
        %1464 = vrot.lane.b32.xlu0 %v1447, 96
        %v1465 = vpop.permute.xlu0 %1464
        %v1467 = vsel %vm743, %v1465, 0.0
        %1468 = vadd.xlane.f32.xlu0 %v1467
        %v1469 = vpop.xlane.xlu0 %1468
        %v1470 = vmul.f32 %v1469, %v1103
        %v1471 = vsub.f32 %v1447, %v1470
        %v1472 = vmul.f32 %v1471, %v1471
        %1474 = vrot.lane.b32.xlu0 %v1472, 96
        %v1475 = vpop.permute.xlu0 %1474
        %v1477 = vsel %vm743, %v1475, 0.0
        %1478 = vadd.xlane.f32.xlu0 %v1477
        %v1479 = vpop.xlane.xlu0 %1478
        %v1480 = vmul.f32 %v1479, %v1103
        %v1481 = vadd.f32 %v1480, 1e-05
        %v1482 = vrsqrt.pop %v1481
        %v1483 = vmul.f32 %v1471, %v1482
        %1484 = vrot.lane.b32.xlu0 %v1447, 64
        %v1485 = vpop.permute.xlu0 %1484
        %v1487 = vsel %vm743, %v1485, 0.0
        %1488 = vadd.xlane.f32.xlu0 %v1487
        %v1489 = vpop.xlane.xlu0 %1488
        %v1490 = vmul.f32 %v1489, %v1103
        %v1491 = vsub.f32 %v1447, %v1490
        %v1492 = vmul.f32 %v1491, %v1491
        %1494 = vrot.lane.b32.xlu0 %v1492, 64
        %v1495 = vpop.permute.xlu0 %1494
        %v1497 = vsel %vm743, %v1495, 0.0
        %1498 = vadd.xlane.f32.xlu0 %v1497
        %v1499 = vpop.xlane.xlu0 %1498
        %v1500 = vmul.f32 %v1499, %v1103
        %v1501 = vadd.f32 %v1500, 1e-05
        %v1502 = vrsqrt.pop %v1501
        %v1503 = vmul.f32 %v1491, %v1502
        %v1504 = vsel %vm743, %v1462, %v1483
        %v1505 = vsel %vm745, %v1504, %v1503
        %v1507 = vlaneseq
        %v1508 = vshrl.u32 %v1507, 7
        %v1509 = vsub.s32 0, %v1508
        %v1510 = vrot.slane %v1448, %v1509
        %v1512 = vmul.f32 %v1505, %v1510
        %v1514 = vlaneseq
        %v1515 = vshrl.u32 %v1514, 7
        %v1516 = vsub.s32 0, %v1515
        %v1517 = vrot.slane %v1449, %v1516
        %v1519 = vadd.f32 %v1512, %v1517
        %v1520 = vld [vmem:[#allocation6] sm:$0xff]
        %v1521 = vld [vmem:[#allocation6 + $0x8] sm:$0xff]
        %v1522 = vld [vmem:[#allocation6 + $0x10] sm:$0xff]
        %v1523 = vld [vmem:[#allocation6 + $0x18] sm:$0xff]
        %v1524 = vld [vmem:[#allocation6 + $0x20] sm:$0xff]
        %v1525 = vld [vmem:[#allocation6 + $0x28] sm:$0xff]
        %v1526 = vld [vmem:[#allocation6 + $0x30] sm:$0xff]
        %v1527 = vld [vmem:[#allocation6 + $0x38] sm:$0xff]
        %v1528 = vld [vmem:[#allocation6 + $0x40] sm:$0xff]
        %v1529 = vld [vmem:[#allocation6 + $0x48] sm:$0xff]
        %v1530 = vld [vmem:[#allocation6 + $0x50] sm:$0xff]
        %v1531 = vld [vmem:[#allocation6 + $0x58] sm:$0xff]
        %v1532 = vld [vmem:[%s15] sm:$0x1]
        %v1534 = vlaneseq
        %v1535 = vshrl.u32 %v1534, 7
        %v1536 = vsub.s32 0, %v1535
        %v1537 = vrot.slane %v1532, %v1536
        %v1540 = vsel %vm747, %v1519, 0
        %1542 = vmatprep.subr.mxu0 0.0
        %1543 = vmatpush1.msra.mxu0 0.0
        %1544 = vmatprep.subr.mxu0 0.0
        %1545 = vmatpush1.msra.mxu0 0.0
        %1546 = vmatprep.subr.mxu0 0.0
        %1547 = vmatpush1.msra.mxu0 0.0
        %1548 = vmatprep.subr.mxu0 0.0
        %1549 = vmatpush1.msra.mxu0 0.0
        %1550 = vmatprep.subr.mxu0 0.0
        %1551 = vmatpush1.msra.mxu0 %v1531
        %1552 = vmatprep.subr.mxu0 0.0
        %1553 = vmatpush1.msra.mxu0 %v1530
        %1554 = vmatprep.subr.mxu0 0.0
        %1555 = vmatpush1.msra.mxu0 %v1529
        %1556 = vmatprep.subr.mxu0 0.0
        %1557 = vmatpush1.msra.mxu0 %v1528
        %1558 = vmatprep.subr.mxu0 0.0
        %1559 = vmatpush1.msra.mxu0 %v1527
        %1560 = vmatprep.subr.mxu0 0.0
        %1561 = vmatpush1.msra.mxu0 %v1526
        %1562 = vmatprep.subr.mxu0 0.0
        %1563 = vmatpush1.msra.mxu0 %v1525
        %1564 = vmatprep.subr.mxu0 0.0
        %1565 = vmatpush1.msra.mxu0 %v1524
        %1566 = vmatprep.subr.mxu0 0.0
        %1567 = vmatpush1.msra.mxu0 %v1523
        %1568 = vmatprep.subr.mxu0 0.0
        %1569 = vmatpush1.msra.mxu0 %v1522
        %1570 = vmatprep.subr.mxu0 0.0
        %1571 = vmatpush1.msra.mxu0 %v1521
        %1572 = vmatprep.subr.mxu0 0.0
        %1573 = vmatpush1.msra.mxu0 %v1520
        %1574 = vmatprep.subr.mxu0 0.0
        %1575 = vmatpush2.msra.mxu0 0.0
        %1576 = vmatprep.subr.mxu0 0.0
        %1577 = vmatpush2.msra.mxu0 0.0
        %1578 = vmatprep.subr.mxu0 0.0
        %1579 = vmatpush2.msra.mxu0 0.0
        %1580 = vmatprep.subr.mxu0 0.0
        %1581 = vmatpush2.msra.mxu0 0.0
        %1582 = vmatprep.subr.mxu0 0.0
        %1583 = vmatpush2.msra.mxu0 0.0
        %1584 = vmatprep.subr.mxu0 0.0
        %1585 = vmatpush2.msra.mxu0 0.0
        %1586 = vmatprep.subr.mxu0 0.0
        %1587 = vmatpush2.msra.mxu0 0.0
        %1588 = vmatprep.subr.mxu0 0.0
        %1589 = vmatpush2.msra.mxu0 0.0
        %1590 = vmatprep.subr.mxu0 0.0
        %1591 = vmatpush2.msra.mxu0 0.0
        %1592 = vmatprep.subr.mxu0 0.0
        %1593 = vmatpush2.msra.mxu0 0.0
        %1594 = vmatprep.subr.mxu0 0.0
        %1595 = vmatpush2.msra.mxu0 0.0
        %1596 = vmatprep.subr.mxu0 0.0
        %1597 = vmatpush2.msra.mxu0 0.0
        %1598 = vmatprep.subr.mxu0 0.0
        %1599 = vmatpush2.msra.mxu0 0.0
        %1600 = vmatprep.subr.mxu0 0.0
        %1601 = vmatpush2.msra.mxu0 0.0
        %1602 = vmatprep.subr.mxu0 0.0
        %1603 = vmatpush2.msra.mxu0 0.0
        %1604 = vmatprep.subr.mxu0 0.0
        %1605 = vmatpush2.msra.mxu0 0.0
        %1606 = vmatprep.mubr.f32.mxu0 0.0
        %1607 = vmatmul.mubr.f32.gmra.mxu0 %v1540
        %v1608 = vpop.f32.mrf.mxu0
        %v1609 = vadd.f32 %v1537, %v1608
        %v1610 = vpop.f32.mrf.mxu0
        %1611 = vdwg.mxu0
        %v1613 = vrot.slane %v1609, 7
        %v1615 = vsel %vm846, 0.0, %v1613
        %v1616 = vsel %vm846, %v1613, 0.0
        %v1617 = vld [vmem:[#allocation7] sm:$0x3]
        %1619 = vset.pattern.permute.xlu0 0
        %1620 = vperm.xlu0 %1619, %v1615
        %v1621 = vpop.permute.xlu0 %1620
        %v1623 = vlaneseq
        %v1624 = vshrl.u32 %v1623, 7
        %v1625 = vsub.s32 0, %v1624
        %v1626 = vrot.slane %v1617, %v1625
        %v1627 = vmul.f32 %v1621, %v1626
        %v1628 = vadd.f32 %v1627, 0.0
        %1629 = vset.pattern.permute.xlu0 1
        %1630 = vperm.xlu0 %1629, %v1615
        %v1631 = vpop.permute.xlu0 %1630
        %v1633 = vlaneseq
        %v1634 = vshrl.u32 %v1633, 7
        %v1635 = vsub.s32 1, %v1634
        %v1636 = vrot.slane %v1617, %v1635
        %v1637 = vmul.f32 %v1631, %v1636
        %v1638 = vadd.f32 %v1628, %v1637
        %s1639 = scalar_lea.vmem [#allocation7], 2
        %v1640 = vld [vmem:[%s1639] sm:$0x3]
        %1642 = vset.pattern.permute.xlu0 0
        %1643 = vperm.xlu0 %1642, %v1616
        %v1644 = vpop.permute.xlu0 %1643
        %v1646 = vlaneseq
        %v1647 = vshrl.u32 %v1646, 7
        %v1648 = vsub.s32 0, %v1647
        %v1649 = vrot.slane %v1640, %v1648
        %v1650 = vmul.f32 %v1621, %v1649
        %v1651 = vmul.f32 %v1644, %v1649
        %v1654 = vrot.slane %v1650, 1
        %v1655 = vrot.slane %v1651, 1
        %v1656 = vsel %vm860, %v1654, %v1655
        %v1658 = vadd.f32 %v1638, %v1656
        %1659 = vset.pattern.permute.xlu0 1
        %1660 = vperm.xlu0 %1659, %v1616
        %v1661 = vpop.permute.xlu0 %1660
        %v1663 = vlaneseq
        %v1664 = vshrl.u32 %v1663, 7
        %v1665 = vsub.s32 1, %v1664
        %v1666 = vrot.slane %v1640, %v1665
        %v1667 = vmul.f32 %v1631, %v1666
        %v1668 = vmul.f32 %v1661, %v1666
        %v1671 = vrot.slane %v1667, 1
        %v1672 = vrot.slane %v1668, 1
        %v1673 = vsel %vm860, %v1671, %v1672
        %v1675 = vadd.f32 %v1658, %v1673
        %s1676 = scalar_lea.vmem [#allocation7], 4
        %v1677 = vld [vmem:[%s1676] sm:$0x3]
        %v1678 = vlaneseq
        %v1679 = vshrl.u32 %v1678, 7
        %v1680 = vsub.s32 0, %v1679
        %v1681 = vrot.slane %v1677, %v1680
        %v1682 = vmul.f32 %v1621, %v1681
        %v1683 = vmul.f32 %v1644, %v1681
        %v1686 = vrot.slane %v1682, 2
        %v1687 = vrot.slane %v1683, 2
        %v1688 = vsel %vm1013, %v1686, %v1687
        %v1690 = vadd.f32 %v1675, %v1688
        %v1691 = vlaneseq
        %v1692 = vshrl.u32 %v1691, 7
        %v1693 = vsub.s32 1, %v1692
        %v1694 = vrot.slane %v1677, %v1693
        %v1695 = vmul.f32 %v1631, %v1694
        %v1696 = vmul.f32 %v1661, %v1694
        %v1699 = vrot.slane %v1695, 2
        %v1700 = vrot.slane %v1696, 2
        %v1701 = vsel %vm1013, %v1699, %v1700
        %v1703 = vadd.f32 %v1690, %v1701
        %v1704 = vld [vmem:[%s17] sm:$0x1]
        %v1706 = vlaneseq
        %v1707 = vshrl.u32 %v1706, 7
        %v1708 = vsub.s32 0, %v1707
        %v1709 = vrot.slane %v1704, %v1708
        %v1711 = vadd.f32 %v1703, %v1709
        %v1712 = vadd.f32 %v839, %v1711
        %1713 = vst.msk [vmem:[%s710] sm:$0xff] %vm743, %v1712
        %1714 = vrot.lane.b32.xlu0 %v1609, 126
        %v1715 = vpop.permute.xlu0 %1714
        %vm1717 = vcmask 7168
        %1718 = vst.msk [vmem:[%s714] sm:$0xff] %vm1717, %v1715
        %p1719 = scmp.lt.s32.totalorder %s36, 1
        %s1720 = scalar_select %p1719, %s36, 1
        %s1721 = smul.addr %s1720, 8
        %s1722 = scalar_lea.vmem %s18, %s1721
        %p1723 = scmp.lt.s32.totalorder %s36, 1
        %s1724 = scalar_select %p1723, %s36, 1
        %s1725 = smul.addr %s1724, 8
        %s1726 = scalar_lea.vmem %s19, %s1725
        // Predicated region
        $region109: #{prompt_tts_forward.4} parent=91 // pred_check
          %p1727 = pneg %p452
        $region110: #{prompt_tts_forward.4} parent=91 // pred_check_branch
          %1729 = sbr.rel (%p1727) target = $region112
        $region111: #{prompt_tts_forward.4} parent=91 // pred_region
          _
        $region112: #{prompt_tts_forward.4} parent=91 // pred_fallthru
          _
        // Predicated region
        $region113: #{prompt_tts_forward.4} parent=91 // pred_check
          %p1730 = pneg %p478
        $region114: #{prompt_tts_forward.4} parent=91 // pred_check_branch
          %1732 = sbr.rel (%p1730) target = $region116
        $region115: #{prompt_tts_forward.4} parent=91 // pred_region
          _
        $region116: #{prompt_tts_forward.4} parent=91 // pred_fallthru
          _
      $region92: #{prompt_tts_forward.4} parent=5 // pred_fallthru
        _
      %p1733 = scmp.le.s32.totalorder 2, %s31
      // Predicated region
      $region117: #{prompt_tts_forward.4} parent=5 // pred_check
        %p1734 = pneg %p1733
      $region118: #{prompt_tts_forward.4} parent=5 // pred_check_branch
        %1736 = sbr.rel (%p1734) target = $region120
      $region119: #{prompt_tts_forward.4} parent=5 // pred_region
        %s1737 = ssub.s32 %s31, 2
        // Predicated region
        $region121: #{prompt_tts_forward.4} parent=119 // pred_check
          %p1738 = pneg %p458
        $region122: #{prompt_tts_forward.4} parent=119 // pred_check_branch
          %1740 = sbr.rel (%p1738) target = $region124
        $region123: #{prompt_tts_forward.4} parent=119 // pred_region
          %p1741 = scmp.lt.s32.totalorder %s37, 1
          %s1742 = scalar_select %p1741, %s37, 1
          %s1743 = smul.addr %s1742, 8
          %s1744 = scalar_lea.vmem %s18, %s1743
        $region124: #{prompt_tts_forward.4} parent=119 // pred_fallthru
          _
        // Predicated region
        $region125: #{prompt_tts_forward.4} parent=119 // pred_check
          %p1745 = pneg %p484
        $region126: #{prompt_tts_forward.4} parent=119 // pred_check_branch
          %1747 = sbr.rel (%p1745) target = $region128
        $region127: #{prompt_tts_forward.4} parent=119 // pred_region
          %p1748 = scmp.lt.s32.totalorder %s37, 1
          %s1749 = scalar_select %p1748, %s37, 1
          %s1750 = smul.addr %s1749, 8
          %s1751 = scalar_lea.vmem %s19, %s1750
        $region128: #{prompt_tts_forward.4} parent=119 // pred_fallthru
          _
      $region120: #{prompt_tts_forward.4} parent=5 // pred_fallthru
        _
    $region6: #{prompt_tts_forward.4} parent=1 // loop_footer
      %s35 = sadd.s32 1, %s31
    $region7: #{prompt_tts_forward.4} parent=1 // loop_footer_branch
      %30 = sbr.rel target = $region3
    $region8: #{prompt_tts_forward.4} parent=1 // loop_exit
      _
    %1752 = vsyncpa [#allocation3], 1
    %s1753 = scalar_lea.sflag [#allocation3], 1
    %1754 = vsyncpa %s1753, 1
    %1755 = vsyncpa [#allocation5], 1
    %1756 = vsyncpa [#allocation8], 1

</llo_original>
